<compile_context>
chip_gen: v7x
topology: tpu7x:2x2x1
jax: 0.10.0
libtpu: 0.0.40
codegen_flags: <defaults>
</compile_context>

<pallas_src>
import jax
import jax.numpy as jnp
from jax.experimental import pallas as pl
from jax.experimental.pallas import tpu as pltpu

LATENT_DIM = 32
N_CLUSTERS = 10        # unused by forward(); kept for parity with __init__
BN_EPS = 1e-5
FEAT = 784
FEAT_PAD = 896         # 7 * 128 -> lane-aligned feature dim
HEAD_PAD = 128         # 2 * LATENT_DIM (=64) padded to one full lane tile


def _round_up(n, m):
    return (n + m - 1) // m * m


# --------------------------------------------------------------------------- #
# Kernel
# --------------------------------------------------------------------------- #
def vade_forward_kernel(x_ref, eps_ref,
                        w1_ref, b1_ref, w2_ref, b2_ref,
                        wh_ref, bh_ref, w4_ref, b4_ref,
                        w5_ref, b5_ref, w6_ref, b6_ref,
                        dec_ref, mulv_ref):
    bf16 = jnp.bfloat16
    L = eps_ref.shape[1]

    # encoder: Linear(784->512) + ReLU   (BN1 folded into w2/b2)
    x = x_ref[...].astype(bf16)
    h = jnp.dot(x, w1_ref[...], preferred_element_type=jnp.float32) + b1_ref[...]
    h = jnp.maximum(h, 0.0)

    # encoder: Linear(512->256) + ReLU   (BN2 folded into head)
    h = jnp.dot(h.astype(bf16), w2_ref[...],
                preferred_element_type=jnp.float32) + b2_ref[...]
    h = jnp.maximum(h, 0.0)

    # fused heads: [mu | logvar | 0] = h @ [Wmu|Wlv|0] + [bmu|blv|0]
    # (padded to 128 lanes -> lane-dense, unmasked output store)
    mulv = jnp.dot(h.astype(bf16), wh_ref[...],
                   preferred_element_type=jnp.float32) + bh_ref[...]
    mulv_ref[...] = mulv

    mu = mulv[:, :L]
    lv = mulv[:, L:2 * L]

    # reparameterize: z = eps * exp(0.5*logvar) + mu
    z = eps_ref[...] * jnp.exp(0.5 * lv) + mu

    # decode: relu(fc4(z))
    h3 = jnp.dot(z.astype(bf16), w4_ref[...],
                 preferred_element_type=jnp.float32) + b4_ref[...]
    h3 = jnp.maximum(h3, 0.0)

    # decoder: Linear(256->512) + ReLU   (BN3 folded into w6/b6)
    d = jnp.dot(h3.astype(bf16), w5_ref[...],
                preferred_element_type=jnp.float32) + b5_ref[...]
    d = jnp.maximum(d, 0.0)

    # decoder: Linear(512->784[pad 896]) + Sigmoid
    d = jnp.dot(d.astype(bf16), w6_ref[...],
                preferred_element_type=jnp.float32) + b6_ref[...]
    dec_ref[...] = jax.nn.sigmoid(d)


# --------------------------------------------------------------------------- #
# Parameters
# --------------------------------------------------------------------------- #
def init_params(latent_dim=LATENT_DIM, seed=0):
    """Deterministic synthetic parameters (PyTorch shapes, weights pre-transposed
    as [in, out]).  BN stats are non-trivial so the fold is actually exercised."""
    key = jax.random.PRNGKey(seed)
    ks = jax.random.split(key, 26)

    def lin(kw, kb, fan_in, fan_out):
        bound = 1.0 / jnp.sqrt(fan_in)
        w = jax.random.uniform(kw, (fan_in, fan_out), jnp.float32, -bound, bound)
        b = jax.random.uniform(kb, (1, fan_out), jnp.float32, -bound, bound)
        return w, b

    w1, b1 = lin(ks[0], ks[1], 784, 512)
    w2, b2 = lin(ks[2], ks[3], 512, 256)
    wmu, bmu = lin(ks[4], ks[5], 256, latent_dim)
    wlv, blv = lin(ks[6], ks[7], 256, latent_dim)
    w4, b4 = lin(ks[8], ks[9], latent_dim, 256)
    w5, b5 = lin(ks[10], ks[11], 256, 512)
    w6, b6 = lin(ks[12], ks[13], 512, 784)

    def bn(kg, kb, km, kv, n):
        g = jax.random.uniform(kg, (1, n), jnp.float32, 0.5, 1.5)
        be = jax.random.uniform(kb, (1, n), jnp.float32, -0.1, 0.1)
        rm = 0.1 * jax.random.normal(km, (1, n), jnp.float32)
        rv = jax.random.uniform(kv, (1, n), jnp.float32, 0.5, 1.5)
        return g, be, rm, rv

    g1, be1, rm1, rv1 = bn(ks[14], ks[15], ks[16], ks[17], 512)
    g2, be2, rm2, rv2 = bn(ks[18], ks[19], ks[20], ks[21], 256)
    g3, be3, rm3, rv3 = bn(ks[22], ks[23], ks[24], ks[25], 512)

    return dict(
        w1=w1, b1=b1, g1=g1, be1=be1, rm1=rm1, rv1=rv1,
        w2=w2, b2=b2, g2=g2, be2=be2, rm2=rm2, rv2=rv2,
        wmu=wmu, bmu=bmu, wlv=wlv, blv=blv,
        w4=w4, b4=b4,
        w5=w5, b5=b5, g3=g3, be3=be3, rm3=rm3, rv3=rv3,
        w6=w6, b6=b6,
    )


def prepare_params(p):
    """Fold eval-mode BN into the following Linear, fuse mu/logvar heads
    (padded to 128 output lanes), pad 784->896 feature dims, cast weights to
    bf16 (biases stay f32)."""
    def bn_fold(g, be, rm, rv):
        s = g * jax.lax.rsqrt(rv + BN_EPS)       # [1, n]
        t = be - rm * s                          # [1, n]
        return s, t

    s1, t1 = bn_fold(p["g1"], p["be1"], p["rm1"], p["rv1"])
    s2, t2 = bn_fold(p["g2"], p["be2"], p["rm2"], p["rv2"])
    s3, t3 = bn_fold(p["g3"], p["be3"], p["rm3"], p["rv3"])

    # fc1: pad input dim 784 -> 896 with zero rows (padded x cols are zero).
    w1 = jnp.pad(p["w1"], ((0, FEAT_PAD - FEAT), (0, 0)))
    b1 = p["b1"]

    # BN1 folded into fc2.
    w2 = p["w2"] * s1.T
    b2 = p["b2"] + t1 @ p["w2"]

    # BN2 folded into fused [mu | logvar] head; pad 2L -> 128 output cols.
    wh_raw = jnp.concatenate([p["wmu"], p["wlv"]], axis=1)      # [256, 2L]
    bh_raw = jnp.concatenate([p["bmu"], p["blv"]], axis=1)      # [1, 2L]
    wh = wh_raw * s2.T
    bh = bh_raw + t2 @ wh_raw
    pad_h = HEAD_PAD - wh.shape[1]
    wh = jnp.pad(wh, ((0, 0), (0, pad_h)))
    bh = jnp.pad(bh, ((0, 0), (0, pad_h)))

    w4, b4 = p["w4"], p["b4"]
    w5, b5 = p["w5"], p["b5"]

    # BN3 folded into the output Linear; pad output dim 784 -> 896.
    w6 = p["w6"] * s3.T
    b6 = p["b6"] + t3 @ p["w6"]
    w6 = jnp.pad(w6, ((0, 0), (0, FEAT_PAD - FEAT)))
    b6 = jnp.pad(b6, ((0, 0), (0, FEAT_PAD - FEAT)))

    bf = jnp.bfloat16
    return dict(
        w1=w1.astype(bf), b1=b1,
        w2=w2.astype(bf), b2=b2,
        wh=wh.astype(bf), bh=bh,
        w4=w4.astype(bf), b4=b4,
        w5=w5.astype(bf), b5=b5,
        w6=w6.astype(bf), b6=b6,
    )


# --------------------------------------------------------------------------- #
# Wrapper
# --------------------------------------------------------------------------- #
@jax.jit
def vade_forward(x, eps, pp):
    """x: [..., 784] f32 (flattened like x.view(-1, 784)); eps: [B, L] f32."""
    x = x.reshape(-1, FEAT)
    B = x.shape[0]
    L = eps.shape[1]

    # Batch tile: >=256 rows for big batches (fills the 256x256 MXU on
    # v6e/v7x); round small demo batches up to a sublane multiple.
    if B >= 512:
        TB = 256
    elif B >= 128:
        TB = 128
    else:
        TB = _round_up(B, 8)
    B_pad = _round_up(B, TB)
    num_tiles = B_pad // TB

    x_p = jnp.pad(x, ((0, B_pad - B), (0, FEAT_PAD - FEAT)))
    eps_p = jnp.pad(eps, ((0, B_pad - B), (0, 0)))

    weights = (pp["w1"], pp["b1"], pp["w2"], pp["b2"],
               pp["wh"], pp["bh"], pp["w4"], pp["b4"],
               pp["w5"], pp["b5"], pp["w6"], pp["b6"])

    def tile_spec(feat):
        return pl.BlockSpec((TB, feat), lambda i: (i, 0))

    def resident_spec(arr):                      # VMEM-resident across grid steps
        return pl.BlockSpec(arr.shape, lambda i: (0, 0))

    in_specs = ([tile_spec(FEAT_PAD), tile_spec(L)]
                + [resident_spec(w) for w in weights])
    out_specs = (tile_spec(FEAT_PAD), tile_spec(HEAD_PAD))

    flops = 2 * B_pad * (FEAT_PAD * 512 + 512 * 256 + 256 * HEAD_PAD
                         + L * 256 + 256 * 512 + 512 * FEAT_PAD)
    transcendentals = B_pad * (L + FEAT_PAD)
    bytes_accessed = int(
        x_p.size * 4 + eps_p.size * 4
        + sum(w.size * w.dtype.itemsize for w in weights)
        + B_pad * FEAT_PAD * 4 + B_pad * HEAD_PAD * 4)

    dec_p, mulv = pl.pallas_call(
        vade_forward_kernel,
        out_shape=(
            jax.ShapeDtypeStruct((B_pad, FEAT_PAD), jnp.float32),   # decoded (padded)
            jax.ShapeDtypeStruct((B_pad, HEAD_PAD), jnp.float32),   # [mu | logvar | 0]
        ),
        grid=(num_tiles,),
        in_specs=in_specs,
        out_specs=out_specs,
        compiler_params=pltpu.CompilerParams(
            dimension_semantics=("parallel",),
            vmem_limit_bytes=32 * 1024 * 1024,
        ),
        cost_estimate=pl.CostEstimate(
            flops=int(flops),
            transcendentals=int(transcendentals),
            bytes_accessed=bytes_accessed,
        ),
    )(x_p, eps_p, *weights)

    decoded = dec_p[:B, :FEAT]
    mu = mulv[:B, :L]
    logvar = mulv[:B, L:2 * L]
    return decoded, mu, logvar


# --------------------------------------------------------------------------- #
# Pure-JAX reference (unfolded f32 params, eval-mode semantics)
# --------------------------------------------------------------------------- #
def reference_forward(x, eps, params):
    p = params
    x = x.reshape(-1, FEAT)

    def bn(h, g, be, rm, rv):
        return (h - rm) * jax.lax.rsqrt(rv + BN_EPS) * g + be

    h = jnp.maximum(x @ p["w1"] + p["b1"], 0.0)
    h = bn(h, p["g1"], p["be1"], p["rm1"], p["rv1"])
    h = jnp.maximum(h @ p["w2"] + p["b2"], 0.0)
    h = bn(h, p["g2"], p["be2"], p["rm2"], p["rv2"])
    mu = h @ p["wmu"] + p["bmu"]
    lv = h @ p["wlv"] + p["blv"]
    z = eps * jnp.exp(0.5 * lv) + mu
    h3 = jnp.maximum(z @ p["w4"] + p["b4"], 0.0)
    d = jnp.maximum(h3 @ p["w5"] + p["b5"], 0.0)
    d = bn(d, p["g3"], p["be3"], p["rm3"], p["rv3"])
    d = jax.nn.sigmoid(d @ p["w6"] + p["b6"])
    return d, mu, lv


if __name__ == "__main__":
    B = 16
    key = jax.random.PRNGKey(0)
    kx, keps = jax.random.split(key)
    # Module's forward does x.view(-1, 784); feed an MNIST-like batch [B,1,28,28].
    x_img = jax.random.uniform(kx, (B, 1, 28, 28), jnp.float32)
    eps = jax.random.normal(keps, (B, LATENT_DIM), jnp.float32)

    params = init_params()
    prepped = prepare_params(params)

    decoded, mu, logvar = vade_forward(x_img, eps, prepped)
    jax.block_until_ready((decoded, mu, logvar))

    # Sanity check vs. f32 reference (bf16 matmuls => tolerance-based compare).
    d_ref, mu_ref, lv_ref = reference_forward(x_img, eps, params)
    assert decoded.shape == (B, FEAT)
    assert mu.shape == (B, LATENT_DIM) and logvar.shape == (B, LATENT_DIM)
    assert bool(jnp.allclose(decoded, d_ref, atol=3e-2, rtol=3e-2))
    assert bool(jnp.allclose(mu, mu_ref, atol=3e-2, rtol=3e-2))
    assert bool(jnp.allclose(logvar, lv_ref, atol=3e-2, rtol=3e-2))

    print("KERNEL_OK")
</pallas_src>

<mosaic_0001>
module attributes {stable_mosaic.version = 11 : i64} {
  func.func @vade_forward_kernel(%arg0: i32, %arg1: memref<16x896xf32, #tpu.memory_space<vmem>>, %arg2: memref<16x32xf32, #tpu.memory_space<vmem>>, %arg3: memref<896x512xbf16, #tpu.memory_space<vmem>>, %arg4: memref<1x512xf32, #tpu.memory_space<vmem>>, %arg5: memref<512x256xbf16, #tpu.memory_space<vmem>>, %arg6: memref<1x256xf32, #tpu.memory_space<vmem>>, %arg7: memref<256x128xbf16, #tpu.memory_space<vmem>>, %arg8: memref<1x128xf32, #tpu.memory_space<vmem>>, %arg9: memref<32x256xbf16, #tpu.memory_space<vmem>>, %arg10: memref<1x256xf32, #tpu.memory_space<vmem>>, %arg11: memref<256x512xbf16, #tpu.memory_space<vmem>>, %arg12: memref<1x512xf32, #tpu.memory_space<vmem>>, %arg13: memref<512x896xbf16, #tpu.memory_space<vmem>>, %arg14: memref<1x896xf32, #tpu.memory_space<vmem>>, %arg15: memref<16x896xf32, #tpu.memory_space<vmem>>, %arg16: memref<16x128xf32, #tpu.memory_space<vmem>>) attributes {dimension_semantics = [#tpu.dimension_semantics<parallel>], iteration_bounds = array<i64: 1>, scalar_prefetch = 0 : i64, scratch_operands = 0 : i64, tpu.core_type = #tpu.core_type<tc>, window_params = [{transform_indices = @transform_0, window_bounds = array<i64: 16, 896>}, {transform_indices = @transform_1, window_bounds = array<i64: 16, 32>}, {pipeline_mode = #tpu.pipeline_mode<synchronous>, transform_indices = @transform_2, window_bounds = array<i64: 896, 512>}, {pipeline_mode = #tpu.pipeline_mode<synchronous>, transform_indices = @transform_3, window_bounds = array<i64: 1, 512>}, {pipeline_mode = #tpu.pipeline_mode<synchronous>, transform_indices = @transform_4, window_bounds = array<i64: 512, 256>}, {pipeline_mode = #tpu.pipeline_mode<synchronous>, transform_indices = @transform_5, window_bounds = array<i64: 1, 256>}, {pipeline_mode = #tpu.pipeline_mode<synchronous>, transform_indices = @transform_6, window_bounds = array<i64: 256, 128>}, {pipeline_mode = #tpu.pipeline_mode<synchronous>, transform_indices = @transform_7, window_bounds = array<i64: 1, 128>}, {pipeline_mode = #tpu.pipeline_mode<synchronous>, transform_indices = @transform_8, window_bounds = array<i64: 32, 256>}, {pipeline_mode = #tpu.pipeline_mode<synchronous>, transform_indices = @transform_9, window_bounds = array<i64: 1, 256>}, {pipeline_mode = #tpu.pipeline_mode<synchronous>, transform_indices = @transform_10, window_bounds = array<i64: 256, 512>}, {pipeline_mode = #tpu.pipeline_mode<synchronous>, transform_indices = @transform_11, window_bounds = array<i64: 1, 512>}, {pipeline_mode = #tpu.pipeline_mode<synchronous>, transform_indices = @transform_12, window_bounds = array<i64: 512, 896>}, {pipeline_mode = #tpu.pipeline_mode<synchronous>, transform_indices = @transform_13, window_bounds = array<i64: 1, 896>}, {transform_indices = @transform_14, window_bounds = array<i64: 16, 896>}, {transform_indices = @transform_15, window_bounds = array<i64: 16, 128>}]} {
    %c0 = arith.constant 0 : index
    %c0_0 = arith.constant 0 : index
    %0 = vector.load %arg1[%c0, %c0_0] : memref<16x896xf32, #tpu.memory_space<vmem>>, vector<16x896xf32>
    %1 = arith.truncf %0 : vector<16x896xf32> to vector<16x896xbf16>
    %c0_1 = arith.constant 0 : index
    %c0_2 = arith.constant 0 : index
    %2 = vector.load %arg3[%c0_1, %c0_2] : memref<896x512xbf16, #tpu.memory_space<vmem>>, vector<896x512xbf16>
    %cst = arith.constant dense<0.000000e+00> : vector<16x512xf32>
    %3 = tpu.matmul %1, %2, %cst {dimension_numbers = #tpu.dot_dimension_numbers<[1], [0], [0], [1], [0, 0, 1, 1], [], []>} : vector<16x896xbf16>, vector<896x512xbf16>, vector<16x512xf32> -> vector<16x512xf32>
    %c0_3 = arith.constant 0 : index
    %c0_4 = arith.constant 0 : index
    %4 = vector.load %arg4[%c0_3, %c0_4] : memref<1x512xf32, #tpu.memory_space<vmem>>, vector<1x512xf32>
    %5 = vector.broadcast %4 : vector<1x512xf32> to vector<16x512xf32>
    %6 = arith.addf %3, %5 : vector<16x512xf32>
    %cst_5 = arith.constant 0.000000e+00 : f32
    %7 = vector.broadcast %cst_5 : f32 to vector<16x512xf32>
    %8 = arith.maximumf %6, %7 : vector<16x512xf32>
    %9 = arith.truncf %8 : vector<16x512xf32> to vector<16x512xbf16>
    %c0_6 = arith.constant 0 : index
    %c0_7 = arith.constant 0 : index
    %10 = vector.load %arg5[%c0_6, %c0_7] : memref<512x256xbf16, #tpu.memory_space<vmem>>, vector<512x256xbf16>
    %cst_8 = arith.constant dense<0.000000e+00> : vector<16x256xf32>
    %11 = tpu.matmul %9, %10, %cst_8 {dimension_numbers = #tpu.dot_dimension_numbers<[1], [0], [0], [1], [0, 0, 1, 1], [], []>} : vector<16x512xbf16>, vector<512x256xbf16>, vector<16x256xf32> -> vector<16x256xf32>
    %c0_9 = arith.constant 0 : index
    %c0_10 = arith.constant 0 : index
    %12 = vector.load %arg6[%c0_9, %c0_10] : memref<1x256xf32, #tpu.memory_space<vmem>>, vector<1x256xf32>
    %13 = vector.broadcast %12 : vector<1x256xf32> to vector<16x256xf32>
    %14 = arith.addf %11, %13 : vector<16x256xf32>
    %cst_11 = arith.constant 0.000000e+00 : f32
    %15 = vector.broadcast %cst_11 : f32 to vector<16x256xf32>
    %16 = arith.maximumf %14, %15 : vector<16x256xf32>
    %17 = arith.truncf %16 : vector<16x256xf32> to vector<16x256xbf16>
    %c0_12 = arith.constant 0 : index
    %c0_13 = arith.constant 0 : index
    %18 = vector.load %arg7[%c0_12, %c0_13] : memref<256x128xbf16, #tpu.memory_space<vmem>>, vector<256x128xbf16>
    %cst_14 = arith.constant dense<0.000000e+00> : vector<16x128xf32>
    %19 = tpu.matmul %17, %18, %cst_14 {dimension_numbers = #tpu.dot_dimension_numbers<[1], [0], [0], [1], [0, 0, 1, 1], [], []>} : vector<16x256xbf16>, vector<256x128xbf16>, vector<16x128xf32> -> vector<16x128xf32>
    %c0_15 = arith.constant 0 : index
    %c0_16 = arith.constant 0 : index
    %20 = vector.load %arg8[%c0_15, %c0_16] : memref<1x128xf32, #tpu.memory_space<vmem>>, vector<1x128xf32>
    %21 = vector.broadcast %20 : vector<1x128xf32> to vector<16x128xf32>
    %22 = arith.addf %19, %21 : vector<16x128xf32>
    %c0_17 = arith.constant 0 : index
    %c0_18 = arith.constant 0 : index
    %23 = vector.load %arg16[%c0_17, %c0_18] : memref<16x128xf32, #tpu.memory_space<vmem>>, vector<16x128xf32>
    tpu.vector_store %arg16[%c0_17, %c0_18], %22 {strides = array<i32>} : memref<16x128xf32, #tpu.memory_space<vmem>>, vector<16x128xf32>,
    %24 = vector.extract_strided_slice %22 {offsets = [0, 0], sizes = [16, 32], strides = [1, 1]} : vector<16x128xf32> to vector<16x32xf32>
    %25 = vector.extract_strided_slice %22 {offsets = [0, 32], sizes = [16, 32], strides = [1, 1]} : vector<16x128xf32> to vector<16x32xf32>
    %c0_19 = arith.constant 0 : index
    %c0_20 = arith.constant 0 : index
    %26 = vector.load %arg2[%c0_19, %c0_20] : memref<16x32xf32, #tpu.memory_space<vmem>>, vector<16x32xf32>
    %cst_21 = arith.constant 5.000000e-01 : f32
    %27 = vector.broadcast %cst_21 : f32 to vector<16x32xf32>
    %28 = arith.mulf %27, %25 : vector<16x32xf32>
    %29 = math.exp %28 : vector<16x32xf32>
    %30 = arith.mulf %26, %29 : vector<16x32xf32>
    %31 = arith.addf %30, %24 : vector<16x32xf32>
    %32 = arith.truncf %31 : vector<16x32xf32> to vector<16x32xbf16>
    %c0_22 = arith.constant 0 : index
    %c0_23 = arith.constant 0 : index
    %33 = vector.load %arg9[%c0_22, %c0_23] : memref<32x256xbf16, #tpu.memory_space<vmem>>, vector<32x256xbf16>
    %cst_24 = arith.constant dense<0.000000e+00> : vector<16x256xf32>
    %34 = tpu.matmul %32, %33, %cst_24 {dimension_numbers = #tpu.dot_dimension_numbers<[1], [0], [0], [1], [0, 0, 1, 1], [], []>} : vector<16x32xbf16>, vector<32x256xbf16>, vector<16x256xf32> -> vector<16x256xf32>
    %c0_25 = arith.constant 0 : index
    %c0_26 = arith.constant 0 : index
    %35 = vector.load %arg10[%c0_25, %c0_26] : memref<1x256xf32, #tpu.memory_space<vmem>>, vector<1x256xf32>
    %36 = vector.broadcast %35 : vector<1x256xf32> to vector<16x256xf32>
    %37 = arith.addf %34, %36 : vector<16x256xf32>
    %cst_27 = arith.constant 0.000000e+00 : f32
    %38 = vector.broadcast %cst_27 : f32 to vector<16x256xf32>
    %39 = arith.maximumf %37, %38 : vector<16x256xf32>
    %40 = arith.truncf %39 : vector<16x256xf32> to vector<16x256xbf16>
    %c0_28 = arith.constant 0 : index
    %c0_29 = arith.constant 0 : index
    %41 = vector.load %arg11[%c0_28, %c0_29] : memref<256x512xbf16, #tpu.memory_space<vmem>>, vector<256x512xbf16>
    %cst_30 = arith.constant dense<0.000000e+00> : vector<16x512xf32>
    %42 = tpu.matmul %40, %41, %cst_30 {dimension_numbers = #tpu.dot_dimension_numbers<[1], [0], [0], [1], [0, 0, 1, 1], [], []>} : vector<16x256xbf16>, vector<256x512xbf16>, vector<16x512xf32> -> vector<16x512xf32>
    %c0_31 = arith.constant 0 : index
    %c0_32 = arith.constant 0 : index
    %43 = vector.load %arg12[%c0_31, %c0_32] : memref<1x512xf32, #tpu.memory_space<vmem>>, vector<1x512xf32>
    %44 = vector.broadcast %43 : vector<1x512xf32> to vector<16x512xf32>
    %45 = arith.addf %42, %44 : vector<16x512xf32>
    %cst_33 = arith.constant 0.000000e+00 : f32
    %46 = vector.broadcast %cst_33 : f32 to vector<16x512xf32>
    %47 = arith.maximumf %45, %46 : vector<16x512xf32>
    %48 = arith.truncf %47 : vector<16x512xf32> to vector<16x512xbf16>
    %c0_34 = arith.constant 0 : index
    %c0_35 = arith.constant 0 : index
    %49 = vector.load %arg13[%c0_34, %c0_35] : memref<512x896xbf16, #tpu.memory_space<vmem>>, vector<512x896xbf16>
    %cst_36 = arith.constant dense<0.000000e+00> : vector<16x896xf32>
    %50 = tpu.matmul %48, %49, %cst_36 {dimension_numbers = #tpu.dot_dimension_numbers<[1], [0], [0], [1], [0, 0, 1, 1], [], []>} : vector<16x512xbf16>, vector<512x896xbf16>, vector<16x896xf32> -> vector<16x896xf32>
    %c0_37 = arith.constant 0 : index
    %c0_38 = arith.constant 0 : index
    %51 = vector.load %arg14[%c0_37, %c0_38] : memref<1x896xf32, #tpu.memory_space<vmem>>, vector<1x896xf32>
    %52 = vector.broadcast %51 : vector<1x896xf32> to vector<16x896xf32>
    %53 = arith.addf %50, %52 : vector<16x896xf32>
    %54 = arith.negf %53 : vector<16x896xf32>
    %55 = math.exp %54 : vector<16x896xf32>
    %cst_39 = arith.constant 1.000000e+00 : f32
    %56 = vector.broadcast %cst_39 : f32 to vector<16x896xf32>
    %57 = arith.addf %56, %55 : vector<16x896xf32>
    %58 = arith.divf %56, %57 : vector<16x896xf32>
    %c0_40 = arith.constant 0 : index
    %c0_41 = arith.constant 0 : index
    %59 = vector.load %arg15[%c0_40, %c0_41] : memref<16x896xf32, #tpu.memory_space<vmem>>, vector<16x896xf32>
    tpu.vector_store %arg15[%c0_40, %c0_41], %58 {strides = array<i32>} : memref<16x896xf32, #tpu.memory_space<vmem>>, vector<16x896xf32>,
    return
  }
  func.func @transform_0(%arg0: i32) -> (i32, i32) {
    %c0_i32 = arith.constant 0 : i32
    %c0_i32_0 = arith.constant 0 : i32
    return %arg0, %c0_i32 : i32, i32
  }
  func.func @transform_1(%arg0: i32) -> (i32, i32) {
    %c0_i32 = arith.constant 0 : i32
    %c0_i32_0 = arith.constant 0 : i32
    return %arg0, %c0_i32 : i32, i32
  }
  func.func @transform_2(%arg0: i32) -> (i32, i32) {
    %c0_i32 = arith.constant 0 : i32
    %c0_i32_0 = arith.constant 0 : i32
    %c0_i32_1 = arith.constant 0 : i32
    return %c0_i32, %c0_i32_0 : i32, i32
  }
  func.func @transform_3(%arg0: i32) -> (i32, i32) {
    %c0_i32 = arith.constant 0 : i32
    %c0_i32_0 = arith.constant 0 : i32
    %c0_i32_1 = arith.constant 0 : i32
    return %c0_i32, %c0_i32_0 : i32, i32
  }
  func.func @transform_4(%arg0: i32) -> (i32, i32) {
    %c0_i32 = arith.constant 0 : i32
    %c0_i32_0 = arith.constant 0 : i32
    %c0_i32_1 = arith.constant 0 : i32
    return %c0_i32, %c0_i32_0 : i32, i32
  }
  func.func @transform_5(%arg0: i32) -> (i32, i32) {
    %c0_i32 = arith.constant 0 : i32
    %c0_i32_0 = arith.constant 0 : i32
    %c0_i32_1 = arith.constant 0 : i32
    return %c0_i32, %c0_i32_0 : i32, i32
  }
  func.func @transform_6(%arg0: i32) -> (i32, i32) {
    %c0_i32 = arith.constant 0 : i32
    %c0_i32_0 = arith.constant 0 : i32
    %c0_i32_1 = arith.constant 0 : i32
    return %c0_i32, %c0_i32_0 : i32, i32
  }
  func.func @transform_7(%arg0: i32) -> (i32, i32) {
    %c0_i32 = arith.constant 0 : i32
    %c0_i32_0 = arith.constant 0 : i32
    %c0_i32_1 = arith.constant 0 : i32
    return %c0_i32, %c0_i32_0 : i32, i32
  }
  func.func @transform_8(%arg0: i32) -> (i32, i32) {
    %c0_i32 = arith.constant 0 : i32
    %c0_i32_0 = arith.constant 0 : i32
    %c0_i32_1 = arith.constant 0 : i32
    return %c0_i32, %c0_i32_0 : i32, i32
  }
  func.func @transform_9(%arg0: i32) -> (i32, i32) {
    %c0_i32 = arith.constant 0 : i32
    %c0_i32_0 = arith.constant 0 : i32
    %c0_i32_1 = arith.constant 0 : i32
    return %c0_i32, %c0_i32_0 : i32, i32
  }
  func.func @transform_10(%arg0: i32) -> (i32, i32) {
    %c0_i32 = arith.constant 0 : i32
    %c0_i32_0 = arith.constant 0 : i32
    %c0_i32_1 = arith.constant 0 : i32
    return %c0_i32, %c0_i32_0 : i32, i32
  }
  func.func @transform_11(%arg0: i32) -> (i32, i32) {
    %c0_i32 = arith.constant 0 : i32
    %c0_i32_0 = arith.constant 0 : i32
    %c0_i32_1 = arith.constant 0 : i32
    return %c0_i32, %c0_i32_0 : i32, i32
  }
  func.func @transform_12(%arg0: i32) -> (i32, i32) {
    %c0_i32 = arith.constant 0 : i32
    %c0_i32_0 = arith.constant 0 : i32
    %c0_i32_1 = arith.constant 0 : i32
    return %c0_i32, %c0_i32_0 : i32, i32
  }
  func.func @transform_13(%arg0: i32) -> (i32, i32) {
    %c0_i32 = arith.constant 0 : i32
    %c0_i32_0 = arith.constant 0 : i32
    %c0_i32_1 = arith.constant 0 : i32
    return %c0_i32, %c0_i32_0 : i32, i32
  }
  func.func @transform_14(%arg0: i32) -> (i32, i32) {
    %c0_i32 = arith.constant 0 : i32
    %c0_i32_0 = arith.constant 0 : i32
    return %arg0, %c0_i32 : i32, i32
  }
  func.func @transform_15(%arg0: i32) -> (i32, i32) {
    %c0_i32 = arith.constant 0 : i32
    %c0_i32_0 = arith.constant 0 : i32
    return %arg0, %c0_i32 : i32, i32
  }
}

</mosaic_0001>

<llo_original>
// kernel: vade_forward.1
$region0: #{vade_forward.1}
  #allocation0 [shape = 'u32[]', space=smem, size = 0x4, offset = 0x4, fixed_abs, tag = 'smem constant byte address 0x4 - core index']
  #allocation1 [shape = 'u32[144,128]{1,0:T(1,128)}', space=vmem, size = 0x12000, scoped, tag = 'internal scratch']
  %s0 = inlined_call_operand.vmem [shape: f32[16,896], index: 0, kind: input, shape index: {}]
  %s1 = inlined_call_operand.vmem [shape: f32[16,32], index: 1, kind: input, shape index: {}]
  %s2 = inlined_call_operand.vmem [shape: bf16[896,512], index: 2, kind: input, shape index: {}]
  %s3 = inlined_call_operand.hbm [shape: f32[1,512], index: 3, kind: input, shape index: {}]
  %s4 = inlined_call_operand.hbm [shape: bf16[512,256], index: 4, kind: input, shape index: {}]
  %s5 = inlined_call_operand.hbm [shape: f32[1,256], index: 5, kind: input, shape index: {}]
  %s6 = inlined_call_operand.hbm [shape: bf16[256,128], index: 6, kind: input, shape index: {}]
  %s7 = inlined_call_operand.hbm [shape: f32[1,128], index: 7, kind: input, shape index: {}]
  %s8 = inlined_call_operand.vmem [shape: bf16[32,256], index: 8, kind: input, shape index: {}]
  %s9 = inlined_call_operand.hbm [shape: f32[1,256], index: 9, kind: input, shape index: {}]
  %s10 = inlined_call_operand.hbm [shape: bf16[256,512], index: 10, kind: input, shape index: {}]
  %s11 = inlined_call_operand.hbm [shape: f32[1,512], index: 11, kind: input, shape index: {}]
  %s12 = inlined_call_operand.hbm [shape: bf16[512,896], index: 12, kind: input, shape index: {}]
  %s13 = inlined_call_operand.hbm [shape: f32[1,896], index: 13, kind: input, shape index: {}]
  %s14 = inlined_call_operand.hbm [shape: f32[16,896], index: 14, kind: output, shape index: {0}]
  %s15 = inlined_call_operand.vmem [shape: f32[16,128], index: 15, kind: output, shape index: {1}]
  %16 = xla_tuple %s14, %s15
  %s17 = sld [smem:[#allocation0]]
  $region114: #{vade_forward.1} parent=0
    _
  %s19 = ssub.s32 1, %s17
  %s20 = scalar_select 0, %s19, %s17
  $region1: #{vade_forward.1} parent=0
    #allocation2 [shape = 'u8[2048]{0}', space=vmem, size = 0x800, scoped, tag = 'input window, operand 3, single buffered']
    #allocation3 [shape = 's32[1]{0}', space=sflag, size = 0x4, scoped, tag = 'scoped memory for vade_forward.1']
    #allocation4 [shape = 's32[1]{0}', space=sflag, size = 0x4, scoped, tag = 'scoped memory for vade_forward.1']
    #allocation5 [shape = 'u8[262144]{0}', space=vmem, size = 0x40000, scoped, tag = 'input window, operand 4, single buffered']
    #allocation6 [shape = 's32[1]{0}', space=sflag, size = 0x4, scoped, tag = 'scoped memory for vade_forward.1']
    #allocation7 [shape = 'u8[1024]{0}', space=vmem, size = 0x400, scoped, tag = 'input window, operand 5, single buffered']
    #allocation8 [shape = 'u8[65536]{0}', space=vmem, size = 0x10000, scoped, tag = 'input window, operand 6, single buffered']
    #allocation9 [shape = 's32[1]{0}', space=sflag, size = 0x4, scoped, tag = 'scoped memory for vade_forward.1']
    #allocation10 [shape = 'u8[512]{0}', space=vmem, size = 0x400, scoped, tag = 'input window, operand 7, single buffered']
    #allocation11 [shape = 'u8[1024]{0}', space=vmem, size = 0x400, scoped, tag = 'input window, operand 9, single buffered']
    #allocation12 [shape = 's32[1]{0}', space=sflag, size = 0x4, scoped, tag = 'scoped memory for vade_forward.1']
    #allocation13 [shape = 'u8[262144]{0}', space=vmem, size = 0x40000, scoped, tag = 'input window, operand 10, single buffered']
    #allocation14 [shape = 'u8[2048]{0}', space=vmem, size = 0x800, scoped, tag = 'input window, operand 11, single buffered']
    #allocation15 [shape = 's32[1]{0}', space=sflag, size = 0x4, scoped, tag = 'scoped memory for vade_forward.1']
    #allocation16 [shape = 'u8[917504]{0}', space=vmem, size = 0xe0000, scoped, tag = 'input window, operand 12, single buffered']
    #allocation17 [shape = 'u8[3584]{0}', space=vmem, size = 0x1000, scoped, tag = 'input window, operand 13, single buffered']
    #allocation18 [shape = 's32[1]{0}', space=sflag, size = 0x4, scoped, tag = 'scoped memory for vade_forward.1']
    #allocation19 [shape = 'u8[57344]{0}', space=vmem, size = 0xe000, scoped, tag = 'output window, operand 0, single buffered']
    %21 = vsyncpa [#allocation3], 0
    %22 = vsyncpa [#allocation6], 0
    %23 = vsyncpa [#allocation9], 0
    %24 = vsyncpa [#allocation12], 0
    %25 = vsyncpa [#allocation15], 0
    %26 = vsyncpa [#allocation18], 0
    %27 = vsyncpa [#allocation4], 0
    // Predicated region
    $region2: #{vade_forward.1} parent=1 // pred_check
      _
    $region3: #{vade_forward.1} parent=1 // pred_check_branch
      %29 = sbr.rel (0) target = $region5
    $region4: #{vade_forward.1} parent=1 // pred_region
      _
    $region5: #{vade_forward.1} parent=1 // pred_fallthru
      _
    // Predicated region
    $region6: #{vade_forward.1} parent=1 // pred_check
      _
    $region7: #{vade_forward.1} parent=1 // pred_check_branch
      %31 = sbr.rel (0) target = $region9
    $region8: #{vade_forward.1} parent=1 // pred_region
      _
    $region9: #{vade_forward.1} parent=1 // pred_fallthru
      _
    // Predicated region
    $region10: #{vade_forward.1} parent=1 // pred_check
      _
    $region11: #{vade_forward.1} parent=1 // pred_check_branch
      %33 = sbr.rel (0) target = $region13
    $region12: #{vade_forward.1} parent=1 // pred_region
      _
    $region13: #{vade_forward.1} parent=1 // pred_fallthru
      _
    // Predicated region
    $region14: #{vade_forward.1} parent=1 // pred_check
      _
    $region15: #{vade_forward.1} parent=1 // pred_check_branch
      %35 = sbr.rel (0) target = $region17
    $region16: #{vade_forward.1} parent=1 // pred_region
      %s37 = ssub.s32 64, 64
      %38 = vsyncadd [#allocation3], %s37
      %s40 = sshll.u32 [#allocation2], 4
      %s41 = int_to_ptr.vmem [resolvable:$true] %s40
      %43 = dma.hbm_to_vmem [thread:$0]  %s3, 64, %s41, [#allocation3]
    $region17: #{vade_forward.1} parent=1 // pred_fallthru
      _
    // Predicated region
    $region18: #{vade_forward.1} parent=1 // pred_check
      _
    $region19: #{vade_forward.1} parent=1 // pred_check_branch
      %45 = sbr.rel (0) target = $region21
    $region20: #{vade_forward.1} parent=1 // pred_region
      %s47 = ssub.s32 8192, 8192
      %48 = vsyncadd [#allocation6], %s47
      %s49 = sshll.u32 [#allocation5], 4
      %s50 = int_to_ptr.vmem [resolvable:$true] %s49
      %55 = dma.hbm_to_vmem [thread:$0]  %s4, 8192, %s50, [#allocation6], 128, 128, 8
    $region21: #{vade_forward.1} parent=1 // pred_fallthru
      _
    // Predicated region
    $region22: #{vade_forward.1} parent=1 // pred_check
      _
    $region23: #{vade_forward.1} parent=1 // pred_check_branch
      %57 = sbr.rel (0) target = $region25
    $region24: #{vade_forward.1} parent=1 // pred_region
      %s59 = ssub.s32 32, 32
      %60 = vsyncadd [#allocation6], %s59
      %s62 = sshll.u32 [#allocation7], 4
      %s63 = int_to_ptr.vmem [resolvable:$true] %s62
      %65 = dma.hbm_to_vmem [thread:$0]  %s5, 32, %s63, [#allocation6]
    $region25: #{vade_forward.1} parent=1 // pred_fallthru
      _
    // Predicated region
    $region26: #{vade_forward.1} parent=1 // pred_check
      _
    $region27: #{vade_forward.1} parent=1 // pred_check_branch
      %67 = sbr.rel (0) target = $region29
    $region28: #{vade_forward.1} parent=1 // pred_region
      %s69 = ssub.s32 2048, 2048
      %70 = vsyncadd [#allocation9], %s69
      %s71 = sshll.u32 [#allocation8], 4
      %s72 = int_to_ptr.vmem [resolvable:$true] %s71
      %77 = dma.hbm_to_vmem [thread:$0]  %s6, 2048, %s72, [#allocation9], 64, 64, 4
    $region29: #{vade_forward.1} parent=1 // pred_fallthru
      _
    // Predicated region
    $region30: #{vade_forward.1} parent=1 // pred_check
      _
    $region31: #{vade_forward.1} parent=1 // pred_check_branch
      %79 = sbr.rel (0) target = $region33
    $region32: #{vade_forward.1} parent=1 // pred_region
      %s81 = ssub.s32 16, 16
      %82 = vsyncadd [#allocation9], %s81
      %s84 = sshll.u32 [#allocation10], 4
      %s85 = int_to_ptr.vmem [resolvable:$true] %s84
      %87 = dma.hbm_to_vmem [thread:$0]  %s7, 16, %s85, [#allocation9]
    $region33: #{vade_forward.1} parent=1 // pred_fallthru
      _
    // Predicated region
    $region34: #{vade_forward.1} parent=1 // pred_check
      _
    $region35: #{vade_forward.1} parent=1 // pred_check_branch
      %89 = sbr.rel (0) target = $region37
    $region36: #{vade_forward.1} parent=1 // pred_region
      _
    $region37: #{vade_forward.1} parent=1 // pred_fallthru
      _
    // Predicated region
    $region38: #{vade_forward.1} parent=1 // pred_check
      _
    $region39: #{vade_forward.1} parent=1 // pred_check_branch
      %91 = sbr.rel (0) target = $region41
    $region40: #{vade_forward.1} parent=1 // pred_region
      %s93 = ssub.s32 32, 32
      %94 = vsyncadd [#allocation12], %s93
      %s96 = sshll.u32 [#allocation11], 4
      %s97 = int_to_ptr.vmem [resolvable:$true] %s96
      %99 = dma.hbm_to_vmem [thread:$0]  %s9, 32, %s97, [#allocation12]
    $region41: #{vade_forward.1} parent=1 // pred_fallthru
      _
    // Predicated region
    $region42: #{vade_forward.1} parent=1 // pred_check
      _
    $region43: #{vade_forward.1} parent=1 // pred_check_branch
      %101 = sbr.rel (0) target = $region45
    $region44: #{vade_forward.1} parent=1 // pred_region
      %s103 = ssub.s32 8192, 8192
      %104 = vsyncadd [#allocation12], %s103
      %s105 = sshll.u32 [#allocation13], 4
      %s106 = int_to_ptr.vmem [resolvable:$true] %s105
      %111 = dma.hbm_to_vmem [thread:$0]  %s10, 8192, %s106, [#allocation12], 256, 256, 16
    $region45: #{vade_forward.1} parent=1 // pred_fallthru
      _
    // Predicated region
    $region46: #{vade_forward.1} parent=1 // pred_check
      _
    $region47: #{vade_forward.1} parent=1 // pred_check_branch
      %113 = sbr.rel (0) target = $region49
    $region48: #{vade_forward.1} parent=1 // pred_region
      %s115 = ssub.s32 64, 64
      %116 = vsyncadd [#allocation15], %s115
      %s118 = sshll.u32 [#allocation14], 4
      %s119 = int_to_ptr.vmem [resolvable:$true] %s118
      %121 = dma.hbm_to_vmem [thread:$0]  %s11, 64, %s119, [#allocation15]
    $region49: #{vade_forward.1} parent=1 // pred_fallthru
      _
    // Predicated region
    $region50: #{vade_forward.1} parent=1 // pred_check
      _
    $region51: #{vade_forward.1} parent=1 // pred_check_branch
      %123 = sbr.rel (0) target = $region53
    $region52: #{vade_forward.1} parent=1 // pred_region
      %s125 = ssub.s32 28672, 28672
      %126 = vsyncadd [#allocation15], %s125
      %s127 = sshll.u32 [#allocation16], 4
      %s128 = int_to_ptr.vmem [resolvable:$true] %s127
      %133 = dma.hbm_to_vmem [thread:$0]  %s12, 28672, %s128, [#allocation15], 448, 448, 28
    $region53: #{vade_forward.1} parent=1 // pred_fallthru
      _
    // Predicated region
    $region54: #{vade_forward.1} parent=1 // pred_check
      _
    $region55: #{vade_forward.1} parent=1 // pred_check_branch
      %135 = sbr.rel (0) target = $region57
    $region56: #{vade_forward.1} parent=1 // pred_region
      %s137 = ssub.s32 112, 112
      %138 = vsyncadd [#allocation18], %s137
      %s140 = sshll.u32 [#allocation17], 4
      %s141 = int_to_ptr.vmem [resolvable:$true] %s140
      %143 = dma.hbm_to_vmem [thread:$0]  %s13, 112, %s141, [#allocation18]
    $region57: #{vade_forward.1} parent=1 // pred_fallthru
      _
    // Predicated region
    $region58: #{vade_forward.1} parent=1 // pred_check
      _
    $region59: #{vade_forward.1} parent=1 // pred_check_branch
      %145 = sbr.rel (0) target = $region61
    $region60: #{vade_forward.1} parent=1 // pred_region
      %146 = dma.done [#allocation3], 64
    $region61: #{vade_forward.1} parent=1 // pred_fallthru
      _
    // Predicated region
    $region62: #{vade_forward.1} parent=1 // pred_check
      _
    $region63: #{vade_forward.1} parent=1 // pred_check_branch
      %148 = sbr.rel (0) target = $region65
    $region64: #{vade_forward.1} parent=1 // pred_region
      %149 = dma.done [#allocation6], 8192
    $region65: #{vade_forward.1} parent=1 // pred_fallthru
      _
    // Predicated region
    $region66: #{vade_forward.1} parent=1 // pred_check
      _
    $region67: #{vade_forward.1} parent=1 // pred_check_branch
      %151 = sbr.rel (0) target = $region69
    $region68: #{vade_forward.1} parent=1 // pred_region
      %152 = dma.done [#allocation6], 32
    $region69: #{vade_forward.1} parent=1 // pred_fallthru
      _
    // Predicated region
    $region70: #{vade_forward.1} parent=1 // pred_check
      _
    $region71: #{vade_forward.1} parent=1 // pred_check_branch
      %154 = sbr.rel (0) target = $region73
    $region72: #{vade_forward.1} parent=1 // pred_region
      %155 = dma.done [#allocation9], 2048
    $region73: #{vade_forward.1} parent=1 // pred_fallthru
      _
    // Predicated region
    $region74: #{vade_forward.1} parent=1 // pred_check
      _
    $region75: #{vade_forward.1} parent=1 // pred_check_branch
      %157 = sbr.rel (0) target = $region77
    $region76: #{vade_forward.1} parent=1 // pred_region
      %158 = dma.done [#allocation9], 16
    $region77: #{vade_forward.1} parent=1 // pred_fallthru
      _
    // Predicated region
    $region78: #{vade_forward.1} parent=1 // pred_check
      _
    $region79: #{vade_forward.1} parent=1 // pred_check_branch
      %160 = sbr.rel (0) target = $region81
    $region80: #{vade_forward.1} parent=1 // pred_region
      %161 = dma.done [#allocation12], 32
    $region81: #{vade_forward.1} parent=1 // pred_fallthru
      _
    // Predicated region
    $region82: #{vade_forward.1} parent=1 // pred_check
      _
    $region83: #{vade_forward.1} parent=1 // pred_check_branch
      %163 = sbr.rel (0) target = $region85
    $region84: #{vade_forward.1} parent=1 // pred_region
      %164 = dma.done [#allocation12], 8192
    $region85: #{vade_forward.1} parent=1 // pred_fallthru
      _
    // Predicated region
    $region86: #{vade_forward.1} parent=1 // pred_check
      _
    $region87: #{vade_forward.1} parent=1 // pred_check_branch
      %166 = sbr.rel (0) target = $region89
    $region88: #{vade_forward.1} parent=1 // pred_region
      %167 = dma.done [#allocation15], 64
    $region89: #{vade_forward.1} parent=1 // pred_fallthru
      _
    // Predicated region
    $region90: #{vade_forward.1} parent=1 // pred_check
      _
    $region91: #{vade_forward.1} parent=1 // pred_check_branch
      %169 = sbr.rel (0) target = $region93
    $region92: #{vade_forward.1} parent=1 // pred_region
      %170 = dma.done [#allocation15], 28672
    $region93: #{vade_forward.1} parent=1 // pred_fallthru
      _
    // Predicated region
    $region94: #{vade_forward.1} parent=1 // pred_check
      _
    $region95: #{vade_forward.1} parent=1 // pred_check_branch
      %172 = sbr.rel (0) target = $region97
    $region96: #{vade_forward.1} parent=1 // pred_region
      %173 = dma.done [#allocation18], 112
    $region97: #{vade_forward.1} parent=1 // pred_fallthru
      _
    %v175 = vld [vmem:[%s0] sm:$0xff]
    %v176 = vld [vmem:[%s0 + $0x8] sm:$0xff]
    %v177 = vld [vmem:[%s0 + $0x10] sm:$0xff]
    %v178 = vld [vmem:[%s0 + $0x18] sm:$0xff]
    %v179 = vld [vmem:[%s0 + $0x20] sm:$0xff]
    %v180 = vld [vmem:[%s0 + $0x28] sm:$0xff]
    %v181 = vld [vmem:[%s0 + $0x30] sm:$0xff]
    %v182 = vld [vmem:[%s0 + $0x38] sm:$0xff]
    %v183 = vld [vmem:[%s0 + $0x40] sm:$0xff]
    %v184 = vld [vmem:[%s0 + $0x48] sm:$0xff]
    %v185 = vld [vmem:[%s0 + $0x50] sm:$0xff]
    %v186 = vld [vmem:[%s0 + $0x58] sm:$0xff]
    %v187 = vld [vmem:[%s0 + $0x60] sm:$0xff]
    %v188 = vld [vmem:[%s0 + $0x68] sm:$0xff]
    %v189 = vpack.c.bf16 %v182, %v175
    %v190 = vpack.c.bf16 %v183, %v176
    %v191 = vpack.c.bf16 %v184, %v177
    %v192 = vpack.c.bf16 %v185, %v178
    %v193 = vpack.c.bf16 %v186, %v179
    %v194 = vpack.c.bf16 %v187, %v180
    %v195 = vpack.c.bf16 %v188, %v181
    %v196 = vld [vmem:[%s2] sm:$0xff]
    %v197 = vld [vmem:[%s2 + $0x8] sm:$0xff]
    %v198 = vld [vmem:[%s2 + $0x10] sm:$0xff]
    %v199 = vld [vmem:[%s2 + $0x18] sm:$0xff]
    %v200 = vld [vmem:[%s2 + $0x20] sm:$0xff]
    %v201 = vld [vmem:[%s2 + $0x28] sm:$0xff]
    %v202 = vld [vmem:[%s2 + $0x30] sm:$0xff]
    %v203 = vld [vmem:[%s2 + $0x38] sm:$0xff]
    %v204 = vld [vmem:[%s2 + $0x40] sm:$0xff]
    %v205 = vld [vmem:[%s2 + $0x48] sm:$0xff]
    %v206 = vld [vmem:[%s2 + $0x50] sm:$0xff]
    %v207 = vld [vmem:[%s2 + $0x58] sm:$0xff]
    %v208 = vld [vmem:[%s2 + $0x60] sm:$0xff]
    %v209 = vld [vmem:[%s2 + $0x68] sm:$0xff]
    %v210 = vld [vmem:[%s2 + $0x70] sm:$0xff]
    %v211 = vld [vmem:[%s2 + $0x78] sm:$0xff]
    %v212 = vld [vmem:[%s2 + $0x80] sm:$0xff]
    %v213 = vld [vmem:[%s2 + $0x88] sm:$0xff]
    %v214 = vld [vmem:[%s2 + $0x90] sm:$0xff]
    %v215 = vld [vmem:[%s2 + $0x98] sm:$0xff]
    %v216 = vld [vmem:[%s2 + $0xa0] sm:$0xff]
    %v217 = vld [vmem:[%s2 + $0xa8] sm:$0xff]
    %v218 = vld [vmem:[%s2 + $0xb0] sm:$0xff]
    %v219 = vld [vmem:[%s2 + $0xb8] sm:$0xff]
    %v220 = vld [vmem:[%s2 + $0xc0] sm:$0xff]
    %v221 = vld [vmem:[%s2 + $0xc8] sm:$0xff]
    %v222 = vld [vmem:[%s2 + $0xd0] sm:$0xff]
    %v223 = vld [vmem:[%s2 + $0xd8] sm:$0xff]
    %v224 = vld [vmem:[%s2 + $0xe0] sm:$0xff]
    %v225 = vld [vmem:[%s2 + $0xe8] sm:$0xff]
    %v226 = vld [vmem:[%s2 + $0xf0] sm:$0xff]
    %v227 = vld [vmem:[%s2 + $0xf8] sm:$0xff]
    %v228 = vld [vmem:[%s2 + $0x100] sm:$0xff]
    %v229 = vld [vmem:[%s2 + $0x108] sm:$0xff]
    %v230 = vld [vmem:[%s2 + $0x110] sm:$0xff]
    %v231 = vld [vmem:[%s2 + $0x118] sm:$0xff]
    %v232 = vld [vmem:[%s2 + $0x120] sm:$0xff]
    %v233 = vld [vmem:[%s2 + $0x128] sm:$0xff]
    %v234 = vld [vmem:[%s2 + $0x130] sm:$0xff]
    %v235 = vld [vmem:[%s2 + $0x138] sm:$0xff]
    %v236 = vld [vmem:[%s2 + $0x140] sm:$0xff]
    %v237 = vld [vmem:[%s2 + $0x148] sm:$0xff]
    %v238 = vld [vmem:[%s2 + $0x150] sm:$0xff]
    %v239 = vld [vmem:[%s2 + $0x158] sm:$0xff]
    %v240 = vld [vmem:[%s2 + $0x160] sm:$0xff]
    %v241 = vld [vmem:[%s2 + $0x168] sm:$0xff]
    %v242 = vld [vmem:[%s2 + $0x170] sm:$0xff]
    %v243 = vld [vmem:[%s2 + $0x178] sm:$0xff]
    %v244 = vld [vmem:[%s2 + $0x180] sm:$0xff]
    %v245 = vld [vmem:[%s2 + $0x188] sm:$0xff]
    %v246 = vld [vmem:[%s2 + $0x190] sm:$0xff]
    %v247 = vld [vmem:[%s2 + $0x198] sm:$0xff]
    %v248 = vld [vmem:[%s2 + $0x1a0] sm:$0xff]
    %v249 = vld [vmem:[%s2 + $0x1a8] sm:$0xff]
    %v250 = vld [vmem:[%s2 + $0x1b0] sm:$0xff]
    %v251 = vld [vmem:[%s2 + $0x1b8] sm:$0xff]
    %v252 = vld [vmem:[%s2 + $0x1c0] sm:$0xff]
    %v253 = vld [vmem:[%s2 + $0x1c8] sm:$0xff]
    %v254 = vld [vmem:[%s2 + $0x1d0] sm:$0xff]
    %v255 = vld [vmem:[%s2 + $0x1d8] sm:$0xff]
    %v256 = vld [vmem:[%s2 + $0x1e0] sm:$0xff]
    %v257 = vld [vmem:[%s2 + $0x1e8] sm:$0xff]
    %v258 = vld [vmem:[%s2 + $0x1f0] sm:$0xff]
    %v259 = vld [vmem:[%s2 + $0x1f8] sm:$0xff]
    %v260 = vld [vmem:[%s2 + $0x200] sm:$0xff]
    %v261 = vld [vmem:[%s2 + $0x208] sm:$0xff]
    %v262 = vld [vmem:[%s2 + $0x210] sm:$0xff]
    %v263 = vld [vmem:[%s2 + $0x218] sm:$0xff]
    %v264 = vld [vmem:[%s2 + $0x220] sm:$0xff]
    %v265 = vld [vmem:[%s2 + $0x228] sm:$0xff]
    %v266 = vld [vmem:[%s2 + $0x230] sm:$0xff]
    %v267 = vld [vmem:[%s2 + $0x238] sm:$0xff]
    %v268 = vld [vmem:[%s2 + $0x240] sm:$0xff]
    %v269 = vld [vmem:[%s2 + $0x248] sm:$0xff]
    %v270 = vld [vmem:[%s2 + $0x250] sm:$0xff]
    %v271 = vld [vmem:[%s2 + $0x258] sm:$0xff]
    %v272 = vld [vmem:[%s2 + $0x260] sm:$0xff]
    %v273 = vld [vmem:[%s2 + $0x268] sm:$0xff]
    %v274 = vld [vmem:[%s2 + $0x270] sm:$0xff]
    %v275 = vld [vmem:[%s2 + $0x278] sm:$0xff]
    %v276 = vld [vmem:[%s2 + $0x280] sm:$0xff]
    %v277 = vld [vmem:[%s2 + $0x288] sm:$0xff]
    %v278 = vld [vmem:[%s2 + $0x290] sm:$0xff]
    %v279 = vld [vmem:[%s2 + $0x298] sm:$0xff]
    %v280 = vld [vmem:[%s2 + $0x2a0] sm:$0xff]
    %v281 = vld [vmem:[%s2 + $0x2a8] sm:$0xff]
    %v282 = vld [vmem:[%s2 + $0x2b0] sm:$0xff]
    %v283 = vld [vmem:[%s2 + $0x2b8] sm:$0xff]
    %v284 = vld [vmem:[%s2 + $0x2c0] sm:$0xff]
    %v285 = vld [vmem:[%s2 + $0x2c8] sm:$0xff]
    %v286 = vld [vmem:[%s2 + $0x2d0] sm:$0xff]
    %v287 = vld [vmem:[%s2 + $0x2d8] sm:$0xff]
    %v288 = vld [vmem:[%s2 + $0x2e0] sm:$0xff]
    %v289 = vld [vmem:[%s2 + $0x2e8] sm:$0xff]
    %v290 = vld [vmem:[%s2 + $0x2f0] sm:$0xff]
    %v291 = vld [vmem:[%s2 + $0x2f8] sm:$0xff]
    %v292 = vld [vmem:[%s2 + $0x300] sm:$0xff]
    %v293 = vld [vmem:[%s2 + $0x308] sm:$0xff]
    %v294 = vld [vmem:[%s2 + $0x310] sm:$0xff]
    %v295 = vld [vmem:[%s2 + $0x318] sm:$0xff]
    %v296 = vld [vmem:[%s2 + $0x320] sm:$0xff]
    %v297 = vld [vmem:[%s2 + $0x328] sm:$0xff]
    %v298 = vld [vmem:[%s2 + $0x330] sm:$0xff]
    %v299 = vld [vmem:[%s2 + $0x338] sm:$0xff]
    %v300 = vld [vmem:[%s2 + $0x340] sm:$0xff]
    %v301 = vld [vmem:[%s2 + $0x348] sm:$0xff]
    %v302 = vld [vmem:[%s2 + $0x350] sm:$0xff]
    %v303 = vld [vmem:[%s2 + $0x358] sm:$0xff]
    %v304 = vld [vmem:[%s2 + $0x360] sm:$0xff]
    %v305 = vld [vmem:[%s2 + $0x368] sm:$0xff]
    %v306 = vld [vmem:[%s2 + $0x370] sm:$0xff]
    %v307 = vld [vmem:[%s2 + $0x378] sm:$0xff]
    %v308 = vld [vmem:[%s2 + $0x380] sm:$0xff]
    %v309 = vld [vmem:[%s2 + $0x388] sm:$0xff]
    %v310 = vld [vmem:[%s2 + $0x390] sm:$0xff]
    %v311 = vld [vmem:[%s2 + $0x398] sm:$0xff]
    %v312 = vld [vmem:[%s2 + $0x3a0] sm:$0xff]
    %v313 = vld [vmem:[%s2 + $0x3a8] sm:$0xff]
    %v314 = vld [vmem:[%s2 + $0x3b0] sm:$0xff]
    %v315 = vld [vmem:[%s2 + $0x3b8] sm:$0xff]
    %v316 = vld [vmem:[%s2 + $0x3c0] sm:$0xff]
    %v317 = vld [vmem:[%s2 + $0x3c8] sm:$0xff]
    %v318 = vld [vmem:[%s2 + $0x3d0] sm:$0xff]
    %v319 = vld [vmem:[%s2 + $0x3d8] sm:$0xff]
    %v320 = vld [vmem:[%s2 + $0x3e0] sm:$0xff]
    %v321 = vld [vmem:[%s2 + $0x3e8] sm:$0xff]
    %v322 = vld [vmem:[%s2 + $0x3f0] sm:$0xff]
    %v323 = vld [vmem:[%s2 + $0x3f8] sm:$0xff]
    %v324 = vld [vmem:[%s2 + $0x400] sm:$0xff]
    %v325 = vld [vmem:[%s2 + $0x408] sm:$0xff]
    %v326 = vld [vmem:[%s2 + $0x410] sm:$0xff]
    %v327 = vld [vmem:[%s2 + $0x418] sm:$0xff]
    %v328 = vld [vmem:[%s2 + $0x420] sm:$0xff]
    %v329 = vld [vmem:[%s2 + $0x428] sm:$0xff]
    %v330 = vld [vmem:[%s2 + $0x430] sm:$0xff]
    %v331 = vld [vmem:[%s2 + $0x438] sm:$0xff]
    %v332 = vld [vmem:[%s2 + $0x440] sm:$0xff]
    %v333 = vld [vmem:[%s2 + $0x448] sm:$0xff]
    %v334 = vld [vmem:[%s2 + $0x450] sm:$0xff]
    %v335 = vld [vmem:[%s2 + $0x458] sm:$0xff]
    %v336 = vld [vmem:[%s2 + $0x460] sm:$0xff]
    %v337 = vld [vmem:[%s2 + $0x468] sm:$0xff]
    %v338 = vld [vmem:[%s2 + $0x470] sm:$0xff]
    %v339 = vld [vmem:[%s2 + $0x478] sm:$0xff]
    %v340 = vld [vmem:[%s2 + $0x480] sm:$0xff]
    %v341 = vld [vmem:[%s2 + $0x488] sm:$0xff]
    %v342 = vld [vmem:[%s2 + $0x490] sm:$0xff]
    %v343 = vld [vmem:[%s2 + $0x498] sm:$0xff]
    %v344 = vld [vmem:[%s2 + $0x4a0] sm:$0xff]
    %v345 = vld [vmem:[%s2 + $0x4a8] sm:$0xff]
    %v346 = vld [vmem:[%s2 + $0x4b0] sm:$0xff]
    %v347 = vld [vmem:[%s2 + $0x4b8] sm:$0xff]
    %v348 = vld [vmem:[%s2 + $0x4c0] sm:$0xff]
    %v349 = vld [vmem:[%s2 + $0x4c8] sm:$0xff]
    %v350 = vld [vmem:[%s2 + $0x4d0] sm:$0xff]
    %v351 = vld [vmem:[%s2 + $0x4d8] sm:$0xff]
    %v352 = vld [vmem:[%s2 + $0x4e0] sm:$0xff]
    %v353 = vld [vmem:[%s2 + $0x4e8] sm:$0xff]
    %v354 = vld [vmem:[%s2 + $0x4f0] sm:$0xff]
    %v355 = vld [vmem:[%s2 + $0x4f8] sm:$0xff]
    %v356 = vld [vmem:[%s2 + $0x500] sm:$0xff]
    %v357 = vld [vmem:[%s2 + $0x508] sm:$0xff]
    %v358 = vld [vmem:[%s2 + $0x510] sm:$0xff]
    %v359 = vld [vmem:[%s2 + $0x518] sm:$0xff]
    %v360 = vld [vmem:[%s2 + $0x520] sm:$0xff]
    %v361 = vld [vmem:[%s2 + $0x528] sm:$0xff]
    %v362 = vld [vmem:[%s2 + $0x530] sm:$0xff]
    %v363 = vld [vmem:[%s2 + $0x538] sm:$0xff]
    %v364 = vld [vmem:[%s2 + $0x540] sm:$0xff]
    %v365 = vld [vmem:[%s2 + $0x548] sm:$0xff]
    %v366 = vld [vmem:[%s2 + $0x550] sm:$0xff]
    %v367 = vld [vmem:[%s2 + $0x558] sm:$0xff]
    %v368 = vld [vmem:[%s2 + $0x560] sm:$0xff]
    %v369 = vld [vmem:[%s2 + $0x568] sm:$0xff]
    %v370 = vld [vmem:[%s2 + $0x570] sm:$0xff]
    %v371 = vld [vmem:[%s2 + $0x578] sm:$0xff]
    %v372 = vld [vmem:[%s2 + $0x580] sm:$0xff]
    %v373 = vld [vmem:[%s2 + $0x588] sm:$0xff]
    %v374 = vld [vmem:[%s2 + $0x590] sm:$0xff]
    %v375 = vld [vmem:[%s2 + $0x598] sm:$0xff]
    %v376 = vld [vmem:[%s2 + $0x5a0] sm:$0xff]
    %v377 = vld [vmem:[%s2 + $0x5a8] sm:$0xff]
    %v378 = vld [vmem:[%s2 + $0x5b0] sm:$0xff]
    %v379 = vld [vmem:[%s2 + $0x5b8] sm:$0xff]
    %v380 = vld [vmem:[%s2 + $0x5c0] sm:$0xff]
    %v381 = vld [vmem:[%s2 + $0x5c8] sm:$0xff]
    %v382 = vld [vmem:[%s2 + $0x5d0] sm:$0xff]
    %v383 = vld [vmem:[%s2 + $0x5d8] sm:$0xff]
    %v384 = vld [vmem:[%s2 + $0x5e0] sm:$0xff]
    %v385 = vld [vmem:[%s2 + $0x5e8] sm:$0xff]
    %v386 = vld [vmem:[%s2 + $0x5f0] sm:$0xff]
    %v387 = vld [vmem:[%s2 + $0x5f8] sm:$0xff]
    %v388 = vld [vmem:[%s2 + $0x600] sm:$0xff]
    %v389 = vld [vmem:[%s2 + $0x608] sm:$0xff]
    %v390 = vld [vmem:[%s2 + $0x610] sm:$0xff]
    %v391 = vld [vmem:[%s2 + $0x618] sm:$0xff]
    %v392 = vld [vmem:[%s2 + $0x620] sm:$0xff]
    %v393 = vld [vmem:[%s2 + $0x628] sm:$0xff]
    %v394 = vld [vmem:[%s2 + $0x630] sm:$0xff]
    %v395 = vld [vmem:[%s2 + $0x638] sm:$0xff]
    %v396 = vld [vmem:[%s2 + $0x640] sm:$0xff]
    %v397 = vld [vmem:[%s2 + $0x648] sm:$0xff]
    %v398 = vld [vmem:[%s2 + $0x650] sm:$0xff]
    %v399 = vld [vmem:[%s2 + $0x658] sm:$0xff]
    %v400 = vld [vmem:[%s2 + $0x660] sm:$0xff]
    %v401 = vld [vmem:[%s2 + $0x668] sm:$0xff]
    %v402 = vld [vmem:[%s2 + $0x670] sm:$0xff]
    %v403 = vld [vmem:[%s2 + $0x678] sm:$0xff]
    %v404 = vld [vmem:[%s2 + $0x680] sm:$0xff]
    %v405 = vld [vmem:[%s2 + $0x688] sm:$0xff]
    %v406 = vld [vmem:[%s2 + $0x690] sm:$0xff]
    %v407 = vld [vmem:[%s2 + $0x698] sm:$0xff]
    %v408 = vld [vmem:[%s2 + $0x6a0] sm:$0xff]
    %v409 = vld [vmem:[%s2 + $0x6a8] sm:$0xff]
    %v410 = vld [vmem:[%s2 + $0x6b0] sm:$0xff]
    %v411 = vld [vmem:[%s2 + $0x6b8] sm:$0xff]
    %v412 = vld [vmem:[%s2 + $0x6c0] sm:$0xff]
    %v413 = vld [vmem:[%s2 + $0x6c8] sm:$0xff]
    %v414 = vld [vmem:[%s2 + $0x6d0] sm:$0xff]
    %v415 = vld [vmem:[%s2 + $0x6d8] sm:$0xff]
    %v416 = vld [vmem:[%s2 + $0x6e0] sm:$0xff]
    %v417 = vld [vmem:[%s2 + $0x6e8] sm:$0xff]
    %v418 = vld [vmem:[%s2 + $0x6f0] sm:$0xff]
    %v419 = vld [vmem:[%s2 + $0x6f8] sm:$0xff]
    %v420 = vld [vmem:[#allocation2] sm:$0xf]
    %v422 = vlaneseq
    %v423 = vshrl.u32 %v422, 7
    %v424 = vsub.s32 0, %v423
    %v425 = vrot.slane %v420, %v424
    %v426 = vlaneseq
    %v427 = vshrl.u32 %v426, 7
    %v428 = vsub.s32 1, %v427
    %v429 = vrot.slane %v420, %v428
    %v430 = vlaneseq
    %v431 = vshrl.u32 %v430, 7
    %v432 = vsub.s32 2, %v431
    %v433 = vrot.slane %v420, %v432
    %v434 = vlaneseq
    %v435 = vshrl.u32 %v434, 7
    %v436 = vsub.s32 3, %v435
    %v437 = vrot.slane %v420, %v436
    %v666 = vunpack.c.l.b16 %v196
    %v667 = vunpack.c.h.b16 %v196
    %v668 = vunpack.c.l.b16 %v197
    %v669 = vunpack.c.h.b16 %v197
    %v670 = vunpack.c.l.b16 %v198
    %v671 = vunpack.c.h.b16 %v198
    %v672 = vunpack.c.l.b16 %v199
    %v673 = vunpack.c.h.b16 %v199
    %v674 = vunpack.c.l.b16 %v200
    %v675 = vunpack.c.h.b16 %v200
    %v676 = vunpack.c.l.b16 %v201
    %v677 = vunpack.c.h.b16 %v201
    %v678 = vunpack.c.l.b16 %v202
    %v679 = vunpack.c.h.b16 %v202
    %v680 = vunpack.c.l.b16 %v203
    %v681 = vunpack.c.h.b16 %v203
    %v682 = vunpack.c.l.b16 %v204
    %v683 = vunpack.c.h.b16 %v204
    %v684 = vunpack.c.l.b16 %v205
    %v685 = vunpack.c.h.b16 %v205
    %v686 = vunpack.c.l.b16 %v206
    %v687 = vunpack.c.h.b16 %v206
    %v688 = vunpack.c.l.b16 %v207
    %v689 = vunpack.c.h.b16 %v207
    %v690 = vunpack.c.l.b16 %v208
    %v691 = vunpack.c.h.b16 %v208
    %v692 = vunpack.c.l.b16 %v209
    %v693 = vunpack.c.h.b16 %v209
    %v694 = vunpack.c.l.b16 %v210
    %v695 = vunpack.c.h.b16 %v210
    %v696 = vunpack.c.l.b16 %v211
    %v697 = vunpack.c.h.b16 %v211
    %v698 = vunpack.c.l.b16 %v212
    %v699 = vunpack.c.h.b16 %v212
    %v700 = vunpack.c.l.b16 %v213
    %v701 = vunpack.c.h.b16 %v213
    %v702 = vunpack.c.l.b16 %v214
    %v703 = vunpack.c.h.b16 %v214
    %v704 = vunpack.c.l.b16 %v215
    %v705 = vunpack.c.h.b16 %v215
    %v706 = vunpack.c.l.b16 %v216
    %v707 = vunpack.c.h.b16 %v216
    %v708 = vunpack.c.l.b16 %v217
    %v709 = vunpack.c.h.b16 %v217
    %v710 = vunpack.c.l.b16 %v218
    %v711 = vunpack.c.h.b16 %v218
    %v712 = vunpack.c.l.b16 %v219
    %v713 = vunpack.c.h.b16 %v219
    %v714 = vunpack.c.l.b16 %v220
    %v715 = vunpack.c.h.b16 %v220
    %v716 = vunpack.c.l.b16 %v221
    %v717 = vunpack.c.h.b16 %v221
    %v718 = vunpack.c.l.b16 %v222
    %v719 = vunpack.c.h.b16 %v222
    %v720 = vunpack.c.l.b16 %v223
    %v721 = vunpack.c.h.b16 %v223
    %v722 = vunpack.c.l.b16 %v224
    %v723 = vunpack.c.h.b16 %v224
    %v724 = vunpack.c.l.b16 %v225
    %v725 = vunpack.c.h.b16 %v225
    %v726 = vunpack.c.l.b16 %v226
    %v727 = vunpack.c.h.b16 %v226
    %v728 = vunpack.c.l.b16 %v227
    %v729 = vunpack.c.h.b16 %v227
    %v730 = vunpack.c.l.b16 %v228
    %v731 = vunpack.c.h.b16 %v228
    %v732 = vunpack.c.l.b16 %v229
    %v733 = vunpack.c.h.b16 %v229
    %v734 = vunpack.c.l.b16 %v230
    %v735 = vunpack.c.h.b16 %v230
    %v736 = vunpack.c.l.b16 %v231
    %v737 = vunpack.c.h.b16 %v231
    %v738 = vunpack.c.l.b16 %v232
    %v739 = vunpack.c.h.b16 %v232
    %v740 = vunpack.c.l.b16 %v233
    %v741 = vunpack.c.h.b16 %v233
    %v742 = vunpack.c.l.b16 %v234
    %v743 = vunpack.c.h.b16 %v234
    %v744 = vunpack.c.l.b16 %v235
    %v745 = vunpack.c.h.b16 %v235
    %v746 = vunpack.c.l.b16 %v236
    %v747 = vunpack.c.h.b16 %v236
    %v748 = vunpack.c.l.b16 %v237
    %v749 = vunpack.c.h.b16 %v237
    %v750 = vunpack.c.l.b16 %v238
    %v751 = vunpack.c.h.b16 %v238
    %v752 = vunpack.c.l.b16 %v239
    %v753 = vunpack.c.h.b16 %v239
    %v754 = vunpack.c.l.b16 %v240
    %v755 = vunpack.c.h.b16 %v240
    %v756 = vunpack.c.l.b16 %v241
    %v757 = vunpack.c.h.b16 %v241
    %v758 = vunpack.c.l.b16 %v242
    %v759 = vunpack.c.h.b16 %v242
    %v760 = vunpack.c.l.b16 %v243
    %v761 = vunpack.c.h.b16 %v243
    %v762 = vunpack.c.l.b16 %v244
    %v763 = vunpack.c.h.b16 %v244
    %v764 = vunpack.c.l.b16 %v245
    %v765 = vunpack.c.h.b16 %v245
    %v766 = vunpack.c.l.b16 %v246
    %v767 = vunpack.c.h.b16 %v246
    %v768 = vunpack.c.l.b16 %v247
    %v769 = vunpack.c.h.b16 %v247
    %v770 = vunpack.c.l.b16 %v248
    %v771 = vunpack.c.h.b16 %v248
    %v772 = vunpack.c.l.b16 %v249
    %v773 = vunpack.c.h.b16 %v249
    %v774 = vunpack.c.l.b16 %v250
    %v775 = vunpack.c.h.b16 %v250
    %v776 = vunpack.c.l.b16 %v251
    %v777 = vunpack.c.h.b16 %v251
    %v778 = vunpack.c.l.b16 %v252
    %v779 = vunpack.c.h.b16 %v252
    %v780 = vunpack.c.l.b16 %v253
    %v781 = vunpack.c.h.b16 %v253
    %v782 = vunpack.c.l.b16 %v254
    %v783 = vunpack.c.h.b16 %v254
    %v784 = vunpack.c.l.b16 %v255
    %v785 = vunpack.c.h.b16 %v255
    %v786 = vunpack.c.l.b16 %v256
    %v787 = vunpack.c.h.b16 %v256
    %v788 = vunpack.c.l.b16 %v257
    %v789 = vunpack.c.h.b16 %v257
    %v790 = vunpack.c.l.b16 %v258
    %v791 = vunpack.c.h.b16 %v258
    %v792 = vunpack.c.l.b16 %v259
    %v793 = vunpack.c.h.b16 %v259
    %v794 = vunpack.c.l.b16 %v260
    %v795 = vunpack.c.h.b16 %v260
    %v796 = vunpack.c.l.b16 %v261
    %v797 = vunpack.c.h.b16 %v261
    %v798 = vunpack.c.l.b16 %v262
    %v799 = vunpack.c.h.b16 %v262
    %v800 = vunpack.c.l.b16 %v263
    %v801 = vunpack.c.h.b16 %v263
    %v802 = vunpack.c.l.b16 %v264
    %v803 = vunpack.c.h.b16 %v264
    %v804 = vunpack.c.l.b16 %v265
    %v805 = vunpack.c.h.b16 %v265
    %v806 = vunpack.c.l.b16 %v266
    %v807 = vunpack.c.h.b16 %v266
    %v808 = vunpack.c.l.b16 %v267
    %v809 = vunpack.c.h.b16 %v267
    %v810 = vunpack.c.l.b16 %v268
    %v811 = vunpack.c.h.b16 %v268
    %v812 = vunpack.c.l.b16 %v269
    %v813 = vunpack.c.h.b16 %v269
    %v814 = vunpack.c.l.b16 %v270
    %v815 = vunpack.c.h.b16 %v270
    %v816 = vunpack.c.l.b16 %v271
    %v817 = vunpack.c.h.b16 %v271
    %v818 = vunpack.c.l.b16 %v272
    %v819 = vunpack.c.h.b16 %v272
    %v820 = vunpack.c.l.b16 %v273
    %v821 = vunpack.c.h.b16 %v273
    %v822 = vunpack.c.l.b16 %v274
    %v823 = vunpack.c.h.b16 %v274
    %v824 = vunpack.c.l.b16 %v275
    %v825 = vunpack.c.h.b16 %v275
    %v826 = vunpack.c.l.b16 %v276
    %v827 = vunpack.c.h.b16 %v276
    %v828 = vunpack.c.l.b16 %v277
    %v829 = vunpack.c.h.b16 %v277
    %v830 = vunpack.c.l.b16 %v278
    %v831 = vunpack.c.h.b16 %v278
    %v832 = vunpack.c.l.b16 %v279
    %v833 = vunpack.c.h.b16 %v279
    %v834 = vunpack.c.l.b16 %v280
    %v835 = vunpack.c.h.b16 %v280
    %v836 = vunpack.c.l.b16 %v281
    %v837 = vunpack.c.h.b16 %v281
    %v838 = vunpack.c.l.b16 %v282
    %v839 = vunpack.c.h.b16 %v282
    %v840 = vunpack.c.l.b16 %v283
    %v841 = vunpack.c.h.b16 %v283
    %v842 = vunpack.c.l.b16 %v284
    %v843 = vunpack.c.h.b16 %v284
    %v844 = vunpack.c.l.b16 %v285
    %v845 = vunpack.c.h.b16 %v285
    %v846 = vunpack.c.l.b16 %v286
    %v847 = vunpack.c.h.b16 %v286
    %v848 = vunpack.c.l.b16 %v287
    %v849 = vunpack.c.h.b16 %v287
    %v850 = vunpack.c.l.b16 %v288
    %v851 = vunpack.c.h.b16 %v288
    %v852 = vunpack.c.l.b16 %v289
    %v853 = vunpack.c.h.b16 %v289
    %v854 = vunpack.c.l.b16 %v290
    %v855 = vunpack.c.h.b16 %v290
    %v856 = vunpack.c.l.b16 %v291
    %v857 = vunpack.c.h.b16 %v291
    %v858 = vunpack.c.l.b16 %v292
    %v859 = vunpack.c.h.b16 %v292
    %v860 = vunpack.c.l.b16 %v293
    %v861 = vunpack.c.h.b16 %v293
    %v862 = vunpack.c.l.b16 %v294
    %v863 = vunpack.c.h.b16 %v294
    %v864 = vunpack.c.l.b16 %v295
    %v865 = vunpack.c.h.b16 %v295
    %v866 = vunpack.c.l.b16 %v296
    %v867 = vunpack.c.h.b16 %v296
    %v868 = vunpack.c.l.b16 %v297
    %v869 = vunpack.c.h.b16 %v297
    %v870 = vunpack.c.l.b16 %v298
    %v871 = vunpack.c.h.b16 %v298
    %v872 = vunpack.c.l.b16 %v299
    %v873 = vunpack.c.h.b16 %v299
    %v874 = vunpack.c.l.b16 %v300
    %v875 = vunpack.c.h.b16 %v300
    %v876 = vunpack.c.l.b16 %v301
    %v877 = vunpack.c.h.b16 %v301
    %v878 = vunpack.c.l.b16 %v302
    %v879 = vunpack.c.h.b16 %v302
    %v880 = vunpack.c.l.b16 %v303
    %v881 = vunpack.c.h.b16 %v303
    %v882 = vunpack.c.l.b16 %v304
    %v883 = vunpack.c.h.b16 %v304
    %v884 = vunpack.c.l.b16 %v305
    %v885 = vunpack.c.h.b16 %v305
    %v886 = vunpack.c.l.b16 %v306
    %v887 = vunpack.c.h.b16 %v306
    %v888 = vunpack.c.l.b16 %v307
    %v889 = vunpack.c.h.b16 %v307
    %v890 = vunpack.c.l.b16 %v308
    %v891 = vunpack.c.h.b16 %v308
    %v892 = vunpack.c.l.b16 %v309
    %v893 = vunpack.c.h.b16 %v309
    %v894 = vunpack.c.l.b16 %v310
    %v895 = vunpack.c.h.b16 %v310
    %v896 = vunpack.c.l.b16 %v311
    %v897 = vunpack.c.h.b16 %v311
    %v898 = vunpack.c.l.b16 %v312
    %v899 = vunpack.c.h.b16 %v312
    %v900 = vunpack.c.l.b16 %v313
    %v901 = vunpack.c.h.b16 %v313
    %v902 = vunpack.c.l.b16 %v314
    %v903 = vunpack.c.h.b16 %v314
    %v904 = vunpack.c.l.b16 %v315
    %v905 = vunpack.c.h.b16 %v315
    %v906 = vunpack.c.l.b16 %v316
    %v907 = vunpack.c.h.b16 %v316
    %v908 = vunpack.c.l.b16 %v317
    %v909 = vunpack.c.h.b16 %v317
    %v910 = vunpack.c.l.b16 %v318
    %v911 = vunpack.c.h.b16 %v318
    %v912 = vunpack.c.l.b16 %v319
    %v913 = vunpack.c.h.b16 %v319
    %v914 = vunpack.c.l.b16 %v320
    %v915 = vunpack.c.h.b16 %v320
    %v916 = vunpack.c.l.b16 %v321
    %v917 = vunpack.c.h.b16 %v321
    %v918 = vunpack.c.l.b16 %v322
    %v919 = vunpack.c.h.b16 %v322
    %v920 = vunpack.c.l.b16 %v323
    %v921 = vunpack.c.h.b16 %v323
    %v922 = vunpack.c.l.b16 %v324
    %v923 = vunpack.c.h.b16 %v324
    %v924 = vunpack.c.l.b16 %v325
    %v925 = vunpack.c.h.b16 %v325
    %v926 = vunpack.c.l.b16 %v326
    %v927 = vunpack.c.h.b16 %v326
    %v928 = vunpack.c.l.b16 %v327
    %v929 = vunpack.c.h.b16 %v327
    %v930 = vunpack.c.l.b16 %v328
    %v931 = vunpack.c.h.b16 %v328
    %v932 = vunpack.c.l.b16 %v329
    %v933 = vunpack.c.h.b16 %v329
    %v934 = vunpack.c.l.b16 %v330
    %v935 = vunpack.c.h.b16 %v330
    %v936 = vunpack.c.l.b16 %v331
    %v937 = vunpack.c.h.b16 %v331
    %v938 = vunpack.c.l.b16 %v332
    %v939 = vunpack.c.h.b16 %v332
    %v940 = vunpack.c.l.b16 %v333
    %v941 = vunpack.c.h.b16 %v333
    %v942 = vunpack.c.l.b16 %v334
    %v943 = vunpack.c.h.b16 %v334
    %v944 = vunpack.c.l.b16 %v335
    %v945 = vunpack.c.h.b16 %v335
    %v946 = vunpack.c.l.b16 %v336
    %v947 = vunpack.c.h.b16 %v336
    %v948 = vunpack.c.l.b16 %v337
    %v949 = vunpack.c.h.b16 %v337
    %v950 = vunpack.c.l.b16 %v338
    %v951 = vunpack.c.h.b16 %v338
    %v952 = vunpack.c.l.b16 %v339
    %v953 = vunpack.c.h.b16 %v339
    %v954 = vunpack.c.l.b16 %v340
    %v955 = vunpack.c.h.b16 %v340
    %v956 = vunpack.c.l.b16 %v341
    %v957 = vunpack.c.h.b16 %v341
    %v958 = vunpack.c.l.b16 %v342
    %v959 = vunpack.c.h.b16 %v342
    %v960 = vunpack.c.l.b16 %v343
    %v961 = vunpack.c.h.b16 %v343
    %v962 = vunpack.c.l.b16 %v344
    %v963 = vunpack.c.h.b16 %v344
    %v964 = vunpack.c.l.b16 %v345
    %v965 = vunpack.c.h.b16 %v345
    %v966 = vunpack.c.l.b16 %v346
    %v967 = vunpack.c.h.b16 %v346
    %v968 = vunpack.c.l.b16 %v347
    %v969 = vunpack.c.h.b16 %v347
    %v970 = vunpack.c.l.b16 %v348
    %v971 = vunpack.c.h.b16 %v348
    %v972 = vunpack.c.l.b16 %v349
    %v973 = vunpack.c.h.b16 %v349
    %v974 = vunpack.c.l.b16 %v350
    %v975 = vunpack.c.h.b16 %v350
    %v976 = vunpack.c.l.b16 %v351
    %v977 = vunpack.c.h.b16 %v351
    %v978 = vunpack.c.l.b16 %v352
    %v979 = vunpack.c.h.b16 %v352
    %v980 = vunpack.c.l.b16 %v353
    %v981 = vunpack.c.h.b16 %v353
    %v982 = vunpack.c.l.b16 %v354
    %v983 = vunpack.c.h.b16 %v354
    %v984 = vunpack.c.l.b16 %v355
    %v985 = vunpack.c.h.b16 %v355
    %v986 = vunpack.c.l.b16 %v356
    %v987 = vunpack.c.h.b16 %v356
    %v988 = vunpack.c.l.b16 %v357
    %v989 = vunpack.c.h.b16 %v357
    %v990 = vunpack.c.l.b16 %v358
    %v991 = vunpack.c.h.b16 %v358
    %v992 = vunpack.c.l.b16 %v359
    %v993 = vunpack.c.h.b16 %v359
    %v994 = vunpack.c.l.b16 %v360
    %v995 = vunpack.c.h.b16 %v360
    %v996 = vunpack.c.l.b16 %v361
    %v997 = vunpack.c.h.b16 %v361
    %v998 = vunpack.c.l.b16 %v362
    %v999 = vunpack.c.h.b16 %v362
    %v1000 = vunpack.c.l.b16 %v363
    %v1001 = vunpack.c.h.b16 %v363
    %v1002 = vunpack.c.l.b16 %v364
    %v1003 = vunpack.c.h.b16 %v364
    %v1004 = vunpack.c.l.b16 %v365
    %v1005 = vunpack.c.h.b16 %v365
    %v1006 = vunpack.c.l.b16 %v366
    %v1007 = vunpack.c.h.b16 %v366
    %v1008 = vunpack.c.l.b16 %v367
    %v1009 = vunpack.c.h.b16 %v367
    %v1010 = vunpack.c.l.b16 %v368
    %v1011 = vunpack.c.h.b16 %v368
    %v1012 = vunpack.c.l.b16 %v369
    %v1013 = vunpack.c.h.b16 %v369
    %v1014 = vunpack.c.l.b16 %v370
    %v1015 = vunpack.c.h.b16 %v370
    %v1016 = vunpack.c.l.b16 %v371
    %v1017 = vunpack.c.h.b16 %v371
    %v1018 = vunpack.c.l.b16 %v372
    %v1019 = vunpack.c.h.b16 %v372
    %v1020 = vunpack.c.l.b16 %v373
    %v1021 = vunpack.c.h.b16 %v373
    %v1022 = vunpack.c.l.b16 %v374
    %v1023 = vunpack.c.h.b16 %v374
    %v1024 = vunpack.c.l.b16 %v375
    %v1025 = vunpack.c.h.b16 %v375
    %v1026 = vunpack.c.l.b16 %v376
    %v1027 = vunpack.c.h.b16 %v376
    %v1028 = vunpack.c.l.b16 %v377
    %v1029 = vunpack.c.h.b16 %v377
    %v1030 = vunpack.c.l.b16 %v378
    %v1031 = vunpack.c.h.b16 %v378
    %v1032 = vunpack.c.l.b16 %v379
    %v1033 = vunpack.c.h.b16 %v379
    %v1034 = vunpack.c.l.b16 %v380
    %v1035 = vunpack.c.h.b16 %v380
    %v1036 = vunpack.c.l.b16 %v381
    %v1037 = vunpack.c.h.b16 %v381
    %v1038 = vunpack.c.l.b16 %v382
    %v1039 = vunpack.c.h.b16 %v382
    %v1040 = vunpack.c.l.b16 %v383
    %v1041 = vunpack.c.h.b16 %v383
    %v1042 = vunpack.c.l.b16 %v384
    %v1043 = vunpack.c.h.b16 %v384
    %v1044 = vunpack.c.l.b16 %v385
    %v1045 = vunpack.c.h.b16 %v385
    %v1046 = vunpack.c.l.b16 %v386
    %v1047 = vunpack.c.h.b16 %v386
    %v1048 = vunpack.c.l.b16 %v387
    %v1049 = vunpack.c.h.b16 %v387
    %v1050 = vunpack.c.l.b16 %v388
    %v1051 = vunpack.c.h.b16 %v388
    %v1052 = vunpack.c.l.b16 %v389
    %v1053 = vunpack.c.h.b16 %v389
    %v1054 = vunpack.c.l.b16 %v390
    %v1055 = vunpack.c.h.b16 %v390
    %v1056 = vunpack.c.l.b16 %v391
    %v1057 = vunpack.c.h.b16 %v391
    %v1058 = vunpack.c.l.b16 %v392
    %v1059 = vunpack.c.h.b16 %v392
    %v1060 = vunpack.c.l.b16 %v393
    %v1061 = vunpack.c.h.b16 %v393
    %v1062 = vunpack.c.l.b16 %v394
    %v1063 = vunpack.c.h.b16 %v394
    %v1064 = vunpack.c.l.b16 %v395
    %v1065 = vunpack.c.h.b16 %v395
    %v1066 = vunpack.c.l.b16 %v396
    %v1067 = vunpack.c.h.b16 %v396
    %v1068 = vunpack.c.l.b16 %v397
    %v1069 = vunpack.c.h.b16 %v397
    %v1070 = vunpack.c.l.b16 %v398
    %v1071 = vunpack.c.h.b16 %v398
    %v1072 = vunpack.c.l.b16 %v399
    %v1073 = vunpack.c.h.b16 %v399
    %v1074 = vunpack.c.l.b16 %v400
    %v1075 = vunpack.c.h.b16 %v400
    %v1076 = vunpack.c.l.b16 %v401
    %v1077 = vunpack.c.h.b16 %v401
    %v1078 = vunpack.c.l.b16 %v402
    %v1079 = vunpack.c.h.b16 %v402
    %v1080 = vunpack.c.l.b16 %v403
    %v1081 = vunpack.c.h.b16 %v403
    %v1082 = vunpack.c.l.b16 %v404
    %v1083 = vunpack.c.h.b16 %v404
    %v1084 = vunpack.c.l.b16 %v405
    %v1085 = vunpack.c.h.b16 %v405
    %v1086 = vunpack.c.l.b16 %v406
    %v1087 = vunpack.c.h.b16 %v406
    %v1088 = vunpack.c.l.b16 %v407
    %v1089 = vunpack.c.h.b16 %v407
    %v1090 = vunpack.c.l.b16 %v408
    %v1091 = vunpack.c.h.b16 %v408
    %v1092 = vunpack.c.l.b16 %v409
    %v1093 = vunpack.c.h.b16 %v409
    %v1094 = vunpack.c.l.b16 %v410
    %v1095 = vunpack.c.h.b16 %v410
    %v1096 = vunpack.c.l.b16 %v411
    %v1097 = vunpack.c.h.b16 %v411
    %v1098 = vunpack.c.l.b16 %v412
    %v1099 = vunpack.c.h.b16 %v412
    %v1100 = vunpack.c.l.b16 %v413
    %v1101 = vunpack.c.h.b16 %v413
    %v1102 = vunpack.c.l.b16 %v414
    %v1103 = vunpack.c.h.b16 %v414
    %v1104 = vunpack.c.l.b16 %v415
    %v1105 = vunpack.c.h.b16 %v415
    %v1106 = vunpack.c.l.b16 %v416
    %v1107 = vunpack.c.h.b16 %v416
    %v1108 = vunpack.c.l.b16 %v417
    %v1109 = vunpack.c.h.b16 %v417
    %v1110 = vunpack.c.l.b16 %v418
    %v1111 = vunpack.c.h.b16 %v418
    %v1112 = vunpack.c.l.b16 %v419
    %v1113 = vunpack.c.h.b16 %v419
    %v1114 = vpack.c.b16 %v670, %v666
    %v1115 = vpack.c.b16 %v671, %v667
    %v1116 = vpack.c.b16 %v672, %v668
    %v1117 = vpack.c.b16 %v673, %v669
    %v1118 = vpack.c.b16 %v678, %v674
    %v1119 = vpack.c.b16 %v679, %v675
    %v1120 = vpack.c.b16 %v680, %v676
    %v1121 = vpack.c.b16 %v681, %v677
    %v1122 = vpack.c.b16 %v686, %v682
    %v1123 = vpack.c.b16 %v687, %v683
    %v1124 = vpack.c.b16 %v688, %v684
    %v1125 = vpack.c.b16 %v689, %v685
    %v1126 = vpack.c.b16 %v694, %v690
    %v1127 = vpack.c.b16 %v695, %v691
    %v1128 = vpack.c.b16 %v696, %v692
    %v1129 = vpack.c.b16 %v697, %v693
    %v1130 = vpack.c.b16 %v702, %v698
    %v1131 = vpack.c.b16 %v703, %v699
    %v1132 = vpack.c.b16 %v704, %v700
    %v1133 = vpack.c.b16 %v705, %v701
    %v1134 = vpack.c.b16 %v710, %v706
    %v1135 = vpack.c.b16 %v711, %v707
    %v1136 = vpack.c.b16 %v712, %v708
    %v1137 = vpack.c.b16 %v713, %v709
    %v1138 = vpack.c.b16 %v718, %v714
    %v1139 = vpack.c.b16 %v719, %v715
    %v1140 = vpack.c.b16 %v720, %v716
    %v1141 = vpack.c.b16 %v721, %v717
    %v1142 = vpack.c.b16 %v726, %v722
    %v1143 = vpack.c.b16 %v727, %v723
    %v1144 = vpack.c.b16 %v728, %v724
    %v1145 = vpack.c.b16 %v729, %v725
    %v1146 = vpack.c.b16 %v734, %v730
    %v1147 = vpack.c.b16 %v735, %v731
    %v1148 = vpack.c.b16 %v736, %v732
    %v1149 = vpack.c.b16 %v737, %v733
    %v1150 = vpack.c.b16 %v742, %v738
    %v1151 = vpack.c.b16 %v743, %v739
    %v1152 = vpack.c.b16 %v744, %v740
    %v1153 = vpack.c.b16 %v745, %v741
    %v1154 = vpack.c.b16 %v750, %v746
    %v1155 = vpack.c.b16 %v751, %v747
    %v1156 = vpack.c.b16 %v752, %v748
    %v1157 = vpack.c.b16 %v753, %v749
    %v1158 = vpack.c.b16 %v758, %v754
    %v1159 = vpack.c.b16 %v759, %v755
    %v1160 = vpack.c.b16 %v760, %v756
    %v1161 = vpack.c.b16 %v761, %v757
    %v1162 = vpack.c.b16 %v766, %v762
    %v1163 = vpack.c.b16 %v767, %v763
    %v1164 = vpack.c.b16 %v768, %v764
    %v1165 = vpack.c.b16 %v769, %v765
    %v1166 = vpack.c.b16 %v774, %v770
    %v1167 = vpack.c.b16 %v775, %v771
    %v1168 = vpack.c.b16 %v776, %v772
    %v1169 = vpack.c.b16 %v777, %v773
    %v1170 = vpack.c.b16 %v782, %v778
    %v1171 = vpack.c.b16 %v783, %v779
    %v1172 = vpack.c.b16 %v784, %v780
    %v1173 = vpack.c.b16 %v785, %v781
    %v1174 = vpack.c.b16 %v790, %v786
    %v1175 = vpack.c.b16 %v791, %v787
    %v1176 = vpack.c.b16 %v792, %v788
    %v1177 = vpack.c.b16 %v793, %v789
    %v1178 = vpack.c.b16 %v798, %v794
    %v1179 = vpack.c.b16 %v799, %v795
    %v1180 = vpack.c.b16 %v800, %v796
    %v1181 = vpack.c.b16 %v801, %v797
    %v1182 = vpack.c.b16 %v806, %v802
    %v1183 = vpack.c.b16 %v807, %v803
    %v1184 = vpack.c.b16 %v808, %v804
    %v1185 = vpack.c.b16 %v809, %v805
    %v1186 = vpack.c.b16 %v814, %v810
    %v1187 = vpack.c.b16 %v815, %v811
    %v1188 = vpack.c.b16 %v816, %v812
    %v1189 = vpack.c.b16 %v817, %v813
    %v1190 = vpack.c.b16 %v822, %v818
    %v1191 = vpack.c.b16 %v823, %v819
    %v1192 = vpack.c.b16 %v824, %v820
    %v1193 = vpack.c.b16 %v825, %v821
    %v1194 = vpack.c.b16 %v830, %v826
    %v1195 = vpack.c.b16 %v831, %v827
    %v1196 = vpack.c.b16 %v832, %v828
    %v1197 = vpack.c.b16 %v833, %v829
    %v1198 = vpack.c.b16 %v838, %v834
    %v1199 = vpack.c.b16 %v839, %v835
    %v1200 = vpack.c.b16 %v840, %v836
    %v1201 = vpack.c.b16 %v841, %v837
    %v1202 = vpack.c.b16 %v846, %v842
    %v1203 = vpack.c.b16 %v847, %v843
    %v1204 = vpack.c.b16 %v848, %v844
    %v1205 = vpack.c.b16 %v849, %v845
    %v1206 = vpack.c.b16 %v854, %v850
    %v1207 = vpack.c.b16 %v855, %v851
    %v1208 = vpack.c.b16 %v856, %v852
    %v1209 = vpack.c.b16 %v857, %v853
    %v1210 = vpack.c.b16 %v862, %v858
    %v1211 = vpack.c.b16 %v863, %v859
    %v1212 = vpack.c.b16 %v864, %v860
    %v1213 = vpack.c.b16 %v865, %v861
    %v1214 = vpack.c.b16 %v870, %v866
    %v1215 = vpack.c.b16 %v871, %v867
    %v1216 = vpack.c.b16 %v872, %v868
    %v1217 = vpack.c.b16 %v873, %v869
    %v1218 = vpack.c.b16 %v878, %v874
    %v1219 = vpack.c.b16 %v879, %v875
    %v1220 = vpack.c.b16 %v880, %v876
    %v1221 = vpack.c.b16 %v881, %v877
    %v1222 = vpack.c.b16 %v886, %v882
    %v1223 = vpack.c.b16 %v887, %v883
    %v1224 = vpack.c.b16 %v888, %v884
    %v1225 = vpack.c.b16 %v889, %v885
    %v1226 = vpack.c.b16 %v894, %v890
    %v1227 = vpack.c.b16 %v895, %v891
    %v1228 = vpack.c.b16 %v896, %v892
    %v1229 = vpack.c.b16 %v897, %v893
    %v1230 = vpack.c.b16 %v902, %v898
    %v1231 = vpack.c.b16 %v903, %v899
    %v1232 = vpack.c.b16 %v904, %v900
    %v1233 = vpack.c.b16 %v905, %v901
    %v1234 = vpack.c.b16 %v910, %v906
    %v1235 = vpack.c.b16 %v911, %v907
    %v1236 = vpack.c.b16 %v912, %v908
    %v1237 = vpack.c.b16 %v913, %v909
    %v1238 = vpack.c.b16 %v918, %v914
    %v1239 = vpack.c.b16 %v919, %v915
    %v1240 = vpack.c.b16 %v920, %v916
    %v1241 = vpack.c.b16 %v921, %v917
    %v1242 = vpack.c.b16 %v926, %v922
    %v1243 = vpack.c.b16 %v927, %v923
    %v1244 = vpack.c.b16 %v928, %v924
    %v1245 = vpack.c.b16 %v929, %v925
    %v1246 = vpack.c.b16 %v934, %v930
    %v1247 = vpack.c.b16 %v935, %v931
    %v1248 = vpack.c.b16 %v936, %v932
    %v1249 = vpack.c.b16 %v937, %v933
    %v1250 = vpack.c.b16 %v942, %v938
    %v1251 = vpack.c.b16 %v943, %v939
    %v1252 = vpack.c.b16 %v944, %v940
    %v1253 = vpack.c.b16 %v945, %v941
    %v1254 = vpack.c.b16 %v950, %v946
    %v1255 = vpack.c.b16 %v951, %v947
    %v1256 = vpack.c.b16 %v952, %v948
    %v1257 = vpack.c.b16 %v953, %v949
    %v1258 = vpack.c.b16 %v958, %v954
    %v1259 = vpack.c.b16 %v959, %v955
    %v1260 = vpack.c.b16 %v960, %v956
    %v1261 = vpack.c.b16 %v961, %v957
    %v1262 = vpack.c.b16 %v966, %v962
    %v1263 = vpack.c.b16 %v967, %v963
    %v1264 = vpack.c.b16 %v968, %v964
    %v1265 = vpack.c.b16 %v969, %v965
    %v1266 = vpack.c.b16 %v974, %v970
    %v1267 = vpack.c.b16 %v975, %v971
    %v1268 = vpack.c.b16 %v976, %v972
    %v1269 = vpack.c.b16 %v977, %v973
    %v1270 = vpack.c.b16 %v982, %v978
    %v1271 = vpack.c.b16 %v983, %v979
    %v1272 = vpack.c.b16 %v984, %v980
    %v1273 = vpack.c.b16 %v985, %v981
    %v1274 = vpack.c.b16 %v990, %v986
    %v1275 = vpack.c.b16 %v991, %v987
    %v1276 = vpack.c.b16 %v992, %v988
    %v1277 = vpack.c.b16 %v993, %v989
    %v1278 = vpack.c.b16 %v998, %v994
    %v1279 = vpack.c.b16 %v999, %v995
    %v1280 = vpack.c.b16 %v1000, %v996
    %v1281 = vpack.c.b16 %v1001, %v997
    %v1282 = vpack.c.b16 %v1006, %v1002
    %v1283 = vpack.c.b16 %v1007, %v1003
    %v1284 = vpack.c.b16 %v1008, %v1004
    %v1285 = vpack.c.b16 %v1009, %v1005
    %v1286 = vpack.c.b16 %v1014, %v1010
    %v1287 = vpack.c.b16 %v1015, %v1011
    %v1288 = vpack.c.b16 %v1016, %v1012
    %v1289 = vpack.c.b16 %v1017, %v1013
    %v1290 = vpack.c.b16 %v1022, %v1018
    %v1291 = vpack.c.b16 %v1023, %v1019
    %v1292 = vpack.c.b16 %v1024, %v1020
    %v1293 = vpack.c.b16 %v1025, %v1021
    %v1294 = vpack.c.b16 %v1030, %v1026
    %v1295 = vpack.c.b16 %v1031, %v1027
    %v1296 = vpack.c.b16 %v1032, %v1028
    %v1297 = vpack.c.b16 %v1033, %v1029
    %v1298 = vpack.c.b16 %v1038, %v1034
    %v1299 = vpack.c.b16 %v1039, %v1035
    %v1300 = vpack.c.b16 %v1040, %v1036
    %v1301 = vpack.c.b16 %v1041, %v1037
    %v1302 = vpack.c.b16 %v1046, %v1042
    %v1303 = vpack.c.b16 %v1047, %v1043
    %v1304 = vpack.c.b16 %v1048, %v1044
    %v1305 = vpack.c.b16 %v1049, %v1045
    %v1306 = vpack.c.b16 %v1054, %v1050
    %v1307 = vpack.c.b16 %v1055, %v1051
    %v1308 = vpack.c.b16 %v1056, %v1052
    %v1309 = vpack.c.b16 %v1057, %v1053
    %v1310 = vpack.c.b16 %v1062, %v1058
    %v1311 = vpack.c.b16 %v1063, %v1059
    %v1312 = vpack.c.b16 %v1064, %v1060
    %v1313 = vpack.c.b16 %v1065, %v1061
    %v1314 = vpack.c.b16 %v1070, %v1066
    %v1315 = vpack.c.b16 %v1071, %v1067
    %v1316 = vpack.c.b16 %v1072, %v1068
    %v1317 = vpack.c.b16 %v1073, %v1069
    %v1318 = vpack.c.b16 %v1078, %v1074
    %v1319 = vpack.c.b16 %v1079, %v1075
    %v1320 = vpack.c.b16 %v1080, %v1076
    %v1321 = vpack.c.b16 %v1081, %v1077
    %v1322 = vpack.c.b16 %v1086, %v1082
    %v1323 = vpack.c.b16 %v1087, %v1083
    %v1324 = vpack.c.b16 %v1088, %v1084
    %v1325 = vpack.c.b16 %v1089, %v1085
    %v1326 = vpack.c.b16 %v1094, %v1090
    %v1327 = vpack.c.b16 %v1095, %v1091
    %v1328 = vpack.c.b16 %v1096, %v1092
    %v1329 = vpack.c.b16 %v1097, %v1093
    %v1330 = vpack.c.b16 %v1102, %v1098
    %v1331 = vpack.c.b16 %v1103, %v1099
    %v1332 = vpack.c.b16 %v1104, %v1100
    %v1333 = vpack.c.b16 %v1105, %v1101
    %v1334 = vpack.c.b16 %v1110, %v1106
    %v1335 = vpack.c.b16 %v1111, %v1107
    %v1336 = vpack.c.b16 %v1112, %v1108
    %v1337 = vpack.c.b16 %v1113, %v1109
    %1562 = vmatprep.subr.bf16.mxu0 %v1115
    %1563 = vmatpush1.bf16.msra.mxu0 %v1114
    %1564 = vmatprep.subr.bf16.mxu0 %v1119
    %1565 = vmatpush1.bf16.msra.mxu0 %v1118
    %1566 = vmatprep.subr.bf16.mxu0 %v1123
    %1567 = vmatpush1.bf16.msra.mxu0 %v1122
    %1568 = vmatprep.subr.bf16.mxu0 %v1127
    %1569 = vmatpush1.bf16.msra.mxu0 %v1126
    %1570 = vmatprep.subr.bf16.mxu0 %v1131
    %1571 = vmatpush1.bf16.msra.mxu0 %v1130
    %1572 = vmatprep.subr.bf16.mxu0 %v1135
    %1573 = vmatpush1.bf16.msra.mxu0 %v1134
    %1574 = vmatprep.subr.bf16.mxu0 %v1139
    %1575 = vmatpush1.bf16.msra.mxu0 %v1138
    %1576 = vmatprep.subr.bf16.mxu0 %v1143
    %1577 = vmatpush1.bf16.msra.mxu0 %v1142
    %1578 = vmatprep.subr.bf16.mxu0 %v1147
    %1579 = vmatpush1.bf16.msra.mxu0 %v1146
    %1580 = vmatprep.subr.bf16.mxu0 %v1151
    %1581 = vmatpush1.bf16.msra.mxu0 %v1150
    %1582 = vmatprep.subr.bf16.mxu0 %v1155
    %1583 = vmatpush1.bf16.msra.mxu0 %v1154
    %1584 = vmatprep.subr.bf16.mxu0 %v1159
    %1585 = vmatpush1.bf16.msra.mxu0 %v1158
    %1586 = vmatprep.subr.bf16.mxu0 %v1163
    %1587 = vmatpush1.bf16.msra.mxu0 %v1162
    %1588 = vmatprep.subr.bf16.mxu0 %v1167
    %1589 = vmatpush1.bf16.msra.mxu0 %v1166
    %1590 = vmatprep.subr.bf16.mxu0 %v1171
    %1591 = vmatpush1.bf16.msra.mxu0 %v1170
    %1592 = vmatprep.subr.bf16.mxu0 %v1175
    %1593 = vmatpush1.bf16.msra.mxu0 %v1174
    %1594 = vmatprep.mubr.bf16.mxu0 %v190
    %1595 = vmatmul.mubr.bf16.gmra.mrb[0].mxu0 %v189
    %v1596 = vpop.f32.mrb[0].mxu0
    %v1597 = vadd.f32 %v425, %v1596
    %v1598 = vpop.f32.mrb[0].mxu0
    %v1599 = vadd.f32 %v429, %v1598
    %v1600 = vpop.f32.mrb[0].mxu0
    %v1601 = vadd.f32 %v425, %v1600
    %v1602 = vpop.f32.mrb[0].mxu0
    %v1603 = vadd.f32 %v429, %v1602
    %1604 = vdwg.mxu0
    %1605 = vmatprep.subr.bf16.mxu0 %v1179
    %1606 = vmatpush1.bf16.msra.mxu0 %v1178
    %1607 = vmatprep.subr.bf16.mxu0 %v1183
    %1608 = vmatpush1.bf16.msra.mxu0 %v1182
    %1609 = vmatprep.subr.bf16.mxu0 %v1187
    %1610 = vmatpush1.bf16.msra.mxu0 %v1186
    %1611 = vmatprep.subr.bf16.mxu0 %v1191
    %1612 = vmatpush1.bf16.msra.mxu0 %v1190
    %1613 = vmatprep.subr.bf16.mxu0 %v1195
    %1614 = vmatpush1.bf16.msra.mxu0 %v1194
    %1615 = vmatprep.subr.bf16.mxu0 %v1199
    %1616 = vmatpush1.bf16.msra.mxu0 %v1198
    %1617 = vmatprep.subr.bf16.mxu0 %v1203
    %1618 = vmatpush1.bf16.msra.mxu0 %v1202
    %1619 = vmatprep.subr.bf16.mxu0 %v1207
    %1620 = vmatpush1.bf16.msra.mxu0 %v1206
    %1621 = vmatprep.subr.bf16.mxu0 %v1211
    %1622 = vmatpush1.bf16.msra.mxu0 %v1210
    %1623 = vmatprep.subr.bf16.mxu0 %v1215
    %1624 = vmatpush1.bf16.msra.mxu0 %v1214
    %1625 = vmatprep.subr.bf16.mxu0 %v1219
    %1626 = vmatpush1.bf16.msra.mxu0 %v1218
    %1627 = vmatprep.subr.bf16.mxu0 %v1223
    %1628 = vmatpush1.bf16.msra.mxu0 %v1222
    %1629 = vmatprep.subr.bf16.mxu0 %v1227
    %1630 = vmatpush1.bf16.msra.mxu0 %v1226
    %1631 = vmatprep.subr.bf16.mxu0 %v1231
    %1632 = vmatpush1.bf16.msra.mxu0 %v1230
    %1633 = vmatprep.subr.bf16.mxu0 %v1235
    %1634 = vmatpush1.bf16.msra.mxu0 %v1234
    %1635 = vmatprep.subr.bf16.mxu0 %v1239
    %1636 = vmatpush1.bf16.msra.mxu0 %v1238
    %1637 = vmatprep.mubr.bf16.mxu0 %v192
    %1638 = vmatmul.mubr.bf16.gmra.mrb[0].mxu0 %v191
    %v1639 = vpop.f32.mrb[0].mxu0
    %v1640 = vadd.f32 %v1597, %v1639
    %v1641 = vpop.f32.mrb[0].mxu0
    %v1642 = vadd.f32 %v1599, %v1641
    %v1643 = vpop.f32.mrb[0].mxu0
    %v1644 = vadd.f32 %v1601, %v1643
    %v1645 = vpop.f32.mrb[0].mxu0
    %v1646 = vadd.f32 %v1603, %v1645
    %1647 = vdwg.mxu0
    %1648 = vmatprep.subr.bf16.mxu0 %v1243
    %1649 = vmatpush1.bf16.msra.mxu0 %v1242
    %1650 = vmatprep.subr.bf16.mxu0 %v1247
    %1651 = vmatpush1.bf16.msra.mxu0 %v1246
    %1652 = vmatprep.subr.bf16.mxu0 %v1251
    %1653 = vmatpush1.bf16.msra.mxu0 %v1250
    %1654 = vmatprep.subr.bf16.mxu0 %v1255
    %1655 = vmatpush1.bf16.msra.mxu0 %v1254
    %1656 = vmatprep.subr.bf16.mxu0 %v1259
    %1657 = vmatpush1.bf16.msra.mxu0 %v1258
    %1658 = vmatprep.subr.bf16.mxu0 %v1263
    %1659 = vmatpush1.bf16.msra.mxu0 %v1262
    %1660 = vmatprep.subr.bf16.mxu0 %v1267
    %1661 = vmatpush1.bf16.msra.mxu0 %v1266
    %1662 = vmatprep.subr.bf16.mxu0 %v1271
    %1663 = vmatpush1.bf16.msra.mxu0 %v1270
    %1664 = vmatprep.subr.bf16.mxu0 %v1275
    %1665 = vmatpush1.bf16.msra.mxu0 %v1274
    %1666 = vmatprep.subr.bf16.mxu0 %v1279
    %1667 = vmatpush1.bf16.msra.mxu0 %v1278
    %1668 = vmatprep.subr.bf16.mxu0 %v1283
    %1669 = vmatpush1.bf16.msra.mxu0 %v1282
    %1670 = vmatprep.subr.bf16.mxu0 %v1287
    %1671 = vmatpush1.bf16.msra.mxu0 %v1286
    %1672 = vmatprep.subr.bf16.mxu0 %v1291
    %1673 = vmatpush1.bf16.msra.mxu0 %v1290
    %1674 = vmatprep.subr.bf16.mxu0 %v1295
    %1675 = vmatpush1.bf16.msra.mxu0 %v1294
    %1676 = vmatprep.subr.bf16.mxu0 %v1299
    %1677 = vmatpush1.bf16.msra.mxu0 %v1298
    %1678 = vmatprep.subr.bf16.mxu0 %v1303
    %1679 = vmatpush1.bf16.msra.mxu0 %v1302
    %1680 = vmatprep.mubr.bf16.mxu0 %v194
    %1681 = vmatmul.mubr.bf16.gmra.mrb[0].mxu0 %v193
    %v1682 = vpop.f32.mrb[0].mxu0
    %v1683 = vadd.f32 %v1640, %v1682
    %v1684 = vpop.f32.mrb[0].mxu0
    %v1685 = vadd.f32 %v1642, %v1684
    %v1686 = vpop.f32.mrb[0].mxu0
    %v1687 = vadd.f32 %v1644, %v1686
    %v1688 = vpop.f32.mrb[0].mxu0
    %v1689 = vadd.f32 %v1646, %v1688
    %1690 = vdwg.mxu0
    %1691 = vmatprep.subr.bf16.mxu0 %v1307
    %1692 = vmatpush1.bf16.msra.mxu0 %v1306
    %1693 = vmatprep.subr.bf16.mxu0 %v1311
    %1694 = vmatpush1.bf16.msra.mxu0 %v1310
    %1695 = vmatprep.subr.bf16.mxu0 %v1315
    %1696 = vmatpush1.bf16.msra.mxu0 %v1314
    %1697 = vmatprep.subr.bf16.mxu0 %v1319
    %1698 = vmatpush1.bf16.msra.mxu0 %v1318
    %1699 = vmatprep.subr.bf16.mxu0 %v1323
    %1700 = vmatpush1.bf16.msra.mxu0 %v1322
    %1701 = vmatprep.subr.bf16.mxu0 %v1327
    %1702 = vmatpush1.bf16.msra.mxu0 %v1326
    %1703 = vmatprep.subr.bf16.mxu0 %v1331
    %1704 = vmatpush1.bf16.msra.mxu0 %v1330
    %1705 = vmatprep.subr.bf16.mxu0 %v1335
    %1706 = vmatpush1.bf16.msra.mxu0 %v1334
    %1707 = vmatprep.subr.bf16.mxu0 0
    %1708 = vmatpush1.bf16.msra.mxu0 0
    %1709 = vmatprep.subr.bf16.mxu0 0
    %1710 = vmatpush1.bf16.msra.mxu0 0
    %1711 = vmatprep.subr.bf16.mxu0 0
    %1712 = vmatpush1.bf16.msra.mxu0 0
    %1713 = vmatprep.subr.bf16.mxu0 0
    %1714 = vmatpush1.bf16.msra.mxu0 0
    %1715 = vmatprep.subr.bf16.mxu0 0
    %1716 = vmatpush1.bf16.msra.mxu0 0
    %1717 = vmatprep.subr.bf16.mxu0 0
    %1718 = vmatpush1.bf16.msra.mxu0 0
    %1719 = vmatprep.subr.bf16.mxu0 0
    %1720 = vmatpush1.bf16.msra.mxu0 0
    %1721 = vmatprep.subr.bf16.mxu0 0
    %1722 = vmatpush1.bf16.msra.mxu0 0
    %1723 = vmatprep.mubr.bf16.mxu0 0
    %1724 = vmatmul.mubr.bf16.gmra.mrb[0].mxu0 %v195
    %v1725 = vpop.f32.mrb[0].mxu0
    %v1726 = vadd.f32 %v1683, %v1725
    %v1727 = vpop.f32.mrb[0].mxu0
    %v1728 = vadd.f32 %v1685, %v1727
    %v1729 = vpop.f32.mrb[0].mxu0
    %v1730 = vadd.f32 %v1687, %v1729
    %v1731 = vpop.f32.mrb[0].mxu0
    %v1732 = vadd.f32 %v1689, %v1731
    %1733 = vdwg.mxu0
    %1734 = vmatprep.subr.bf16.mxu0 %v1117
    %1735 = vmatpush1.bf16.msra.mxu0 %v1116
    %1736 = vmatprep.subr.bf16.mxu0 %v1121
    %1737 = vmatpush1.bf16.msra.mxu0 %v1120
    %1738 = vmatprep.subr.bf16.mxu0 %v1125
    %1739 = vmatpush1.bf16.msra.mxu0 %v1124
    %1740 = vmatprep.subr.bf16.mxu0 %v1129
    %1741 = vmatpush1.bf16.msra.mxu0 %v1128
    %1742 = vmatprep.subr.bf16.mxu0 %v1133
    %1743 = vmatpush1.bf16.msra.mxu0 %v1132
    %1744 = vmatprep.subr.bf16.mxu0 %v1137
    %1745 = vmatpush1.bf16.msra.mxu0 %v1136
    %1746 = vmatprep.subr.bf16.mxu0 %v1141
    %1747 = vmatpush1.bf16.msra.mxu0 %v1140
    %1748 = vmatprep.subr.bf16.mxu0 %v1145
    %1749 = vmatpush1.bf16.msra.mxu0 %v1144
    %1750 = vmatprep.subr.bf16.mxu0 %v1149
    %1751 = vmatpush1.bf16.msra.mxu0 %v1148
    %1752 = vmatprep.subr.bf16.mxu0 %v1153
    %1753 = vmatpush1.bf16.msra.mxu0 %v1152
    %1754 = vmatprep.subr.bf16.mxu0 %v1157
    %1755 = vmatpush1.bf16.msra.mxu0 %v1156
    %1756 = vmatprep.subr.bf16.mxu0 %v1161
    %1757 = vmatpush1.bf16.msra.mxu0 %v1160
    %1758 = vmatprep.subr.bf16.mxu0 %v1165
    %1759 = vmatpush1.bf16.msra.mxu0 %v1164
    %1760 = vmatprep.subr.bf16.mxu0 %v1169
    %1761 = vmatpush1.bf16.msra.mxu0 %v1168
    %1762 = vmatprep.subr.bf16.mxu0 %v1173
    %1763 = vmatpush1.bf16.msra.mxu0 %v1172
    %1764 = vmatprep.subr.bf16.mxu0 %v1177
    %1765 = vmatpush1.bf16.msra.mxu0 %v1176
    %1766 = vmatprep.mubr.bf16.mxu0 %v190
    %1767 = vmatmul.mubr.bf16.gmra.mrb[0].mxu0 %v189
    %v1768 = vpop.f32.mrb[0].mxu0
    %v1769 = vadd.f32 %v433, %v1768
    %v1770 = vpop.f32.mrb[0].mxu0
    %v1771 = vadd.f32 %v437, %v1770
    %v1772 = vpop.f32.mrb[0].mxu0
    %v1773 = vadd.f32 %v433, %v1772
    %v1774 = vpop.f32.mrb[0].mxu0
    %v1775 = vadd.f32 %v437, %v1774
    %1776 = vdwg.mxu0
    %1777 = vmatprep.subr.bf16.mxu0 %v1181
    %1778 = vmatpush1.bf16.msra.mxu0 %v1180
    %1779 = vmatprep.subr.bf16.mxu0 %v1185
    %1780 = vmatpush1.bf16.msra.mxu0 %v1184
    %1781 = vmatprep.subr.bf16.mxu0 %v1189
    %1782 = vmatpush1.bf16.msra.mxu0 %v1188
    %1783 = vmatprep.subr.bf16.mxu0 %v1193
    %1784 = vmatpush1.bf16.msra.mxu0 %v1192
    %1785 = vmatprep.subr.bf16.mxu0 %v1197
    %1786 = vmatpush1.bf16.msra.mxu0 %v1196
    %1787 = vmatprep.subr.bf16.mxu0 %v1201
    %1788 = vmatpush1.bf16.msra.mxu0 %v1200
    %1789 = vmatprep.subr.bf16.mxu0 %v1205
    %1790 = vmatpush1.bf16.msra.mxu0 %v1204
    %1791 = vmatprep.subr.bf16.mxu0 %v1209
    %1792 = vmatpush1.bf16.msra.mxu0 %v1208
    %1793 = vmatprep.subr.bf16.mxu0 %v1213
    %1794 = vmatpush1.bf16.msra.mxu0 %v1212
    %1795 = vmatprep.subr.bf16.mxu0 %v1217
    %1796 = vmatpush1.bf16.msra.mxu0 %v1216
    %1797 = vmatprep.subr.bf16.mxu0 %v1221
    %1798 = vmatpush1.bf16.msra.mxu0 %v1220
    %1799 = vmatprep.subr.bf16.mxu0 %v1225
    %1800 = vmatpush1.bf16.msra.mxu0 %v1224
    %1801 = vmatprep.subr.bf16.mxu0 %v1229
    %1802 = vmatpush1.bf16.msra.mxu0 %v1228
    %1803 = vmatprep.subr.bf16.mxu0 %v1233
    %1804 = vmatpush1.bf16.msra.mxu0 %v1232
    %1805 = vmatprep.subr.bf16.mxu0 %v1237
    %1806 = vmatpush1.bf16.msra.mxu0 %v1236
    %1807 = vmatprep.subr.bf16.mxu0 %v1241
    %1808 = vmatpush1.bf16.msra.mxu0 %v1240
    %1809 = vmatprep.mubr.bf16.mxu0 %v192
    %1810 = vmatmul.mubr.bf16.gmra.mrb[0].mxu0 %v191
    %v1811 = vpop.f32.mrb[0].mxu0
    %v1812 = vadd.f32 %v1769, %v1811
    %v1813 = vpop.f32.mrb[0].mxu0
    %v1814 = vadd.f32 %v1771, %v1813
    %v1815 = vpop.f32.mrb[0].mxu0
    %v1816 = vadd.f32 %v1773, %v1815
    %v1817 = vpop.f32.mrb[0].mxu0
    %v1818 = vadd.f32 %v1775, %v1817
    %1819 = vdwg.mxu0
    %1820 = vmatprep.subr.bf16.mxu0 %v1245
    %1821 = vmatpush1.bf16.msra.mxu0 %v1244
    %1822 = vmatprep.subr.bf16.mxu0 %v1249
    %1823 = vmatpush1.bf16.msra.mxu0 %v1248
    %1824 = vmatprep.subr.bf16.mxu0 %v1253
    %1825 = vmatpush1.bf16.msra.mxu0 %v1252
    %1826 = vmatprep.subr.bf16.mxu0 %v1257
    %1827 = vmatpush1.bf16.msra.mxu0 %v1256
    %1828 = vmatprep.subr.bf16.mxu0 %v1261
    %1829 = vmatpush1.bf16.msra.mxu0 %v1260
    %1830 = vmatprep.subr.bf16.mxu0 %v1265
    %1831 = vmatpush1.bf16.msra.mxu0 %v1264
    %1832 = vmatprep.subr.bf16.mxu0 %v1269
    %1833 = vmatpush1.bf16.msra.mxu0 %v1268
    %1834 = vmatprep.subr.bf16.mxu0 %v1273
    %1835 = vmatpush1.bf16.msra.mxu0 %v1272
    %1836 = vmatprep.subr.bf16.mxu0 %v1277
    %1837 = vmatpush1.bf16.msra.mxu0 %v1276
    %1838 = vmatprep.subr.bf16.mxu0 %v1281
    %1839 = vmatpush1.bf16.msra.mxu0 %v1280
    %1840 = vmatprep.subr.bf16.mxu0 %v1285
    %1841 = vmatpush1.bf16.msra.mxu0 %v1284
    %1842 = vmatprep.subr.bf16.mxu0 %v1289
    %1843 = vmatpush1.bf16.msra.mxu0 %v1288
    %1844 = vmatprep.subr.bf16.mxu0 %v1293
    %1845 = vmatpush1.bf16.msra.mxu0 %v1292
    %1846 = vmatprep.subr.bf16.mxu0 %v1297
    %1847 = vmatpush1.bf16.msra.mxu0 %v1296
    %1848 = vmatprep.subr.bf16.mxu0 %v1301
    %1849 = vmatpush1.bf16.msra.mxu0 %v1300
    %1850 = vmatprep.subr.bf16.mxu0 %v1305
    %1851 = vmatpush1.bf16.msra.mxu0 %v1304
    %1852 = vmatprep.mubr.bf16.mxu0 %v194
    %1853 = vmatmul.mubr.bf16.gmra.mrb[0].mxu0 %v193
    %v1854 = vpop.f32.mrb[0].mxu0
    %v1855 = vadd.f32 %v1812, %v1854
    %v1856 = vpop.f32.mrb[0].mxu0
    %v1857 = vadd.f32 %v1814, %v1856
    %v1858 = vpop.f32.mrb[0].mxu0
    %v1859 = vadd.f32 %v1816, %v1858
    %v1860 = vpop.f32.mrb[0].mxu0
    %v1861 = vadd.f32 %v1818, %v1860
    %1862 = vdwg.mxu0
    %1863 = vmatprep.subr.bf16.mxu0 %v1309
    %1864 = vmatpush1.bf16.msra.mxu0 %v1308
    %1865 = vmatprep.subr.bf16.mxu0 %v1313
    %1866 = vmatpush1.bf16.msra.mxu0 %v1312
    %1867 = vmatprep.subr.bf16.mxu0 %v1317
    %1868 = vmatpush1.bf16.msra.mxu0 %v1316
    %1869 = vmatprep.subr.bf16.mxu0 %v1321
    %1870 = vmatpush1.bf16.msra.mxu0 %v1320
    %1871 = vmatprep.subr.bf16.mxu0 %v1325
    %1872 = vmatpush1.bf16.msra.mxu0 %v1324
    %1873 = vmatprep.subr.bf16.mxu0 %v1329
    %1874 = vmatpush1.bf16.msra.mxu0 %v1328
    %1875 = vmatprep.subr.bf16.mxu0 %v1333
    %1876 = vmatpush1.bf16.msra.mxu0 %v1332
    %1877 = vmatprep.subr.bf16.mxu0 %v1337
    %1878 = vmatpush1.bf16.msra.mxu0 %v1336
    %1879 = vmatprep.subr.bf16.mxu0 0
    %1880 = vmatpush1.bf16.msra.mxu0 0
    %1881 = vmatprep.subr.bf16.mxu0 0
    %1882 = vmatpush1.bf16.msra.mxu0 0
    %1883 = vmatprep.subr.bf16.mxu0 0
    %1884 = vmatpush1.bf16.msra.mxu0 0
    %1885 = vmatprep.subr.bf16.mxu0 0
    %1886 = vmatpush1.bf16.msra.mxu0 0
    %1887 = vmatprep.subr.bf16.mxu0 0
    %1888 = vmatpush1.bf16.msra.mxu0 0
    %1889 = vmatprep.subr.bf16.mxu0 0
    %1890 = vmatpush1.bf16.msra.mxu0 0
    %1891 = vmatprep.subr.bf16.mxu0 0
    %1892 = vmatpush1.bf16.msra.mxu0 0
    %1893 = vmatprep.subr.bf16.mxu0 0
    %1894 = vmatpush1.bf16.msra.mxu0 0
    %1895 = vmatprep.mubr.bf16.mxu0 0
    %1896 = vmatmul.mubr.bf16.gmra.mrb[0].mxu0 %v195
    %v1897 = vpop.f32.mrb[0].mxu0
    %v1898 = vadd.f32 %v1855, %v1897
    %v1899 = vpop.f32.mrb[0].mxu0
    %v1900 = vadd.f32 %v1857, %v1899
    %v1901 = vpop.f32.mrb[0].mxu0
    %v1902 = vadd.f32 %v1859, %v1901
    %v1903 = vpop.f32.mrb[0].mxu0
    %v1904 = vadd.f32 %v1861, %v1903
    %1905 = vdwg.mxu0
    %v1906 = vmax.f32 %v1726, 0.0
    %v1907 = vmax.f32 %v1728, 0.0
    %v1908 = vmax.f32 %v1898, 0.0
    %v1909 = vmax.f32 %v1900, 0.0
    %v1910 = vmax.f32 %v1730, 0.0
    %v1911 = vmax.f32 %v1732, 0.0
    %v1912 = vmax.f32 %v1902, 0.0
    %v1913 = vmax.f32 %v1904, 0.0
    %v1914 = vpack.c.bf16 %v1910, %v1906
    %v1915 = vpack.c.bf16 %v1911, %v1907
    %v1916 = vpack.c.bf16 %v1912, %v1908
    %v1917 = vpack.c.bf16 %v1913, %v1909
    %v1918 = vld [vmem:[#allocation5] sm:$0xff]
    %v1919 = vld [vmem:[#allocation5 + $0x8] sm:$0xff]
    %v1920 = vld [vmem:[#allocation5 + $0x10] sm:$0xff]
    %v1921 = vld [vmem:[#allocation5 + $0x18] sm:$0xff]
    %v1922 = vld [vmem:[#allocation5 + $0x20] sm:$0xff]
    %v1923 = vld [vmem:[#allocation5 + $0x28] sm:$0xff]
    %v1924 = vld [vmem:[#allocation5 + $0x30] sm:$0xff]
    %v1925 = vld [vmem:[#allocation5 + $0x38] sm:$0xff]
    %v1926 = vld [vmem:[#allocation5 + $0x40] sm:$0xff]
    %v1927 = vld [vmem:[#allocation5 + $0x48] sm:$0xff]
    %v1928 = vld [vmem:[#allocation5 + $0x50] sm:$0xff]
    %v1929 = vld [vmem:[#allocation5 + $0x58] sm:$0xff]
    %v1930 = vld [vmem:[#allocation5 + $0x60] sm:$0xff]
    %v1931 = vld [vmem:[#allocation5 + $0x68] sm:$0xff]
    %v1932 = vld [vmem:[#allocation5 + $0x70] sm:$0xff]
    %v1933 = vld [vmem:[#allocation5 + $0x78] sm:$0xff]
    %v1934 = vld [vmem:[#allocation5 + $0x80] sm:$0xff]
    %v1935 = vld [vmem:[#allocation5 + $0x88] sm:$0xff]
    %v1936 = vld [vmem:[#allocation5 + $0x90] sm:$0xff]
    %v1937 = vld [vmem:[#allocation5 + $0x98] sm:$0xff]
    %v1938 = vld [vmem:[#allocation5 + $0xa0] sm:$0xff]
    %v1939 = vld [vmem:[#allocation5 + $0xa8] sm:$0xff]
    %v1940 = vld [vmem:[#allocation5 + $0xb0] sm:$0xff]
    %v1941 = vld [vmem:[#allocation5 + $0xb8] sm:$0xff]
    %v1942 = vld [vmem:[#allocation5 + $0xc0] sm:$0xff]
    %v1943 = vld [vmem:[#allocation5 + $0xc8] sm:$0xff]
    %v1944 = vld [vmem:[#allocation5 + $0xd0] sm:$0xff]
    %v1945 = vld [vmem:[#allocation5 + $0xd8] sm:$0xff]
    %v1946 = vld [vmem:[#allocation5 + $0xe0] sm:$0xff]
    %v1947 = vld [vmem:[#allocation5 + $0xe8] sm:$0xff]
    %v1948 = vld [vmem:[#allocation5 + $0xf0] sm:$0xff]
    %v1949 = vld [vmem:[#allocation5 + $0xf8] sm:$0xff]
    %v1950 = vld [vmem:[#allocation5 + $0x100] sm:$0xff]
    %v1951 = vld [vmem:[#allocation5 + $0x108] sm:$0xff]
    %v1952 = vld [vmem:[#allocation5 + $0x110] sm:$0xff]
    %v1953 = vld [vmem:[#allocation5 + $0x118] sm:$0xff]
    %v1954 = vld [vmem:[#allocation5 + $0x120] sm:$0xff]
    %v1955 = vld [vmem:[#allocation5 + $0x128] sm:$0xff]
    %v1956 = vld [vmem:[#allocation5 + $0x130] sm:$0xff]
    %v1957 = vld [vmem:[#allocation5 + $0x138] sm:$0xff]
    %v1958 = vld [vmem:[#allocation5 + $0x140] sm:$0xff]
    %v1959 = vld [vmem:[#allocation5 + $0x148] sm:$0xff]
    %v1960 = vld [vmem:[#allocation5 + $0x150] sm:$0xff]
    %v1961 = vld [vmem:[#allocation5 + $0x158] sm:$0xff]
    %v1962 = vld [vmem:[#allocation5 + $0x160] sm:$0xff]
    %v1963 = vld [vmem:[#allocation5 + $0x168] sm:$0xff]
    %v1964 = vld [vmem:[#allocation5 + $0x170] sm:$0xff]
    %v1965 = vld [vmem:[#allocation5 + $0x178] sm:$0xff]
    %v1966 = vld [vmem:[#allocation5 + $0x180] sm:$0xff]
    %v1967 = vld [vmem:[#allocation5 + $0x188] sm:$0xff]
    %v1968 = vld [vmem:[#allocation5 + $0x190] sm:$0xff]
    %v1969 = vld [vmem:[#allocation5 + $0x198] sm:$0xff]
    %v1970 = vld [vmem:[#allocation5 + $0x1a0] sm:$0xff]
    %v1971 = vld [vmem:[#allocation5 + $0x1a8] sm:$0xff]
    %v1972 = vld [vmem:[#allocation5 + $0x1b0] sm:$0xff]
    %v1973 = vld [vmem:[#allocation5 + $0x1b8] sm:$0xff]
    %v1974 = vld [vmem:[#allocation5 + $0x1c0] sm:$0xff]
    %v1975 = vld [vmem:[#allocation5 + $0x1c8] sm:$0xff]
    %v1976 = vld [vmem:[#allocation5 + $0x1d0] sm:$0xff]
    %v1977 = vld [vmem:[#allocation5 + $0x1d8] sm:$0xff]
    %v1978 = vld [vmem:[#allocation5 + $0x1e0] sm:$0xff]
    %v1979 = vld [vmem:[#allocation5 + $0x1e8] sm:$0xff]
    %v1980 = vld [vmem:[#allocation5 + $0x1f0] sm:$0xff]
    %v1981 = vld [vmem:[#allocation5 + $0x1f8] sm:$0xff]
    %v1982 = vld [vmem:[#allocation7] sm:$0x3]
    %v1984 = vlaneseq
    %v1985 = vshrl.u32 %v1984, 7
    %v1986 = vsub.s32 0, %v1985
    %v1987 = vrot.slane %v1982, %v1986
    %v1988 = vlaneseq
    %v1989 = vshrl.u32 %v1988, 7
    %v1990 = vsub.s32 1, %v1989
    %v1991 = vrot.slane %v1982, %v1990
    %v2058 = vunpack.c.l.b16 %v1918
    %v2059 = vunpack.c.h.b16 %v1918
    %v2060 = vunpack.c.l.b16 %v1919
    %v2061 = vunpack.c.h.b16 %v1919
    %v2062 = vunpack.c.l.b16 %v1920
    %v2063 = vunpack.c.h.b16 %v1920
    %v2064 = vunpack.c.l.b16 %v1921
    %v2065 = vunpack.c.h.b16 %v1921
    %v2066 = vunpack.c.l.b16 %v1922
    %v2067 = vunpack.c.h.b16 %v1922
    %v2068 = vunpack.c.l.b16 %v1923
    %v2069 = vunpack.c.h.b16 %v1923
    %v2070 = vunpack.c.l.b16 %v1924
    %v2071 = vunpack.c.h.b16 %v1924
    %v2072 = vunpack.c.l.b16 %v1925
    %v2073 = vunpack.c.h.b16 %v1925
    %v2074 = vunpack.c.l.b16 %v1926
    %v2075 = vunpack.c.h.b16 %v1926
    %v2076 = vunpack.c.l.b16 %v1927
    %v2077 = vunpack.c.h.b16 %v1927
    %v2078 = vunpack.c.l.b16 %v1928
    %v2079 = vunpack.c.h.b16 %v1928
    %v2080 = vunpack.c.l.b16 %v1929
    %v2081 = vunpack.c.h.b16 %v1929
    %v2082 = vunpack.c.l.b16 %v1930
    %v2083 = vunpack.c.h.b16 %v1930
    %v2084 = vunpack.c.l.b16 %v1931
    %v2085 = vunpack.c.h.b16 %v1931
    %v2086 = vunpack.c.l.b16 %v1932
    %v2087 = vunpack.c.h.b16 %v1932
    %v2088 = vunpack.c.l.b16 %v1933
    %v2089 = vunpack.c.h.b16 %v1933
    %v2090 = vunpack.c.l.b16 %v1934
    %v2091 = vunpack.c.h.b16 %v1934
    %v2092 = vunpack.c.l.b16 %v1935
    %v2093 = vunpack.c.h.b16 %v1935
    %v2094 = vunpack.c.l.b16 %v1936
    %v2095 = vunpack.c.h.b16 %v1936
    %v2096 = vunpack.c.l.b16 %v1937
    %v2097 = vunpack.c.h.b16 %v1937
    %v2098 = vunpack.c.l.b16 %v1938
    %v2099 = vunpack.c.h.b16 %v1938
    %v2100 = vunpack.c.l.b16 %v1939
    %v2101 = vunpack.c.h.b16 %v1939
    %v2102 = vunpack.c.l.b16 %v1940
    %v2103 = vunpack.c.h.b16 %v1940
    %v2104 = vunpack.c.l.b16 %v1941
    %v2105 = vunpack.c.h.b16 %v1941
    %v2106 = vunpack.c.l.b16 %v1942
    %v2107 = vunpack.c.h.b16 %v1942
    %v2108 = vunpack.c.l.b16 %v1943
    %v2109 = vunpack.c.h.b16 %v1943
    %v2110 = vunpack.c.l.b16 %v1944
    %v2111 = vunpack.c.h.b16 %v1944
    %v2112 = vunpack.c.l.b16 %v1945
    %v2113 = vunpack.c.h.b16 %v1945
    %v2114 = vunpack.c.l.b16 %v1946
    %v2115 = vunpack.c.h.b16 %v1946
    %v2116 = vunpack.c.l.b16 %v1947
    %v2117 = vunpack.c.h.b16 %v1947
    %v2118 = vunpack.c.l.b16 %v1948
    %v2119 = vunpack.c.h.b16 %v1948
    %v2120 = vunpack.c.l.b16 %v1949
    %v2121 = vunpack.c.h.b16 %v1949
    %v2122 = vunpack.c.l.b16 %v1950
    %v2123 = vunpack.c.h.b16 %v1950
    %v2124 = vunpack.c.l.b16 %v1951
    %v2125 = vunpack.c.h.b16 %v1951
    %v2126 = vunpack.c.l.b16 %v1952
    %v2127 = vunpack.c.h.b16 %v1952
    %v2128 = vunpack.c.l.b16 %v1953
    %v2129 = vunpack.c.h.b16 %v1953
    %v2130 = vunpack.c.l.b16 %v1954
    %v2131 = vunpack.c.h.b16 %v1954
    %v2132 = vunpack.c.l.b16 %v1955
    %v2133 = vunpack.c.h.b16 %v1955
    %v2134 = vunpack.c.l.b16 %v1956
    %v2135 = vunpack.c.h.b16 %v1956
    %v2136 = vunpack.c.l.b16 %v1957
    %v2137 = vunpack.c.h.b16 %v1957
    %v2138 = vunpack.c.l.b16 %v1958
    %v2139 = vunpack.c.h.b16 %v1958
    %v2140 = vunpack.c.l.b16 %v1959
    %v2141 = vunpack.c.h.b16 %v1959
    %v2142 = vunpack.c.l.b16 %v1960
    %v2143 = vunpack.c.h.b16 %v1960
    %v2144 = vunpack.c.l.b16 %v1961
    %v2145 = vunpack.c.h.b16 %v1961
    %v2146 = vunpack.c.l.b16 %v1962
    %v2147 = vunpack.c.h.b16 %v1962
    %v2148 = vunpack.c.l.b16 %v1963
    %v2149 = vunpack.c.h.b16 %v1963
    %v2150 = vunpack.c.l.b16 %v1964
    %v2151 = vunpack.c.h.b16 %v1964
    %v2152 = vunpack.c.l.b16 %v1965
    %v2153 = vunpack.c.h.b16 %v1965
    %v2154 = vunpack.c.l.b16 %v1966
    %v2155 = vunpack.c.h.b16 %v1966
    %v2156 = vunpack.c.l.b16 %v1967
    %v2157 = vunpack.c.h.b16 %v1967
    %v2158 = vunpack.c.l.b16 %v1968
    %v2159 = vunpack.c.h.b16 %v1968
    %v2160 = vunpack.c.l.b16 %v1969
    %v2161 = vunpack.c.h.b16 %v1969
    %v2162 = vunpack.c.l.b16 %v1970
    %v2163 = vunpack.c.h.b16 %v1970
    %v2164 = vunpack.c.l.b16 %v1971
    %v2165 = vunpack.c.h.b16 %v1971
    %v2166 = vunpack.c.l.b16 %v1972
    %v2167 = vunpack.c.h.b16 %v1972
    %v2168 = vunpack.c.l.b16 %v1973
    %v2169 = vunpack.c.h.b16 %v1973
    %v2170 = vunpack.c.l.b16 %v1974
    %v2171 = vunpack.c.h.b16 %v1974
    %v2172 = vunpack.c.l.b16 %v1975
    %v2173 = vunpack.c.h.b16 %v1975
    %v2174 = vunpack.c.l.b16 %v1976
    %v2175 = vunpack.c.h.b16 %v1976
    %v2176 = vunpack.c.l.b16 %v1977
    %v2177 = vunpack.c.h.b16 %v1977
    %v2178 = vunpack.c.l.b16 %v1978
    %v2179 = vunpack.c.h.b16 %v1978
    %v2180 = vunpack.c.l.b16 %v1979
    %v2181 = vunpack.c.h.b16 %v1979
    %v2182 = vunpack.c.l.b16 %v1980
    %v2183 = vunpack.c.h.b16 %v1980
    %v2184 = vunpack.c.l.b16 %v1981
    %v2185 = vunpack.c.h.b16 %v1981
    %v2186 = vpack.c.b16 %v2060, %v2058
    %v2187 = vpack.c.b16 %v2061, %v2059
    %v2188 = vpack.c.b16 %v2064, %v2062
    %v2189 = vpack.c.b16 %v2065, %v2063
    %v2190 = vpack.c.b16 %v2068, %v2066
    %v2191 = vpack.c.b16 %v2069, %v2067
    %v2192 = vpack.c.b16 %v2072, %v2070
    %v2193 = vpack.c.b16 %v2073, %v2071
    %v2194 = vpack.c.b16 %v2076, %v2074
    %v2195 = vpack.c.b16 %v2077, %v2075
    %v2196 = vpack.c.b16 %v2080, %v2078
    %v2197 = vpack.c.b16 %v2081, %v2079
    %v2198 = vpack.c.b16 %v2084, %v2082
    %v2199 = vpack.c.b16 %v2085, %v2083
    %v2200 = vpack.c.b16 %v2088, %v2086
    %v2201 = vpack.c.b16 %v2089, %v2087
    %v2202 = vpack.c.b16 %v2092, %v2090
    %v2203 = vpack.c.b16 %v2093, %v2091
    %v2204 = vpack.c.b16 %v2096, %v2094
    %v2205 = vpack.c.b16 %v2097, %v2095
    %v2206 = vpack.c.b16 %v2100, %v2098
    %v2207 = vpack.c.b16 %v2101, %v2099
    %v2208 = vpack.c.b16 %v2104, %v2102
    %v2209 = vpack.c.b16 %v2105, %v2103
    %v2210 = vpack.c.b16 %v2108, %v2106
    %v2211 = vpack.c.b16 %v2109, %v2107
    %v2212 = vpack.c.b16 %v2112, %v2110
    %v2213 = vpack.c.b16 %v2113, %v2111
    %v2214 = vpack.c.b16 %v2116, %v2114
    %v2215 = vpack.c.b16 %v2117, %v2115
    %v2216 = vpack.c.b16 %v2120, %v2118
    %v2217 = vpack.c.b16 %v2121, %v2119
    %v2218 = vpack.c.b16 %v2124, %v2122
    %v2219 = vpack.c.b16 %v2125, %v2123
    %v2220 = vpack.c.b16 %v2128, %v2126
    %v2221 = vpack.c.b16 %v2129, %v2127
    %v2222 = vpack.c.b16 %v2132, %v2130
    %v2223 = vpack.c.b16 %v2133, %v2131
    %v2224 = vpack.c.b16 %v2136, %v2134
    %v2225 = vpack.c.b16 %v2137, %v2135
    %v2226 = vpack.c.b16 %v2140, %v2138
    %v2227 = vpack.c.b16 %v2141, %v2139
    %v2228 = vpack.c.b16 %v2144, %v2142
    %v2229 = vpack.c.b16 %v2145, %v2143
    %v2230 = vpack.c.b16 %v2148, %v2146
    %v2231 = vpack.c.b16 %v2149, %v2147
    %v2232 = vpack.c.b16 %v2152, %v2150
    %v2233 = vpack.c.b16 %v2153, %v2151
    %v2234 = vpack.c.b16 %v2156, %v2154
    %v2235 = vpack.c.b16 %v2157, %v2155
    %v2236 = vpack.c.b16 %v2160, %v2158
    %v2237 = vpack.c.b16 %v2161, %v2159
    %v2238 = vpack.c.b16 %v2164, %v2162
    %v2239 = vpack.c.b16 %v2165, %v2163
    %v2240 = vpack.c.b16 %v2168, %v2166
    %v2241 = vpack.c.b16 %v2169, %v2167
    %v2242 = vpack.c.b16 %v2172, %v2170
    %v2243 = vpack.c.b16 %v2173, %v2171
    %v2244 = vpack.c.b16 %v2176, %v2174
    %v2245 = vpack.c.b16 %v2177, %v2175
    %v2246 = vpack.c.b16 %v2180, %v2178
    %v2247 = vpack.c.b16 %v2181, %v2179
    %v2248 = vpack.c.b16 %v2184, %v2182
    %v2249 = vpack.c.b16 %v2185, %v2183
    %2314 = vmatprep.subr.bf16.mxu0 %v2187
    %2315 = vmatpush1.bf16.msra.mxu0 %v2186
    %2316 = vmatprep.subr.bf16.mxu0 %v2189
    %2317 = vmatpush1.bf16.msra.mxu0 %v2188
    %2318 = vmatprep.subr.bf16.mxu0 %v2191
    %2319 = vmatpush1.bf16.msra.mxu0 %v2190
    %2320 = vmatprep.subr.bf16.mxu0 %v2193
    %2321 = vmatpush1.bf16.msra.mxu0 %v2192
    %2322 = vmatprep.subr.bf16.mxu0 %v2195
    %2323 = vmatpush1.bf16.msra.mxu0 %v2194
    %2324 = vmatprep.subr.bf16.mxu0 %v2197
    %2325 = vmatpush1.bf16.msra.mxu0 %v2196
    %2326 = vmatprep.subr.bf16.mxu0 %v2199
    %2327 = vmatpush1.bf16.msra.mxu0 %v2198
    %2328 = vmatprep.subr.bf16.mxu0 %v2201
    %2329 = vmatpush1.bf16.msra.mxu0 %v2200
    %2330 = vmatprep.subr.bf16.mxu0 %v2203
    %2331 = vmatpush1.bf16.msra.mxu0 %v2202
    %2332 = vmatprep.subr.bf16.mxu0 %v2205
    %2333 = vmatpush1.bf16.msra.mxu0 %v2204
    %2334 = vmatprep.subr.bf16.mxu0 %v2207
    %2335 = vmatpush1.bf16.msra.mxu0 %v2206
    %2336 = vmatprep.subr.bf16.mxu0 %v2209
    %2337 = vmatpush1.bf16.msra.mxu0 %v2208
    %2338 = vmatprep.subr.bf16.mxu0 %v2211
    %2339 = vmatpush1.bf16.msra.mxu0 %v2210
    %2340 = vmatprep.subr.bf16.mxu0 %v2213
    %2341 = vmatpush1.bf16.msra.mxu0 %v2212
    %2342 = vmatprep.subr.bf16.mxu0 %v2215
    %2343 = vmatpush1.bf16.msra.mxu0 %v2214
    %2344 = vmatprep.subr.bf16.mxu0 %v2217
    %2345 = vmatpush1.bf16.msra.mxu0 %v2216
    %2346 = vmatprep.mubr.bf16.mxu0 %v1915
    %2347 = vmatmul.mubr.bf16.gmra.mrb[0].mxu0 %v1914
    %v2348 = vpop.f32.mrb[0].mxu0
    %v2349 = vadd.f32 %v1987, %v2348
    %v2350 = vpop.f32.mrb[0].mxu0
    %v2351 = vadd.f32 %v1991, %v2350
    %v2352 = vpop.f32.mrb[0].mxu0
    %v2353 = vadd.f32 %v1987, %v2352
    %v2354 = vpop.f32.mrb[0].mxu0
    %v2355 = vadd.f32 %v1991, %v2354
    %2356 = vdwg.mxu0
    %2357 = vmatprep.subr.bf16.mxu0 %v2219
    %2358 = vmatpush1.bf16.msra.mxu0 %v2218
    %2359 = vmatprep.subr.bf16.mxu0 %v2221
    %2360 = vmatpush1.bf16.msra.mxu0 %v2220
    %2361 = vmatprep.subr.bf16.mxu0 %v2223
    %2362 = vmatpush1.bf16.msra.mxu0 %v2222
    %2363 = vmatprep.subr.bf16.mxu0 %v2225
    %2364 = vmatpush1.bf16.msra.mxu0 %v2224
    %2365 = vmatprep.subr.bf16.mxu0 %v2227
    %2366 = vmatpush1.bf16.msra.mxu0 %v2226
    %2367 = vmatprep.subr.bf16.mxu0 %v2229
    %2368 = vmatpush1.bf16.msra.mxu0 %v2228
    %2369 = vmatprep.subr.bf16.mxu0 %v2231
    %2370 = vmatpush1.bf16.msra.mxu0 %v2230
    %2371 = vmatprep.subr.bf16.mxu0 %v2233
    %2372 = vmatpush1.bf16.msra.mxu0 %v2232
    %2373 = vmatprep.subr.bf16.mxu0 %v2235
    %2374 = vmatpush1.bf16.msra.mxu0 %v2234
    %2375 = vmatprep.subr.bf16.mxu0 %v2237
    %2376 = vmatpush1.bf16.msra.mxu0 %v2236
    %2377 = vmatprep.subr.bf16.mxu0 %v2239
    %2378 = vmatpush1.bf16.msra.mxu0 %v2238
    %2379 = vmatprep.subr.bf16.mxu0 %v2241
    %2380 = vmatpush1.bf16.msra.mxu0 %v2240
    %2381 = vmatprep.subr.bf16.mxu0 %v2243
    %2382 = vmatpush1.bf16.msra.mxu0 %v2242
    %2383 = vmatprep.subr.bf16.mxu0 %v2245
    %2384 = vmatpush1.bf16.msra.mxu0 %v2244
    %2385 = vmatprep.subr.bf16.mxu0 %v2247
    %2386 = vmatpush1.bf16.msra.mxu0 %v2246
    %2387 = vmatprep.subr.bf16.mxu0 %v2249
    %2388 = vmatpush1.bf16.msra.mxu0 %v2248
    %2389 = vmatprep.mubr.bf16.mxu0 %v1917
    %2390 = vmatmul.mubr.bf16.gmra.mrb[0].mxu0 %v1916
    %v2391 = vpop.f32.mrb[0].mxu0
    %v2392 = vadd.f32 %v2349, %v2391
    %v2393 = vpop.f32.mrb[0].mxu0
    %v2394 = vadd.f32 %v2351, %v2393
    %v2395 = vpop.f32.mrb[0].mxu0
    %v2396 = vadd.f32 %v2353, %v2395
    %v2397 = vpop.f32.mrb[0].mxu0
    %v2398 = vadd.f32 %v2355, %v2397
    %2399 = vdwg.mxu0
    %v2400 = vmax.f32 %v2392, 0.0
    %v2401 = vmax.f32 %v2394, 0.0
    %v2402 = vmax.f32 %v2396, 0.0
    %v2403 = vmax.f32 %v2398, 0.0
    %v2404 = vpack.c.bf16 %v2402, %v2400
    %v2405 = vpack.c.bf16 %v2403, %v2401
    %v2406 = vld [vmem:[#allocation8] sm:$0xf]
    %v2407 = vld [vmem:[#allocation8 + $0x4] sm:$0xf]
    %v2408 = vld [vmem:[#allocation8 + $0x8] sm:$0xf]
    %v2409 = vld [vmem:[#allocation8 + $0xc] sm:$0xf]
    %v2410 = vld [vmem:[#allocation8 + $0x10] sm:$0xf]
    %v2411 = vld [vmem:[#allocation8 + $0x14] sm:$0xf]
    %v2412 = vld [vmem:[#allocation8 + $0x18] sm:$0xf]
    %v2413 = vld [vmem:[#allocation8 + $0x1c] sm:$0xf]
    %v2414 = vld [vmem:[#allocation8 + $0x20] sm:$0xf]
    %v2415 = vld [vmem:[#allocation8 + $0x24] sm:$0xf]
    %v2416 = vld [vmem:[#allocation8 + $0x28] sm:$0xf]
    %v2417 = vld [vmem:[#allocation8 + $0x2c] sm:$0xf]
    %v2418 = vld [vmem:[#allocation8 + $0x30] sm:$0xf]
    %v2419 = vld [vmem:[#allocation8 + $0x34] sm:$0xf]
    %v2420 = vld [vmem:[#allocation8 + $0x38] sm:$0xf]
    %v2421 = vld [vmem:[#allocation8 + $0x3c] sm:$0xf]
    %v2422 = vld [vmem:[#allocation8 + $0x40] sm:$0xf]
    %v2423 = vld [vmem:[#allocation8 + $0x44] sm:$0xf]
    %v2424 = vld [vmem:[#allocation8 + $0x48] sm:$0xf]
    %v2425 = vld [vmem:[#allocation8 + $0x4c] sm:$0xf]
    %v2426 = vld [vmem:[#allocation8 + $0x50] sm:$0xf]
    %v2427 = vld [vmem:[#allocation8 + $0x54] sm:$0xf]
    %v2428 = vld [vmem:[#allocation8 + $0x58] sm:$0xf]
    %v2429 = vld [vmem:[#allocation8 + $0x5c] sm:$0xf]
    %v2430 = vld [vmem:[#allocation8 + $0x60] sm:$0xf]
    %v2431 = vld [vmem:[#allocation8 + $0x64] sm:$0xf]
    %v2432 = vld [vmem:[#allocation8 + $0x68] sm:$0xf]
    %v2433 = vld [vmem:[#allocation8 + $0x6c] sm:$0xf]
    %v2434 = vld [vmem:[#allocation8 + $0x70] sm:$0xf]
    %v2435 = vld [vmem:[#allocation8 + $0x74] sm:$0xf]
    %v2436 = vld [vmem:[#allocation8 + $0x78] sm:$0xf]
    %v2437 = vld [vmem:[#allocation8 + $0x7c] sm:$0xf]
    %v2438 = vld [vmem:[#allocation10] sm:$0x1]
    %v2440 = vlaneseq
    %v2441 = vshrl.u32 %v2440, 7
    %v2442 = vsub.s32 0, %v2441
    %v2443 = vrot.slane %v2438, %v2442
    %v2477 = vunpack.c.l.b16 %v2406
    %v2478 = vunpack.c.l.b16 %v2407
    %v2479 = vunpack.c.l.b16 %v2408
    %v2480 = vunpack.c.l.b16 %v2409
    %v2481 = vunpack.c.l.b16 %v2410
    %v2482 = vunpack.c.l.b16 %v2411
    %v2483 = vunpack.c.l.b16 %v2412
    %v2484 = vunpack.c.l.b16 %v2413
    %v2485 = vunpack.c.l.b16 %v2414
    %v2486 = vunpack.c.l.b16 %v2415
    %v2487 = vunpack.c.l.b16 %v2416
    %v2488 = vunpack.c.l.b16 %v2417
    %v2489 = vunpack.c.l.b16 %v2418
    %v2490 = vunpack.c.l.b16 %v2419
    %v2491 = vunpack.c.l.b16 %v2420
    %v2492 = vunpack.c.l.b16 %v2421
    %v2493 = vunpack.c.l.b16 %v2422
    %v2494 = vunpack.c.l.b16 %v2423
    %v2495 = vunpack.c.l.b16 %v2424
    %v2496 = vunpack.c.l.b16 %v2425
    %v2497 = vunpack.c.l.b16 %v2426
    %v2498 = vunpack.c.l.b16 %v2427
    %v2499 = vunpack.c.l.b16 %v2428
    %v2500 = vunpack.c.l.b16 %v2429
    %v2501 = vunpack.c.l.b16 %v2430
    %v2502 = vunpack.c.l.b16 %v2431
    %v2503 = vunpack.c.l.b16 %v2432
    %v2504 = vunpack.c.l.b16 %v2433
    %v2505 = vunpack.c.l.b16 %v2434
    %v2506 = vunpack.c.l.b16 %v2435
    %v2507 = vunpack.c.l.b16 %v2436
    %v2508 = vunpack.c.l.b16 %v2437
    %v2509 = vpack.c.b16 %v2478, %v2477
    %v2510 = vpack.c.b16 %v2480, %v2479
    %v2511 = vpack.c.b16 %v2482, %v2481
    %v2512 = vpack.c.b16 %v2484, %v2483
    %v2513 = vpack.c.b16 %v2486, %v2485
    %v2514 = vpack.c.b16 %v2488, %v2487
    %v2515 = vpack.c.b16 %v2490, %v2489
    %v2516 = vpack.c.b16 %v2492, %v2491
    %v2517 = vpack.c.b16 %v2494, %v2493
    %v2518 = vpack.c.b16 %v2496, %v2495
    %v2519 = vpack.c.b16 %v2498, %v2497
    %v2520 = vpack.c.b16 %v2500, %v2499
    %v2521 = vpack.c.b16 %v2502, %v2501
    %v2522 = vpack.c.b16 %v2504, %v2503
    %v2523 = vpack.c.b16 %v2506, %v2505
    %v2524 = vpack.c.b16 %v2508, %v2507
    %2541 = vmatprep.subr.bf16.mxu0 0
    %2542 = vmatpush1.bf16.msra.mxu0 %v2509
    %2543 = vmatprep.subr.bf16.mxu0 0
    %2544 = vmatpush1.bf16.msra.mxu0 %v2510
    %2545 = vmatprep.subr.bf16.mxu0 0
    %2546 = vmatpush1.bf16.msra.mxu0 %v2511
    %2547 = vmatprep.subr.bf16.mxu0 0
    %2548 = vmatpush1.bf16.msra.mxu0 %v2512
    %2549 = vmatprep.subr.bf16.mxu0 0
    %2550 = vmatpush1.bf16.msra.mxu0 %v2513
    %2551 = vmatprep.subr.bf16.mxu0 0
    %2552 = vmatpush1.bf16.msra.mxu0 %v2514
    %2553 = vmatprep.subr.bf16.mxu0 0
    %2554 = vmatpush1.bf16.msra.mxu0 %v2515
    %2555 = vmatprep.subr.bf16.mxu0 0
    %2556 = vmatpush1.bf16.msra.mxu0 %v2516
    %2557 = vmatprep.subr.bf16.mxu0 0
    %2558 = vmatpush1.bf16.msra.mxu0 %v2517
    %2559 = vmatprep.subr.bf16.mxu0 0
    %2560 = vmatpush1.bf16.msra.mxu0 %v2518
    %2561 = vmatprep.subr.bf16.mxu0 0
    %2562 = vmatpush1.bf16.msra.mxu0 %v2519
    %2563 = vmatprep.subr.bf16.mxu0 0
    %2564 = vmatpush1.bf16.msra.mxu0 %v2520
    %2565 = vmatprep.subr.bf16.mxu0 0
    %2566 = vmatpush1.bf16.msra.mxu0 %v2521
    %2567 = vmatprep.subr.bf16.mxu0 0
    %2568 = vmatpush1.bf16.msra.mxu0 %v2522
    %2569 = vmatprep.subr.bf16.mxu0 0
    %2570 = vmatpush1.bf16.msra.mxu0 %v2523
    %2571 = vmatprep.subr.bf16.mxu0 0
    %2572 = vmatpush1.bf16.msra.mxu0 %v2524
    %2573 = vmatprep.mubr.bf16.mxu0 %v2405
    %2574 = vmatmul.mubr.bf16.gmra.mrb[0].mxu0 %v2404
    %v2575 = vpop.f32.mrb[0].mxu0
    %v2576 = vadd.f32 %v2443, %v2575
    %v2577 = vpop.f32.mrb[0].mxu0
    %v2578 = vpop.f32.mrb[0].mxu0
    %v2579 = vadd.f32 %v2443, %v2578
    %v2580 = vpop.f32.mrb[0].mxu0
    %2581 = vdwg.mxu0
    %2582 = vst [vmem:[%s15] sm:$0xff] %v2576
    %2583 = vst [vmem:[%s15 + $0x8] sm:$0xff] %v2579
    %v2584 = vld [vmem:[%s1] sm:$0xff]
    %v2585 = vld [vmem:[%s1 + $0x8] sm:$0xff]
    %v2586 = vmul.f32 %v2576, 0.5
    %v2587 = vmul.f32 %v2579, 0.5
    %v2588 = vmul.f32 %v2586, 1.442695
    %v2589 = vpow.pop %v2588
    %v2590 = vmul.f32 %v2587, 1.442695
    %v2591 = vpow.pop %v2590
    %2594 = vrot.lane.b32.xlu0 %v2589, 96
    %v2595 = vpop.permute.xlu0 %2594
    %2596 = vrot.lane.b32.xlu0 %v2591, 96
    %v2597 = vpop.permute.xlu0 %2596
    %v2600 = vmul.f32 %v2584, %v2595
    %v2601 = vmul.f32 %v2585, %v2597
    %v2602 = vadd.f32 %v2600, %v2576
    %v2603 = vadd.f32 %v2601, %v2579
    %v2604 = vpack.c.bf16 %v2603, %v2602
    %v2605 = vld [vmem:[%s8] sm:$0xff]
    %v2606 = vld [vmem:[%s8 + $0x8] sm:$0xff]
    %v2607 = vld [vmem:[%s8 + $0x10] sm:$0xff]
    %v2608 = vld [vmem:[%s8 + $0x18] sm:$0xff]
    %v2609 = vld [vmem:[#allocation11] sm:$0x3]
    %v2611 = vlaneseq
    %v2612 = vshrl.u32 %v2611, 7
    %v2613 = vsub.s32 0, %v2612
    %v2614 = vrot.slane %v2609, %v2613
    %v2615 = vlaneseq
    %v2616 = vshrl.u32 %v2615, 7
    %v2617 = vsub.s32 1, %v2616
    %v2618 = vrot.slane %v2609, %v2617
    %v2625 = vunpack.c.l.b16 %v2605
    %v2626 = vunpack.c.h.b16 %v2605
    %v2627 = vunpack.c.l.b16 %v2606
    %v2628 = vunpack.c.h.b16 %v2606
    %v2629 = vunpack.c.l.b16 %v2607
    %v2630 = vunpack.c.h.b16 %v2607
    %v2631 = vunpack.c.l.b16 %v2608
    %v2632 = vunpack.c.h.b16 %v2608
    %v2633 = vpack.c.b16 %v2627, %v2625
    %v2634 = vpack.c.b16 %v2628, %v2626
    %v2635 = vpack.c.b16 %v2631, %v2629
    %v2636 = vpack.c.b16 %v2632, %v2630
    %vm2641 = vcmask 261120
    %v2643 = vsel %vm2641, %v2604, 0
    %2645 = vmatprep.subr.bf16.mxu0 %v2634
    %2646 = vmatpush1.bf16.msra.mxu0 %v2633
    %2647 = vmatprep.subr.bf16.mxu0 %v2636
    %2648 = vmatpush1.bf16.msra.mxu0 %v2635
    %2649 = vmatprep.subr.bf16.mxu0 0
    %2650 = vmatpush1.bf16.msra.mxu0 0
    %2651 = vmatprep.subr.bf16.mxu0 0
    %2652 = vmatpush1.bf16.msra.mxu0 0
    %2653 = vmatprep.subr.bf16.mxu0 0
    %2654 = vmatpush1.bf16.msra.mxu0 0
    %2655 = vmatprep.subr.bf16.mxu0 0
    %2656 = vmatpush1.bf16.msra.mxu0 0
    %2657 = vmatprep.subr.bf16.mxu0 0
    %2658 = vmatpush1.bf16.msra.mxu0 0
    %2659 = vmatprep.subr.bf16.mxu0 0
    %2660 = vmatpush1.bf16.msra.mxu0 0
    %2661 = vmatprep.subr.bf16.mxu0 0
    %2662 = vmatpush1.bf16.msra.mxu0 0
    %2663 = vmatprep.subr.bf16.mxu0 0
    %2664 = vmatpush1.bf16.msra.mxu0 0
    %2665 = vmatprep.subr.bf16.mxu0 0
    %2666 = vmatpush1.bf16.msra.mxu0 0
    %2667 = vmatprep.subr.bf16.mxu0 0
    %2668 = vmatpush1.bf16.msra.mxu0 0
    %2669 = vmatprep.subr.bf16.mxu0 0
    %2670 = vmatpush1.bf16.msra.mxu0 0
    %2671 = vmatprep.subr.bf16.mxu0 0
    %2672 = vmatpush1.bf16.msra.mxu0 0
    %2673 = vmatprep.subr.bf16.mxu0 0
    %2674 = vmatpush1.bf16.msra.mxu0 0
    %2675 = vmatprep.subr.bf16.mxu0 0
    %2676 = vmatpush1.bf16.msra.mxu0 0
    %2677 = vmatprep.mubr.bf16.mxu0 0
    %2678 = vmatmul.mubr.bf16.gmra.mrb[0].mxu0 %v2643
    %v2679 = vpop.f32.mrb[0].mxu0
    %v2680 = vadd.f32 %v2614, %v2679
    %v2681 = vpop.f32.mrb[0].mxu0
    %v2682 = vadd.f32 %v2618, %v2681
    %v2683 = vpop.f32.mrb[0].mxu0
    %v2684 = vadd.f32 %v2614, %v2683
    %v2685 = vpop.f32.mrb[0].mxu0
    %v2686 = vadd.f32 %v2618, %v2685
    %2687 = vdwg.mxu0
    %v2688 = vmax.f32 %v2680, 0.0
    %v2689 = vmax.f32 %v2682, 0.0
    %v2690 = vmax.f32 %v2684, 0.0
    %v2691 = vmax.f32 %v2686, 0.0
    %v2692 = vpack.c.bf16 %v2690, %v2688
    %v2693 = vpack.c.bf16 %v2691, %v2689
    %v2694 = vld [vmem:[#allocation13] sm:$0xff]
    %v2695 = vld [vmem:[#allocation13 + $0x8] sm:$0xff]
    %v2696 = vld [vmem:[#allocation13 + $0x10] sm:$0xff]
    %v2697 = vld [vmem:[#allocation13 + $0x18] sm:$0xff]
    %v2698 = vld [vmem:[#allocation13 + $0x20] sm:$0xff]
    %v2699 = vld [vmem:[#allocation13 + $0x28] sm:$0xff]
    %v2700 = vld [vmem:[#allocation13 + $0x30] sm:$0xff]
    %v2701 = vld [vmem:[#allocation13 + $0x38] sm:$0xff]
    %v2702 = vld [vmem:[#allocation13 + $0x40] sm:$0xff]
    %v2703 = vld [vmem:[#allocation13 + $0x48] sm:$0xff]
    %v2704 = vld [vmem:[#allocation13 + $0x50] sm:$0xff]
    %v2705 = vld [vmem:[#allocation13 + $0x58] sm:$0xff]
    %v2706 = vld [vmem:[#allocation13 + $0x60] sm:$0xff]
    %v2707 = vld [vmem:[#allocation13 + $0x68] sm:$0xff]
    %v2708 = vld [vmem:[#allocation13 + $0x70] sm:$0xff]
    %v2709 = vld [vmem:[#allocation13 + $0x78] sm:$0xff]
    %v2710 = vld [vmem:[#allocation13 + $0x80] sm:$0xff]
    %v2711 = vld [vmem:[#allocation13 + $0x88] sm:$0xff]
    %v2712 = vld [vmem:[#allocation13 + $0x90] sm:$0xff]
    %v2713 = vld [vmem:[#allocation13 + $0x98] sm:$0xff]
    %v2714 = vld [vmem:[#allocation13 + $0xa0] sm:$0xff]
    %v2715 = vld [vmem:[#allocation13 + $0xa8] sm:$0xff]
    %v2716 = vld [vmem:[#allocation13 + $0xb0] sm:$0xff]
    %v2717 = vld [vmem:[#allocation13 + $0xb8] sm:$0xff]
    %v2718 = vld [vmem:[#allocation13 + $0xc0] sm:$0xff]
    %v2719 = vld [vmem:[#allocation13 + $0xc8] sm:$0xff]
    %v2720 = vld [vmem:[#allocation13 + $0xd0] sm:$0xff]
    %v2721 = vld [vmem:[#allocation13 + $0xd8] sm:$0xff]
    %v2722 = vld [vmem:[#allocation13 + $0xe0] sm:$0xff]
    %v2723 = vld [vmem:[#allocation13 + $0xe8] sm:$0xff]
    %v2724 = vld [vmem:[#allocation13 + $0xf0] sm:$0xff]
    %v2725 = vld [vmem:[#allocation13 + $0xf8] sm:$0xff]
    %v2726 = vld [vmem:[#allocation13 + $0x100] sm:$0xff]
    %v2727 = vld [vmem:[#allocation13 + $0x108] sm:$0xff]
    %v2728 = vld [vmem:[#allocation13 + $0x110] sm:$0xff]
    %v2729 = vld [vmem:[#allocation13 + $0x118] sm:$0xff]
    %v2730 = vld [vmem:[#allocation13 + $0x120] sm:$0xff]
    %v2731 = vld [vmem:[#allocation13 + $0x128] sm:$0xff]
    %v2732 = vld [vmem:[#allocation13 + $0x130] sm:$0xff]
    %v2733 = vld [vmem:[#allocation13 + $0x138] sm:$0xff]
    %v2734 = vld [vmem:[#allocation13 + $0x140] sm:$0xff]
    %v2735 = vld [vmem:[#allocation13 + $0x148] sm:$0xff]
    %v2736 = vld [vmem:[#allocation13 + $0x150] sm:$0xff]
    %v2737 = vld [vmem:[#allocation13 + $0x158] sm:$0xff]
    %v2738 = vld [vmem:[#allocation13 + $0x160] sm:$0xff]
    %v2739 = vld [vmem:[#allocation13 + $0x168] sm:$0xff]
    %v2740 = vld [vmem:[#allocation13 + $0x170] sm:$0xff]
    %v2741 = vld [vmem:[#allocation13 + $0x178] sm:$0xff]
    %v2742 = vld [vmem:[#allocation13 + $0x180] sm:$0xff]
    %v2743 = vld [vmem:[#allocation13 + $0x188] sm:$0xff]
    %v2744 = vld [vmem:[#allocation13 + $0x190] sm:$0xff]
    %v2745 = vld [vmem:[#allocation13 + $0x198] sm:$0xff]
    %v2746 = vld [vmem:[#allocation13 + $0x1a0] sm:$0xff]
    %v2747 = vld [vmem:[#allocation13 + $0x1a8] sm:$0xff]
    %v2748 = vld [vmem:[#allocation13 + $0x1b0] sm:$0xff]
    %v2749 = vld [vmem:[#allocation13 + $0x1b8] sm:$0xff]
    %v2750 = vld [vmem:[#allocation13 + $0x1c0] sm:$0xff]
    %v2751 = vld [vmem:[#allocation13 + $0x1c8] sm:$0xff]
    %v2752 = vld [vmem:[#allocation13 + $0x1d0] sm:$0xff]
    %v2753 = vld [vmem:[#allocation13 + $0x1d8] sm:$0xff]
    %v2754 = vld [vmem:[#allocation13 + $0x1e0] sm:$0xff]
    %v2755 = vld [vmem:[#allocation13 + $0x1e8] sm:$0xff]
    %v2756 = vld [vmem:[#allocation13 + $0x1f0] sm:$0xff]
    %v2757 = vld [vmem:[#allocation13 + $0x1f8] sm:$0xff]
    %v2758 = vld [vmem:[#allocation14] sm:$0xf]
    %v2760 = vlaneseq
    %v2761 = vshrl.u32 %v2760, 7
    %v2762 = vsub.s32 0, %v2761
    %v2763 = vrot.slane %v2758, %v2762
    %v2764 = vlaneseq
    %v2765 = vshrl.u32 %v2764, 7
    %v2766 = vsub.s32 1, %v2765
    %v2767 = vrot.slane %v2758, %v2766
    %v2768 = vlaneseq
    %v2769 = vshrl.u32 %v2768, 7
    %v2770 = vsub.s32 2, %v2769
    %v2771 = vrot.slane %v2758, %v2770
    %v2772 = vlaneseq
    %v2773 = vshrl.u32 %v2772, 7
    %v2774 = vsub.s32 3, %v2773
    %v2775 = vrot.slane %v2758, %v2774
    %v2844 = vunpack.c.l.b16 %v2694
    %v2845 = vunpack.c.h.b16 %v2694
    %v2846 = vunpack.c.l.b16 %v2695
    %v2847 = vunpack.c.h.b16 %v2695
    %v2848 = vunpack.c.l.b16 %v2696
    %v2849 = vunpack.c.h.b16 %v2696
    %v2850 = vunpack.c.l.b16 %v2697
    %v2851 = vunpack.c.h.b16 %v2697
    %v2852 = vunpack.c.l.b16 %v2698
    %v2853 = vunpack.c.h.b16 %v2698
    %v2854 = vunpack.c.l.b16 %v2699
    %v2855 = vunpack.c.h.b16 %v2699
    %v2856 = vunpack.c.l.b16 %v2700
    %v2857 = vunpack.c.h.b16 %v2700
    %v2858 = vunpack.c.l.b16 %v2701
    %v2859 = vunpack.c.h.b16 %v2701
    %v2860 = vunpack.c.l.b16 %v2702
    %v2861 = vunpack.c.h.b16 %v2702
    %v2862 = vunpack.c.l.b16 %v2703
    %v2863 = vunpack.c.h.b16 %v2703
    %v2864 = vunpack.c.l.b16 %v2704
    %v2865 = vunpack.c.h.b16 %v2704
    %v2866 = vunpack.c.l.b16 %v2705
    %v2867 = vunpack.c.h.b16 %v2705
    %v2868 = vunpack.c.l.b16 %v2706
    %v2869 = vunpack.c.h.b16 %v2706
    %v2870 = vunpack.c.l.b16 %v2707
    %v2871 = vunpack.c.h.b16 %v2707
    %v2872 = vunpack.c.l.b16 %v2708
    %v2873 = vunpack.c.h.b16 %v2708
    %v2874 = vunpack.c.l.b16 %v2709
    %v2875 = vunpack.c.h.b16 %v2709
    %v2876 = vunpack.c.l.b16 %v2710
    %v2877 = vunpack.c.h.b16 %v2710
    %v2878 = vunpack.c.l.b16 %v2711
    %v2879 = vunpack.c.h.b16 %v2711
    %v2880 = vunpack.c.l.b16 %v2712
    %v2881 = vunpack.c.h.b16 %v2712
    %v2882 = vunpack.c.l.b16 %v2713
    %v2883 = vunpack.c.h.b16 %v2713
    %v2884 = vunpack.c.l.b16 %v2714
    %v2885 = vunpack.c.h.b16 %v2714
    %v2886 = vunpack.c.l.b16 %v2715
    %v2887 = vunpack.c.h.b16 %v2715
    %v2888 = vunpack.c.l.b16 %v2716
    %v2889 = vunpack.c.h.b16 %v2716
    %v2890 = vunpack.c.l.b16 %v2717
    %v2891 = vunpack.c.h.b16 %v2717
    %v2892 = vunpack.c.l.b16 %v2718
    %v2893 = vunpack.c.h.b16 %v2718
    %v2894 = vunpack.c.l.b16 %v2719
    %v2895 = vunpack.c.h.b16 %v2719
    %v2896 = vunpack.c.l.b16 %v2720
    %v2897 = vunpack.c.h.b16 %v2720
    %v2898 = vunpack.c.l.b16 %v2721
    %v2899 = vunpack.c.h.b16 %v2721
    %v2900 = vunpack.c.l.b16 %v2722
    %v2901 = vunpack.c.h.b16 %v2722
    %v2902 = vunpack.c.l.b16 %v2723
    %v2903 = vunpack.c.h.b16 %v2723
    %v2904 = vunpack.c.l.b16 %v2724
    %v2905 = vunpack.c.h.b16 %v2724
    %v2906 = vunpack.c.l.b16 %v2725
    %v2907 = vunpack.c.h.b16 %v2725
    %v2908 = vunpack.c.l.b16 %v2726
    %v2909 = vunpack.c.h.b16 %v2726
    %v2910 = vunpack.c.l.b16 %v2727
    %v2911 = vunpack.c.h.b16 %v2727
    %v2912 = vunpack.c.l.b16 %v2728
    %v2913 = vunpack.c.h.b16 %v2728
    %v2914 = vunpack.c.l.b16 %v2729
    %v2915 = vunpack.c.h.b16 %v2729
    %v2916 = vunpack.c.l.b16 %v2730
    %v2917 = vunpack.c.h.b16 %v2730
    %v2918 = vunpack.c.l.b16 %v2731
    %v2919 = vunpack.c.h.b16 %v2731
    %v2920 = vunpack.c.l.b16 %v2732
    %v2921 = vunpack.c.h.b16 %v2732
    %v2922 = vunpack.c.l.b16 %v2733
    %v2923 = vunpack.c.h.b16 %v2733
    %v2924 = vunpack.c.l.b16 %v2734
    %v2925 = vunpack.c.h.b16 %v2734
    %v2926 = vunpack.c.l.b16 %v2735
    %v2927 = vunpack.c.h.b16 %v2735
    %v2928 = vunpack.c.l.b16 %v2736
    %v2929 = vunpack.c.h.b16 %v2736
    %v2930 = vunpack.c.l.b16 %v2737
    %v2931 = vunpack.c.h.b16 %v2737
    %v2932 = vunpack.c.l.b16 %v2738
    %v2933 = vunpack.c.h.b16 %v2738
    %v2934 = vunpack.c.l.b16 %v2739
    %v2935 = vunpack.c.h.b16 %v2739
    %v2936 = vunpack.c.l.b16 %v2740
    %v2937 = vunpack.c.h.b16 %v2740
    %v2938 = vunpack.c.l.b16 %v2741
    %v2939 = vunpack.c.h.b16 %v2741
    %v2940 = vunpack.c.l.b16 %v2742
    %v2941 = vunpack.c.h.b16 %v2742
    %v2942 = vunpack.c.l.b16 %v2743
    %v2943 = vunpack.c.h.b16 %v2743
    %v2944 = vunpack.c.l.b16 %v2744
    %v2945 = vunpack.c.h.b16 %v2744
    %v2946 = vunpack.c.l.b16 %v2745
    %v2947 = vunpack.c.h.b16 %v2745
    %v2948 = vunpack.c.l.b16 %v2746
    %v2949 = vunpack.c.h.b16 %v2746
    %v2950 = vunpack.c.l.b16 %v2747
    %v2951 = vunpack.c.h.b16 %v2747
    %v2952 = vunpack.c.l.b16 %v2748
    %v2953 = vunpack.c.h.b16 %v2748
    %v2954 = vunpack.c.l.b16 %v2749
    %v2955 = vunpack.c.h.b16 %v2749
    %v2956 = vunpack.c.l.b16 %v2750
    %v2957 = vunpack.c.h.b16 %v2750
    %v2958 = vunpack.c.l.b16 %v2751
    %v2959 = vunpack.c.h.b16 %v2751
    %v2960 = vunpack.c.l.b16 %v2752
    %v2961 = vunpack.c.h.b16 %v2752
    %v2962 = vunpack.c.l.b16 %v2753
    %v2963 = vunpack.c.h.b16 %v2753
    %v2964 = vunpack.c.l.b16 %v2754
    %v2965 = vunpack.c.h.b16 %v2754
    %v2966 = vunpack.c.l.b16 %v2755
    %v2967 = vunpack.c.h.b16 %v2755
    %v2968 = vunpack.c.l.b16 %v2756
    %v2969 = vunpack.c.h.b16 %v2756
    %v2970 = vunpack.c.l.b16 %v2757
    %v2971 = vunpack.c.h.b16 %v2757
    %v2972 = vpack.c.b16 %v2848, %v2844
    %v2973 = vpack.c.b16 %v2849, %v2845
    %v2974 = vpack.c.b16 %v2850, %v2846
    %v2975 = vpack.c.b16 %v2851, %v2847
    %v2976 = vpack.c.b16 %v2856, %v2852
    %v2977 = vpack.c.b16 %v2857, %v2853
    %v2978 = vpack.c.b16 %v2858, %v2854
    %v2979 = vpack.c.b16 %v2859, %v2855
    %v2980 = vpack.c.b16 %v2864, %v2860
    %v2981 = vpack.c.b16 %v2865, %v2861
    %v2982 = vpack.c.b16 %v2866, %v2862
    %v2983 = vpack.c.b16 %v2867, %v2863
    %v2984 = vpack.c.b16 %v2872, %v2868
    %v2985 = vpack.c.b16 %v2873, %v2869
    %v2986 = vpack.c.b16 %v2874, %v2870
    %v2987 = vpack.c.b16 %v2875, %v2871
    %v2988 = vpack.c.b16 %v2880, %v2876
    %v2989 = vpack.c.b16 %v2881, %v2877
    %v2990 = vpack.c.b16 %v2882, %v2878
    %v2991 = vpack.c.b16 %v2883, %v2879
    %v2992 = vpack.c.b16 %v2888, %v2884
    %v2993 = vpack.c.b16 %v2889, %v2885
    %v2994 = vpack.c.b16 %v2890, %v2886
    %v2995 = vpack.c.b16 %v2891, %v2887
    %v2996 = vpack.c.b16 %v2896, %v2892
    %v2997 = vpack.c.b16 %v2897, %v2893
    %v2998 = vpack.c.b16 %v2898, %v2894
    %v2999 = vpack.c.b16 %v2899, %v2895
    %v3000 = vpack.c.b16 %v2904, %v2900
    %v3001 = vpack.c.b16 %v2905, %v2901
    %v3002 = vpack.c.b16 %v2906, %v2902
    %v3003 = vpack.c.b16 %v2907, %v2903
    %v3004 = vpack.c.b16 %v2912, %v2908
    %v3005 = vpack.c.b16 %v2913, %v2909
    %v3006 = vpack.c.b16 %v2914, %v2910
    %v3007 = vpack.c.b16 %v2915, %v2911
    %v3008 = vpack.c.b16 %v2920, %v2916
    %v3009 = vpack.c.b16 %v2921, %v2917
    %v3010 = vpack.c.b16 %v2922, %v2918
    %v3011 = vpack.c.b16 %v2923, %v2919
    %v3012 = vpack.c.b16 %v2928, %v2924
    %v3013 = vpack.c.b16 %v2929, %v2925
    %v3014 = vpack.c.b16 %v2930, %v2926
    %v3015 = vpack.c.b16 %v2931, %v2927
    %v3016 = vpack.c.b16 %v2936, %v2932
    %v3017 = vpack.c.b16 %v2937, %v2933
    %v3018 = vpack.c.b16 %v2938, %v2934
    %v3019 = vpack.c.b16 %v2939, %v2935
    %v3020 = vpack.c.b16 %v2944, %v2940
    %v3021 = vpack.c.b16 %v2945, %v2941
    %v3022 = vpack.c.b16 %v2946, %v2942
    %v3023 = vpack.c.b16 %v2947, %v2943
    %v3024 = vpack.c.b16 %v2952, %v2948
    %v3025 = vpack.c.b16 %v2953, %v2949
    %v3026 = vpack.c.b16 %v2954, %v2950
    %v3027 = vpack.c.b16 %v2955, %v2951
    %v3028 = vpack.c.b16 %v2960, %v2956
    %v3029 = vpack.c.b16 %v2961, %v2957
    %v3030 = vpack.c.b16 %v2962, %v2958
    %v3031 = vpack.c.b16 %v2963, %v2959
    %v3032 = vpack.c.b16 %v2968, %v2964
    %v3033 = vpack.c.b16 %v2969, %v2965
    %v3034 = vpack.c.b16 %v2970, %v2966
    %v3035 = vpack.c.b16 %v2971, %v2967
    %3100 = vmatprep.subr.bf16.mxu0 %v2973
    %3101 = vmatpush1.bf16.msra.mxu0 %v2972
    %3102 = vmatprep.subr.bf16.mxu0 %v2977
    %3103 = vmatpush1.bf16.msra.mxu0 %v2976
    %3104 = vmatprep.subr.bf16.mxu0 %v2981
    %3105 = vmatpush1.bf16.msra.mxu0 %v2980
    %3106 = vmatprep.subr.bf16.mxu0 %v2985
    %3107 = vmatpush1.bf16.msra.mxu0 %v2984
    %3108 = vmatprep.subr.bf16.mxu0 %v2989
    %3109 = vmatpush1.bf16.msra.mxu0 %v2988
    %3110 = vmatprep.subr.bf16.mxu0 %v2993
    %3111 = vmatpush1.bf16.msra.mxu0 %v2992
    %3112 = vmatprep.subr.bf16.mxu0 %v2997
    %3113 = vmatpush1.bf16.msra.mxu0 %v2996
    %3114 = vmatprep.subr.bf16.mxu0 %v3001
    %3115 = vmatpush1.bf16.msra.mxu0 %v3000
    %3116 = vmatprep.subr.bf16.mxu0 %v3005
    %3117 = vmatpush1.bf16.msra.mxu0 %v3004
    %3118 = vmatprep.subr.bf16.mxu0 %v3009
    %3119 = vmatpush1.bf16.msra.mxu0 %v3008
    %3120 = vmatprep.subr.bf16.mxu0 %v3013
    %3121 = vmatpush1.bf16.msra.mxu0 %v3012
    %3122 = vmatprep.subr.bf16.mxu0 %v3017
    %3123 = vmatpush1.bf16.msra.mxu0 %v3016
    %3124 = vmatprep.subr.bf16.mxu0 %v3021
    %3125 = vmatpush1.bf16.msra.mxu0 %v3020
    %3126 = vmatprep.subr.bf16.mxu0 %v3025
    %3127 = vmatpush1.bf16.msra.mxu0 %v3024
    %3128 = vmatprep.subr.bf16.mxu0 %v3029
    %3129 = vmatpush1.bf16.msra.mxu0 %v3028
    %3130 = vmatprep.subr.bf16.mxu0 %v3033
    %3131 = vmatpush1.bf16.msra.mxu0 %v3032
    %3132 = vmatprep.mubr.bf16.mxu0 %v2693
    %3133 = vmatmul.mubr.bf16.gmra.mrb[0].mxu0 %v2692
    %v3134 = vpop.f32.mrb[0].mxu0
    %v3135 = vadd.f32 %v2763, %v3134
    %v3136 = vpop.f32.mrb[0].mxu0
    %v3137 = vadd.f32 %v2767, %v3136
    %v3138 = vpop.f32.mrb[0].mxu0
    %v3139 = vadd.f32 %v2763, %v3138
    %v3140 = vpop.f32.mrb[0].mxu0
    %v3141 = vadd.f32 %v2767, %v3140
    %3142 = vdwg.mxu0
    %3143 = vmatprep.subr.bf16.mxu0 %v2975
    %3144 = vmatpush1.bf16.msra.mxu0 %v2974
    %3145 = vmatprep.subr.bf16.mxu0 %v2979
    %3146 = vmatpush1.bf16.msra.mxu0 %v2978
    %3147 = vmatprep.subr.bf16.mxu0 %v2983
    %3148 = vmatpush1.bf16.msra.mxu0 %v2982
    %3149 = vmatprep.subr.bf16.mxu0 %v2987
    %3150 = vmatpush1.bf16.msra.mxu0 %v2986
    %3151 = vmatprep.subr.bf16.mxu0 %v2991
    %3152 = vmatpush1.bf16.msra.mxu0 %v2990
    %3153 = vmatprep.subr.bf16.mxu0 %v2995
    %3154 = vmatpush1.bf16.msra.mxu0 %v2994
    %3155 = vmatprep.subr.bf16.mxu0 %v2999
    %3156 = vmatpush1.bf16.msra.mxu0 %v2998
    %3157 = vmatprep.subr.bf16.mxu0 %v3003
    %3158 = vmatpush1.bf16.msra.mxu0 %v3002
    %3159 = vmatprep.subr.bf16.mxu0 %v3007
    %3160 = vmatpush1.bf16.msra.mxu0 %v3006
    %3161 = vmatprep.subr.bf16.mxu0 %v3011
    %3162 = vmatpush1.bf16.msra.mxu0 %v3010
    %3163 = vmatprep.subr.bf16.mxu0 %v3015
    %3164 = vmatpush1.bf16.msra.mxu0 %v3014
    %3165 = vmatprep.subr.bf16.mxu0 %v3019
    %3166 = vmatpush1.bf16.msra.mxu0 %v3018
    %3167 = vmatprep.subr.bf16.mxu0 %v3023
    %3168 = vmatpush1.bf16.msra.mxu0 %v3022
    %3169 = vmatprep.subr.bf16.mxu0 %v3027
    %3170 = vmatpush1.bf16.msra.mxu0 %v3026
    %3171 = vmatprep.subr.bf16.mxu0 %v3031
    %3172 = vmatpush1.bf16.msra.mxu0 %v3030
    %3173 = vmatprep.subr.bf16.mxu0 %v3035
    %3174 = vmatpush1.bf16.msra.mxu0 %v3034
    %3175 = vmatprep.mubr.bf16.mxu0 %v2693
    %3176 = vmatmul.mubr.bf16.gmra.mrb[0].mxu0 %v2692
    %v3177 = vpop.f32.mrb[0].mxu0
    %v3178 = vadd.f32 %v2771, %v3177
    %v3179 = vpop.f32.mrb[0].mxu0
    %v3180 = vadd.f32 %v2775, %v3179
    %v3181 = vpop.f32.mrb[0].mxu0
    %v3182 = vadd.f32 %v2771, %v3181
    %v3183 = vpop.f32.mrb[0].mxu0
    %v3184 = vadd.f32 %v2775, %v3183
    %3185 = vdwg.mxu0
    %v3186 = vmax.f32 %v3135, 0.0
    %v3187 = vmax.f32 %v3137, 0.0
    %v3188 = vmax.f32 %v3178, 0.0
    %v3189 = vmax.f32 %v3180, 0.0
    %v3190 = vmax.f32 %v3139, 0.0
    %v3191 = vmax.f32 %v3141, 0.0
    %v3192 = vmax.f32 %v3182, 0.0
    %v3193 = vmax.f32 %v3184, 0.0
    %v3194 = vpack.c.bf16 %v3190, %v3186
    %v3195 = vpack.c.bf16 %v3191, %v3187
    %v3196 = vpack.c.bf16 %v3192, %v3188
    %v3197 = vpack.c.bf16 %v3193, %v3189
    %v3198 = vld [vmem:[#allocation16] sm:$0xff]
    %v3199 = vld [vmem:[#allocation16 + $0x8] sm:$0xff]
    %v3200 = vld [vmem:[#allocation16 + $0x10] sm:$0xff]
    %v3201 = vld [vmem:[#allocation16 + $0x18] sm:$0xf]
    %v3202 = vld [vmem:[#allocation16 + $0x1c] sm:$0xff]
    %v3203 = vld [vmem:[#allocation16 + $0x24] sm:$0xff]
    %v3204 = vld [vmem:[#allocation16 + $0x2c] sm:$0xff]
    %v3205 = vld [vmem:[#allocation16 + $0x34] sm:$0xf]
    %v3206 = vld [vmem:[#allocation16 + $0x38] sm:$0xff]
    %v3207 = vld [vmem:[#allocation16 + $0x40] sm:$0xff]
    %v3208 = vld [vmem:[#allocation16 + $0x48] sm:$0xff]
    %v3209 = vld [vmem:[#allocation16 + $0x50] sm:$0xf]
    %v3210 = vld [vmem:[#allocation16 + $0x54] sm:$0xff]
    %v3211 = vld [vmem:[#allocation16 + $0x5c] sm:$0xff]
    %v3212 = vld [vmem:[#allocation16 + $0x64] sm:$0xff]
    %v3213 = vld [vmem:[#allocation16 + $0x6c] sm:$0xf]
    %v3214 = vld [vmem:[#allocation16 + $0x70] sm:$0xff]
    %v3215 = vld [vmem:[#allocation16 + $0x78] sm:$0xff]
    %v3216 = vld [vmem:[#allocation16 + $0x80] sm:$0xff]
    %v3217 = vld [vmem:[#allocation16 + $0x88] sm:$0xf]
    %v3218 = vld [vmem:[#allocation16 + $0x8c] sm:$0xff]
    %v3219 = vld [vmem:[#allocation16 + $0x94] sm:$0xff]
    %v3220 = vld [vmem:[#allocation16 + $0x9c] sm:$0xff]
    %v3221 = vld [vmem:[#allocation16 + $0xa4] sm:$0xf]
    %v3222 = vld [vmem:[#allocation16 + $0xa8] sm:$0xff]
    %v3223 = vld [vmem:[#allocation16 + $0xb0] sm:$0xff]
    %v3224 = vld [vmem:[#allocation16 + $0xb8] sm:$0xff]
    %v3225 = vld [vmem:[#allocation16 + $0xc0] sm:$0xf]
    %v3226 = vld [vmem:[#allocation16 + $0xc4] sm:$0xff]
    %v3227 = vld [vmem:[#allocation16 + $0xcc] sm:$0xff]
    %v3228 = vld [vmem:[#allocation16 + $0xd4] sm:$0xff]
    %v3229 = vld [vmem:[#allocation16 + $0xdc] sm:$0xf]
    %v3230 = vld [vmem:[#allocation16 + $0xe0] sm:$0xff]
    %v3231 = vld [vmem:[#allocation16 + $0xe8] sm:$0xff]
    %v3232 = vld [vmem:[#allocation16 + $0xf0] sm:$0xff]
    %v3233 = vld [vmem:[#allocation16 + $0xf8] sm:$0xf]
    %v3234 = vld [vmem:[#allocation16 + $0xfc] sm:$0xff]
    %v3235 = vld [vmem:[#allocation16 + $0x104] sm:$0xff]
    %v3236 = vld [vmem:[#allocation16 + $0x10c] sm:$0xff]
    %v3237 = vld [vmem:[#allocation16 + $0x114] sm:$0xf]
    %v3238 = vld [vmem:[#allocation16 + $0x118] sm:$0xff]
    %v3239 = vld [vmem:[#allocation16 + $0x120] sm:$0xff]
    %v3240 = vld [vmem:[#allocation16 + $0x128] sm:$0xff]
    %v3241 = vld [vmem:[#allocation16 + $0x130] sm:$0xf]
    %v3242 = vld [vmem:[#allocation16 + $0x134] sm:$0xff]
    %v3243 = vld [vmem:[#allocation16 + $0x13c] sm:$0xff]
    %v3244 = vld [vmem:[#allocation16 + $0x144] sm:$0xff]
    %v3245 = vld [vmem:[#allocation16 + $0x14c] sm:$0xf]
    %v3246 = vld [vmem:[#allocation16 + $0x150] sm:$0xff]
    %v3247 = vld [vmem:[#allocation16 + $0x158] sm:$0xff]
    %v3248 = vld [vmem:[#allocation16 + $0x160] sm:$0xff]
    %v3249 = vld [vmem:[#allocation16 + $0x168] sm:$0xf]
    %v3250 = vld [vmem:[#allocation16 + $0x16c] sm:$0xff]
    %v3251 = vld [vmem:[#allocation16 + $0x174] sm:$0xff]
    %v3252 = vld [vmem:[#allocation16 + $0x17c] sm:$0xff]
    %v3253 = vld [vmem:[#allocation16 + $0x184] sm:$0xf]
    %v3254 = vld [vmem:[#allocation16 + $0x188] sm:$0xff]
    %v3255 = vld [vmem:[#allocation16 + $0x190] sm:$0xff]
    %v3256 = vld [vmem:[#allocation16 + $0x198] sm:$0xff]
    %v3257 = vld [vmem:[#allocation16 + $0x1a0] sm:$0xf]
    %v3258 = vld [vmem:[#allocation16 + $0x1a4] sm:$0xff]
    %v3259 = vld [vmem:[#allocation16 + $0x1ac] sm:$0xff]
    %v3260 = vld [vmem:[#allocation16 + $0x1b4] sm:$0xff]
    %v3261 = vld [vmem:[#allocation16 + $0x1bc] sm:$0xf]
    %v3262 = vld [vmem:[#allocation16 + $0x1c0] sm:$0xff]
    %v3263 = vld [vmem:[#allocation16 + $0x1c8] sm:$0xff]
    %v3264 = vld [vmem:[#allocation16 + $0x1d0] sm:$0xff]
    %v3265 = vld [vmem:[#allocation16 + $0x1d8] sm:$0xf]
    %v3266 = vld [vmem:[#allocation16 + $0x1dc] sm:$0xff]
    %v3267 = vld [vmem:[#allocation16 + $0x1e4] sm:$0xff]
    %v3268 = vld [vmem:[#allocation16 + $0x1ec] sm:$0xff]
    %v3269 = vld [vmem:[#allocation16 + $0x1f4] sm:$0xf]
    %v3270 = vld [vmem:[#allocation16 + $0x1f8] sm:$0xff]
    %v3271 = vld [vmem:[#allocation16 + $0x200] sm:$0xff]
    %v3272 = vld [vmem:[#allocation16 + $0x208] sm:$0xff]
    %v3273 = vld [vmem:[#allocation16 + $0x210] sm:$0xf]
    %v3274 = vld [vmem:[#allocation16 + $0x214] sm:$0xff]
    %v3275 = vld [vmem:[#allocation16 + $0x21c] sm:$0xff]
    %v3276 = vld [vmem:[#allocation16 + $0x224] sm:$0xff]
    %v3277 = vld [vmem:[#allocation16 + $0x22c] sm:$0xf]
    %v3278 = vld [vmem:[#allocation16 + $0x230] sm:$0xff]
    %v3279 = vld [vmem:[#allocation16 + $0x238] sm:$0xff]
    %v3280 = vld [vmem:[#allocation16 + $0x240] sm:$0xff]
    %v3281 = vld [vmem:[#allocation16 + $0x248] sm:$0xf]
    %v3282 = vld [vmem:[#allocation16 + $0x24c] sm:$0xff]
    %v3283 = vld [vmem:[#allocation16 + $0x254] sm:$0xff]
    %v3284 = vld [vmem:[#allocation16 + $0x25c] sm:$0xff]
    %v3285 = vld [vmem:[#allocation16 + $0x264] sm:$0xf]
    %v3286 = vld [vmem:[#allocation16 + $0x268] sm:$0xff]
    %v3287 = vld [vmem:[#allocation16 + $0x270] sm:$0xff]
    %v3288 = vld [vmem:[#allocation16 + $0x278] sm:$0xff]
    %v3289 = vld [vmem:[#allocation16 + $0x280] sm:$0xf]
    %v3290 = vld [vmem:[#allocation16 + $0x284] sm:$0xff]
    %v3291 = vld [vmem:[#allocation16 + $0x28c] sm:$0xff]
    %v3292 = vld [vmem:[#allocation16 + $0x294] sm:$0xff]
    %v3293 = vld [vmem:[#allocation16 + $0x29c] sm:$0xf]
    %v3294 = vld [vmem:[#allocation16 + $0x2a0] sm:$0xff]
    %v3295 = vld [vmem:[#allocation16 + $0x2a8] sm:$0xff]
    %v3296 = vld [vmem:[#allocation16 + $0x2b0] sm:$0xff]
    %v3297 = vld [vmem:[#allocation16 + $0x2b8] sm:$0xf]
    %v3298 = vld [vmem:[#allocation16 + $0x2bc] sm:$0xff]
    %v3299 = vld [vmem:[#allocation16 + $0x2c4] sm:$0xff]
    %v3300 = vld [vmem:[#allocation16 + $0x2cc] sm:$0xff]
    %v3301 = vld [vmem:[#allocation16 + $0x2d4] sm:$0xf]
    %v3302 = vld [vmem:[#allocation16 + $0x2d8] sm:$0xff]
    %v3303 = vld [vmem:[#allocation16 + $0x2e0] sm:$0xff]
    %v3304 = vld [vmem:[#allocation16 + $0x2e8] sm:$0xff]
    %v3305 = vld [vmem:[#allocation16 + $0x2f0] sm:$0xf]
    %v3306 = vld [vmem:[#allocation16 + $0x2f4] sm:$0xff]
    %v3307 = vld [vmem:[#allocation16 + $0x2fc] sm:$0xff]
    %v3308 = vld [vmem:[#allocation16 + $0x304] sm:$0xff]
    %v3309 = vld [vmem:[#allocation16 + $0x30c] sm:$0xf]
    %v3310 = vld [vmem:[#allocation16 + $0x310] sm:$0xff]
    %v3311 = vld [vmem:[#allocation16 + $0x318] sm:$0xff]
    %v3312 = vld [vmem:[#allocation16 + $0x320] sm:$0xff]
    %v3313 = vld [vmem:[#allocation16 + $0x328] sm:$0xf]
    %v3314 = vld [vmem:[#allocation16 + $0x32c] sm:$0xff]
    %v3315 = vld [vmem:[#allocation16 + $0x334] sm:$0xff]
    %v3316 = vld [vmem:[#allocation16 + $0x33c] sm:$0xff]
    %v3317 = vld [vmem:[#allocation16 + $0x344] sm:$0xf]
    %v3318 = vld [vmem:[#allocation16 + $0x348] sm:$0xff]
    %v3319 = vld [vmem:[#allocation16 + $0x350] sm:$0xff]
    %v3320 = vld [vmem:[#allocation16 + $0x358] sm:$0xff]
    %v3321 = vld [vmem:[#allocation16 + $0x360] sm:$0xf]
    %v3322 = vld [vmem:[#allocation16 + $0x364] sm:$0xff]
    %v3323 = vld [vmem:[#allocation16 + $0x36c] sm:$0xff]
    %v3324 = vld [vmem:[#allocation16 + $0x374] sm:$0xff]
    %v3325 = vld [vmem:[#allocation16 + $0x37c] sm:$0xf]
    %v3326 = vld [vmem:[#allocation16 + $0x380] sm:$0xff]
    %v3327 = vld [vmem:[#allocation16 + $0x388] sm:$0xff]
    %v3328 = vld [vmem:[#allocation16 + $0x390] sm:$0xff]
    %v3329 = vld [vmem:[#allocation16 + $0x398] sm:$0xf]
    %v3330 = vld [vmem:[#allocation16 + $0x39c] sm:$0xff]
    %v3331 = vld [vmem:[#allocation16 + $0x3a4] sm:$0xff]
    %v3332 = vld [vmem:[#allocation16 + $0x3ac] sm:$0xff]
    %v3333 = vld [vmem:[#allocation16 + $0x3b4] sm:$0xf]
    %v3334 = vld [vmem:[#allocation16 + $0x3b8] sm:$0xff]
    %v3335 = vld [vmem:[#allocation16 + $0x3c0] sm:$0xff]
    %v3336 = vld [vmem:[#allocation16 + $0x3c8] sm:$0xff]
    %v3337 = vld [vmem:[#allocation16 + $0x3d0] sm:$0xf]
    %v3338 = vld [vmem:[#allocation16 + $0x3d4] sm:$0xff]
    %v3339 = vld [vmem:[#allocation16 + $0x3dc] sm:$0xff]
    %v3340 = vld [vmem:[#allocation16 + $0x3e4] sm:$0xff]
    %v3341 = vld [vmem:[#allocation16 + $0x3ec] sm:$0xf]
    %v3342 = vld [vmem:[#allocation16 + $0x3f0] sm:$0xff]
    %v3343 = vld [vmem:[#allocation16 + $0x3f8] sm:$0xff]
    %v3344 = vld [vmem:[#allocation16 + $0x400] sm:$0xff]
    %v3345 = vld [vmem:[#allocation16 + $0x408] sm:$0xf]
    %v3346 = vld [vmem:[#allocation16 + $0x40c] sm:$0xff]
    %v3347 = vld [vmem:[#allocation16 + $0x414] sm:$0xff]
    %v3348 = vld [vmem:[#allocation16 + $0x41c] sm:$0xff]
    %v3349 = vld [vmem:[#allocation16 + $0x424] sm:$0xf]
    %v3350 = vld [vmem:[#allocation16 + $0x428] sm:$0xff]
    %v3351 = vld [vmem:[#allocation16 + $0x430] sm:$0xff]
    %v3352 = vld [vmem:[#allocation16 + $0x438] sm:$0xff]
    %v3353 = vld [vmem:[#allocation16 + $0x440] sm:$0xf]
    %v3354 = vld [vmem:[#allocation16 + $0x444] sm:$0xff]
    %v3355 = vld [vmem:[#allocation16 + $0x44c] sm:$0xff]
    %v3356 = vld [vmem:[#allocation16 + $0x454] sm:$0xff]
    %v3357 = vld [vmem:[#allocation16 + $0x45c] sm:$0xf]
    %v3358 = vld [vmem:[#allocation16 + $0x460] sm:$0xff]
    %v3359 = vld [vmem:[#allocation16 + $0x468] sm:$0xff]
    %v3360 = vld [vmem:[#allocation16 + $0x470] sm:$0xff]
    %v3361 = vld [vmem:[#allocation16 + $0x478] sm:$0xf]
    %v3362 = vld [vmem:[#allocation16 + $0x47c] sm:$0xff]
    %v3363 = vld [vmem:[#allocation16 + $0x484] sm:$0xff]
    %v3364 = vld [vmem:[#allocation16 + $0x48c] sm:$0xff]
    %v3365 = vld [vmem:[#allocation16 + $0x494] sm:$0xf]
    %v3366 = vld [vmem:[#allocation16 + $0x498] sm:$0xff]
    %v3367 = vld [vmem:[#allocation16 + $0x4a0] sm:$0xff]
    %v3368 = vld [vmem:[#allocation16 + $0x4a8] sm:$0xff]
    %v3369 = vld [vmem:[#allocation16 + $0x4b0] sm:$0xf]
    %v3370 = vld [vmem:[#allocation16 + $0x4b4] sm:$0xff]
    %v3371 = vld [vmem:[#allocation16 + $0x4bc] sm:$0xff]
    %v3372 = vld [vmem:[#allocation16 + $0x4c4] sm:$0xff]
    %v3373 = vld [vmem:[#allocation16 + $0x4cc] sm:$0xf]
    %v3374 = vld [vmem:[#allocation16 + $0x4d0] sm:$0xff]
    %v3375 = vld [vmem:[#allocation16 + $0x4d8] sm:$0xff]
    %v3376 = vld [vmem:[#allocation16 + $0x4e0] sm:$0xff]
    %v3377 = vld [vmem:[#allocation16 + $0x4e8] sm:$0xf]
    %v3378 = vld [vmem:[#allocation16 + $0x4ec] sm:$0xff]
    %v3379 = vld [vmem:[#allocation16 + $0x4f4] sm:$0xff]
    %v3380 = vld [vmem:[#allocation16 + $0x4fc] sm:$0xff]
    %v3381 = vld [vmem:[#allocation16 + $0x504] sm:$0xf]
    %v3382 = vld [vmem:[#allocation16 + $0x508] sm:$0xff]
    %v3383 = vld [vmem:[#allocation16 + $0x510] sm:$0xff]
    %v3384 = vld [vmem:[#allocation16 + $0x518] sm:$0xff]
    %v3385 = vld [vmem:[#allocation16 + $0x520] sm:$0xf]
    %v3386 = vld [vmem:[#allocation16 + $0x524] sm:$0xff]
    %v3387 = vld [vmem:[#allocation16 + $0x52c] sm:$0xff]
    %v3388 = vld [vmem:[#allocation16 + $0x534] sm:$0xff]
    %v3389 = vld [vmem:[#allocation16 + $0x53c] sm:$0xf]
    %v3390 = vld [vmem:[#allocation16 + $0x540] sm:$0xff]
    %v3391 = vld [vmem:[#allocation16 + $0x548] sm:$0xff]
    %v3392 = vld [vmem:[#allocation16 + $0x550] sm:$0xff]
    %v3393 = vld [vmem:[#allocation16 + $0x558] sm:$0xf]
    %v3394 = vld [vmem:[#allocation16 + $0x55c] sm:$0xff]
    %v3395 = vld [vmem:[#allocation16 + $0x564] sm:$0xff]
    %v3396 = vld [vmem:[#allocation16 + $0x56c] sm:$0xff]
    %v3397 = vld [vmem:[#allocation16 + $0x574] sm:$0xf]
    %v3398 = vld [vmem:[#allocation16 + $0x578] sm:$0xff]
    %v3399 = vld [vmem:[#allocation16 + $0x580] sm:$0xff]
    %v3400 = vld [vmem:[#allocation16 + $0x588] sm:$0xff]
    %v3401 = vld [vmem:[#allocation16 + $0x590] sm:$0xf]
    %v3402 = vld [vmem:[#allocation16 + $0x594] sm:$0xff]
    %v3403 = vld [vmem:[#allocation16 + $0x59c] sm:$0xff]
    %v3404 = vld [vmem:[#allocation16 + $0x5a4] sm:$0xff]
    %v3405 = vld [vmem:[#allocation16 + $0x5ac] sm:$0xf]
    %v3406 = vld [vmem:[#allocation16 + $0x5b0] sm:$0xff]
    %v3407 = vld [vmem:[#allocation16 + $0x5b8] sm:$0xff]
    %v3408 = vld [vmem:[#allocation16 + $0x5c0] sm:$0xff]
    %v3409 = vld [vmem:[#allocation16 + $0x5c8] sm:$0xf]
    %v3410 = vld [vmem:[#allocation16 + $0x5cc] sm:$0xff]
    %v3411 = vld [vmem:[#allocation16 + $0x5d4] sm:$0xff]
    %v3412 = vld [vmem:[#allocation16 + $0x5dc] sm:$0xff]
    %v3413 = vld [vmem:[#allocation16 + $0x5e4] sm:$0xf]
    %v3414 = vld [vmem:[#allocation16 + $0x5e8] sm:$0xff]
    %v3415 = vld [vmem:[#allocation16 + $0x5f0] sm:$0xff]
    %v3416 = vld [vmem:[#allocation16 + $0x5f8] sm:$0xff]
    %v3417 = vld [vmem:[#allocation16 + $0x600] sm:$0xf]
    %v3418 = vld [vmem:[#allocation16 + $0x604] sm:$0xff]
    %v3419 = vld [vmem:[#allocation16 + $0x60c] sm:$0xff]
    %v3420 = vld [vmem:[#allocation16 + $0x614] sm:$0xff]
    %v3421 = vld [vmem:[#allocation16 + $0x61c] sm:$0xf]
    %v3422 = vld [vmem:[#allocation16 + $0x620] sm:$0xff]
    %v3423 = vld [vmem:[#allocation16 + $0x628] sm:$0xff]
    %v3424 = vld [vmem:[#allocation16 + $0x630] sm:$0xff]
    %v3425 = vld [vmem:[#allocation16 + $0x638] sm:$0xf]
    %v3426 = vld [vmem:[#allocation16 + $0x63c] sm:$0xff]
    %v3427 = vld [vmem:[#allocation16 + $0x644] sm:$0xff]
    %v3428 = vld [vmem:[#allocation16 + $0x64c] sm:$0xff]
    %v3429 = vld [vmem:[#allocation16 + $0x654] sm:$0xf]
    %v3430 = vld [vmem:[#allocation16 + $0x658] sm:$0xff]
    %v3431 = vld [vmem:[#allocation16 + $0x660] sm:$0xff]
    %v3432 = vld [vmem:[#allocation16 + $0x668] sm:$0xff]
    %v3433 = vld [vmem:[#allocation16 + $0x670] sm:$0xf]
    %v3434 = vld [vmem:[#allocation16 + $0x674] sm:$0xff]
    %v3435 = vld [vmem:[#allocation16 + $0x67c] sm:$0xff]
    %v3436 = vld [vmem:[#allocation16 + $0x684] sm:$0xff]
    %v3437 = vld [vmem:[#allocation16 + $0x68c] sm:$0xf]
    %v3438 = vld [vmem:[#allocation16 + $0x690] sm:$0xff]
    %v3439 = vld [vmem:[#allocation16 + $0x698] sm:$0xff]
    %v3440 = vld [vmem:[#allocation16 + $0x6a0] sm:$0xff]
    %v3441 = vld [vmem:[#allocation16 + $0x6a8] sm:$0xf]
    %v3442 = vld [vmem:[#allocation16 + $0x6ac] sm:$0xff]
    %v3443 = vld [vmem:[#allocation16 + $0x6b4] sm:$0xff]
    %v3444 = vld [vmem:[#allocation16 + $0x6bc] sm:$0xff]
    %v3445 = vld [vmem:[#allocation16 + $0x6c4] sm:$0xf]
    %v3446 = vld [vmem:[#allocation16 + $0x6c8] sm:$0xff]
    %v3447 = vld [vmem:[#allocation16 + $0x6d0] sm:$0xff]
    %v3448 = vld [vmem:[#allocation16 + $0x6d8] sm:$0xff]
    %v3449 = vld [vmem:[#allocation16 + $0x6e0] sm:$0xf]
    %v3450 = vld [vmem:[#allocation16 + $0x6e4] sm:$0xff]
    %v3451 = vld [vmem:[#allocation16 + $0x6ec] sm:$0xff]
    %v3452 = vld [vmem:[#allocation16 + $0x6f4] sm:$0xff]
    %v3453 = vld [vmem:[#allocation16 + $0x6fc] sm:$0xf]
    %v3454 = vld [vmem:[#allocation17] sm:$0xff]
    %v3456 = vlaneseq
    %v3457 = vshrl.u32 %v3456, 7
    %v3458 = vsub.s32 0, %v3457
    %v3459 = vrot.slane %v3454, %v3458
    %v3460 = vlaneseq
    %v3461 = vshrl.u32 %v3460, 7
    %v3462 = vsub.s32 1, %v3461
    %v3463 = vrot.slane %v3454, %v3462
    %v3464 = vlaneseq
    %v3465 = vshrl.u32 %v3464, 7
    %v3466 = vsub.s32 2, %v3465
    %v3467 = vrot.slane %v3454, %v3466
    %v3468 = vlaneseq
    %v3469 = vshrl.u32 %v3468, 7
    %v3470 = vsub.s32 3, %v3469
    %v3471 = vrot.slane %v3454, %v3470
    %v3472 = vlaneseq
    %v3473 = vshrl.u32 %v3472, 7
    %v3474 = vsub.s32 4, %v3473
    %v3475 = vrot.slane %v3454, %v3474
    %v3476 = vlaneseq
    %v3477 = vshrl.u32 %v3476, 7
    %v3478 = vsub.s32 5, %v3477
    %v3479 = vrot.slane %v3454, %v3478
    %v3480 = vlaneseq
    %v3481 = vshrl.u32 %v3480, 7
    %v3482 = vsub.s32 6, %v3481
    %v3483 = vrot.slane %v3454, %v3482
    %v3747 = vunpack.c.l.b16 %v3198
    %v3748 = vunpack.c.h.b16 %v3198
    %v3749 = vunpack.c.l.b16 %v3199
    %v3750 = vunpack.c.h.b16 %v3199
    %v3751 = vunpack.c.l.b16 %v3200
    %v3752 = vunpack.c.h.b16 %v3200
    %v3753 = vunpack.c.l.b16 %v3201
    %v3754 = vunpack.c.l.b16 %v3202
    %v3755 = vunpack.c.h.b16 %v3202
    %v3756 = vunpack.c.l.b16 %v3203
    %v3757 = vunpack.c.h.b16 %v3203
    %v3758 = vunpack.c.l.b16 %v3204
    %v3759 = vunpack.c.h.b16 %v3204
    %v3760 = vunpack.c.l.b16 %v3205
    %v3761 = vunpack.c.l.b16 %v3206
    %v3762 = vunpack.c.h.b16 %v3206
    %v3763 = vunpack.c.l.b16 %v3207
    %v3764 = vunpack.c.h.b16 %v3207
    %v3765 = vunpack.c.l.b16 %v3208
    %v3766 = vunpack.c.h.b16 %v3208
    %v3767 = vunpack.c.l.b16 %v3209
    %v3768 = vunpack.c.l.b16 %v3210
    %v3769 = vunpack.c.h.b16 %v3210
    %v3770 = vunpack.c.l.b16 %v3211
    %v3771 = vunpack.c.h.b16 %v3211
    %v3772 = vunpack.c.l.b16 %v3212
    %v3773 = vunpack.c.h.b16 %v3212
    %v3774 = vunpack.c.l.b16 %v3213
    %v3775 = vunpack.c.l.b16 %v3214
    %v3776 = vunpack.c.h.b16 %v3214
    %v3777 = vunpack.c.l.b16 %v3215
    %v3778 = vunpack.c.h.b16 %v3215
    %v3779 = vunpack.c.l.b16 %v3216
    %v3780 = vunpack.c.h.b16 %v3216
    %v3781 = vunpack.c.l.b16 %v3217
    %v3782 = vunpack.c.l.b16 %v3218
    %v3783 = vunpack.c.h.b16 %v3218
    %v3784 = vunpack.c.l.b16 %v3219
    %v3785 = vunpack.c.h.b16 %v3219
    %v3786 = vunpack.c.l.b16 %v3220
    %v3787 = vunpack.c.h.b16 %v3220
    %v3788 = vunpack.c.l.b16 %v3221
    %v3789 = vunpack.c.l.b16 %v3222
    %v3790 = vunpack.c.h.b16 %v3222
    %v3791 = vunpack.c.l.b16 %v3223
    %v3792 = vunpack.c.h.b16 %v3223
    %v3793 = vunpack.c.l.b16 %v3224
    %v3794 = vunpack.c.h.b16 %v3224
    %v3795 = vunpack.c.l.b16 %v3225
    %v3796 = vunpack.c.l.b16 %v3226
    %v3797 = vunpack.c.h.b16 %v3226
    %v3798 = vunpack.c.l.b16 %v3227
    %v3799 = vunpack.c.h.b16 %v3227
    %v3800 = vunpack.c.l.b16 %v3228
    %v3801 = vunpack.c.h.b16 %v3228
    %v3802 = vunpack.c.l.b16 %v3229
    %v3803 = vunpack.c.l.b16 %v3230
    %v3804 = vunpack.c.h.b16 %v3230
    %v3805 = vunpack.c.l.b16 %v3231
    %v3806 = vunpack.c.h.b16 %v3231
    %v3807 = vunpack.c.l.b16 %v3232
    %v3808 = vunpack.c.h.b16 %v3232
    %v3809 = vunpack.c.l.b16 %v3233
    %v3810 = vunpack.c.l.b16 %v3234
    %v3811 = vunpack.c.h.b16 %v3234
    %v3812 = vunpack.c.l.b16 %v3235
    %v3813 = vunpack.c.h.b16 %v3235
    %v3814 = vunpack.c.l.b16 %v3236
    %v3815 = vunpack.c.h.b16 %v3236
    %v3816 = vunpack.c.l.b16 %v3237
    %v3817 = vunpack.c.l.b16 %v3238
    %v3818 = vunpack.c.h.b16 %v3238
    %v3819 = vunpack.c.l.b16 %v3239
    %v3820 = vunpack.c.h.b16 %v3239
    %v3821 = vunpack.c.l.b16 %v3240
    %v3822 = vunpack.c.h.b16 %v3240
    %v3823 = vunpack.c.l.b16 %v3241
    %v3824 = vunpack.c.l.b16 %v3242
    %v3825 = vunpack.c.h.b16 %v3242
    %v3826 = vunpack.c.l.b16 %v3243
    %v3827 = vunpack.c.h.b16 %v3243
    %v3828 = vunpack.c.l.b16 %v3244
    %v3829 = vunpack.c.h.b16 %v3244
    %v3830 = vunpack.c.l.b16 %v3245
    %v3831 = vunpack.c.l.b16 %v3246
    %v3832 = vunpack.c.h.b16 %v3246
    %v3833 = vunpack.c.l.b16 %v3247
    %v3834 = vunpack.c.h.b16 %v3247
    %v3835 = vunpack.c.l.b16 %v3248
    %v3836 = vunpack.c.h.b16 %v3248
    %v3837 = vunpack.c.l.b16 %v3249
    %v3838 = vunpack.c.l.b16 %v3250
    %v3839 = vunpack.c.h.b16 %v3250
    %v3840 = vunpack.c.l.b16 %v3251
    %v3841 = vunpack.c.h.b16 %v3251
    %v3842 = vunpack.c.l.b16 %v3252
    %v3843 = vunpack.c.h.b16 %v3252
    %v3844 = vunpack.c.l.b16 %v3253
    %v3845 = vunpack.c.l.b16 %v3254
    %v3846 = vunpack.c.h.b16 %v3254
    %v3847 = vunpack.c.l.b16 %v3255
    %v3848 = vunpack.c.h.b16 %v3255
    %v3849 = vunpack.c.l.b16 %v3256
    %v3850 = vunpack.c.h.b16 %v3256
    %v3851 = vunpack.c.l.b16 %v3257
    %v3852 = vunpack.c.l.b16 %v3258
    %v3853 = vunpack.c.h.b16 %v3258
    %v3854 = vunpack.c.l.b16 %v3259
    %v3855 = vunpack.c.h.b16 %v3259
    %v3856 = vunpack.c.l.b16 %v3260
    %v3857 = vunpack.c.h.b16 %v3260
    %v3858 = vunpack.c.l.b16 %v3261
    %v3859 = vunpack.c.l.b16 %v3262
    %v3860 = vunpack.c.h.b16 %v3262
    %v3861 = vunpack.c.l.b16 %v3263
    %v3862 = vunpack.c.h.b16 %v3263
    %v3863 = vunpack.c.l.b16 %v3264
    %v3864 = vunpack.c.h.b16 %v3264
    %v3865 = vunpack.c.l.b16 %v3265
    %v3866 = vunpack.c.l.b16 %v3266
    %v3867 = vunpack.c.h.b16 %v3266
    %v3868 = vunpack.c.l.b16 %v3267
    %v3869 = vunpack.c.h.b16 %v3267
    %v3870 = vunpack.c.l.b16 %v3268
    %v3871 = vunpack.c.h.b16 %v3268
    %v3872 = vunpack.c.l.b16 %v3269
    %v3873 = vunpack.c.l.b16 %v3270
    %v3874 = vunpack.c.h.b16 %v3270
    %v3875 = vunpack.c.l.b16 %v3271
    %v3876 = vunpack.c.h.b16 %v3271
    %v3877 = vunpack.c.l.b16 %v3272
    %v3878 = vunpack.c.h.b16 %v3272
    %v3879 = vunpack.c.l.b16 %v3273
    %v3880 = vunpack.c.l.b16 %v3274
    %v3881 = vunpack.c.h.b16 %v3274
    %v3882 = vunpack.c.l.b16 %v3275
    %v3883 = vunpack.c.h.b16 %v3275
    %v3884 = vunpack.c.l.b16 %v3276
    %v3885 = vunpack.c.h.b16 %v3276
    %v3886 = vunpack.c.l.b16 %v3277
    %v3887 = vunpack.c.l.b16 %v3278
    %v3888 = vunpack.c.h.b16 %v3278
    %v3889 = vunpack.c.l.b16 %v3279
    %v3890 = vunpack.c.h.b16 %v3279
    %v3891 = vunpack.c.l.b16 %v3280
    %v3892 = vunpack.c.h.b16 %v3280
    %v3893 = vunpack.c.l.b16 %v3281
    %v3894 = vunpack.c.l.b16 %v3282
    %v3895 = vunpack.c.h.b16 %v3282
    %v3896 = vunpack.c.l.b16 %v3283
    %v3897 = vunpack.c.h.b16 %v3283
    %v3898 = vunpack.c.l.b16 %v3284
    %v3899 = vunpack.c.h.b16 %v3284
    %v3900 = vunpack.c.l.b16 %v3285
    %v3901 = vunpack.c.l.b16 %v3286
    %v3902 = vunpack.c.h.b16 %v3286
    %v3903 = vunpack.c.l.b16 %v3287
    %v3904 = vunpack.c.h.b16 %v3287
    %v3905 = vunpack.c.l.b16 %v3288
    %v3906 = vunpack.c.h.b16 %v3288
    %v3907 = vunpack.c.l.b16 %v3289
    %v3908 = vunpack.c.l.b16 %v3290
    %v3909 = vunpack.c.h.b16 %v3290
    %v3910 = vunpack.c.l.b16 %v3291
    %v3911 = vunpack.c.h.b16 %v3291
    %v3912 = vunpack.c.l.b16 %v3292
    %v3913 = vunpack.c.h.b16 %v3292
    %v3914 = vunpack.c.l.b16 %v3293
    %v3915 = vunpack.c.l.b16 %v3294
    %v3916 = vunpack.c.h.b16 %v3294
    %v3917 = vunpack.c.l.b16 %v3295
    %v3918 = vunpack.c.h.b16 %v3295
    %v3919 = vunpack.c.l.b16 %v3296
    %v3920 = vunpack.c.h.b16 %v3296
    %v3921 = vunpack.c.l.b16 %v3297
    %v3922 = vunpack.c.l.b16 %v3298
    %v3923 = vunpack.c.h.b16 %v3298
    %v3924 = vunpack.c.l.b16 %v3299
    %v3925 = vunpack.c.h.b16 %v3299
    %v3926 = vunpack.c.l.b16 %v3300
    %v3927 = vunpack.c.h.b16 %v3300
    %v3928 = vunpack.c.l.b16 %v3301
    %v3929 = vunpack.c.l.b16 %v3302
    %v3930 = vunpack.c.h.b16 %v3302
    %v3931 = vunpack.c.l.b16 %v3303
    %v3932 = vunpack.c.h.b16 %v3303
    %v3933 = vunpack.c.l.b16 %v3304
    %v3934 = vunpack.c.h.b16 %v3304
    %v3935 = vunpack.c.l.b16 %v3305
    %v3936 = vunpack.c.l.b16 %v3306
    %v3937 = vunpack.c.h.b16 %v3306
    %v3938 = vunpack.c.l.b16 %v3307
    %v3939 = vunpack.c.h.b16 %v3307
    %v3940 = vunpack.c.l.b16 %v3308
    %v3941 = vunpack.c.h.b16 %v3308
    %v3942 = vunpack.c.l.b16 %v3309
    %v3943 = vunpack.c.l.b16 %v3310
    %v3944 = vunpack.c.h.b16 %v3310
    %v3945 = vunpack.c.l.b16 %v3311
    %v3946 = vunpack.c.h.b16 %v3311
    %v3947 = vunpack.c.l.b16 %v3312
    %v3948 = vunpack.c.h.b16 %v3312
    %v3949 = vunpack.c.l.b16 %v3313
    %v3950 = vunpack.c.l.b16 %v3314
    %v3951 = vunpack.c.h.b16 %v3314
    %v3952 = vunpack.c.l.b16 %v3315
    %v3953 = vunpack.c.h.b16 %v3315
    %v3954 = vunpack.c.l.b16 %v3316
    %v3955 = vunpack.c.h.b16 %v3316
    %v3956 = vunpack.c.l.b16 %v3317
    %v3957 = vunpack.c.l.b16 %v3318
    %v3958 = vunpack.c.h.b16 %v3318
    %v3959 = vunpack.c.l.b16 %v3319
    %v3960 = vunpack.c.h.b16 %v3319
    %v3961 = vunpack.c.l.b16 %v3320
    %v3962 = vunpack.c.h.b16 %v3320
    %v3963 = vunpack.c.l.b16 %v3321
    %v3964 = vunpack.c.l.b16 %v3322
    %v3965 = vunpack.c.h.b16 %v3322
    %v3966 = vunpack.c.l.b16 %v3323
    %v3967 = vunpack.c.h.b16 %v3323
    %v3968 = vunpack.c.l.b16 %v3324
    %v3969 = vunpack.c.h.b16 %v3324
    %v3970 = vunpack.c.l.b16 %v3325
    %v3971 = vunpack.c.l.b16 %v3326
    %v3972 = vunpack.c.h.b16 %v3326
    %v3973 = vunpack.c.l.b16 %v3327
    %v3974 = vunpack.c.h.b16 %v3327
    %v3975 = vunpack.c.l.b16 %v3328
    %v3976 = vunpack.c.h.b16 %v3328
    %v3977 = vunpack.c.l.b16 %v3329
    %v3978 = vunpack.c.l.b16 %v3330
    %v3979 = vunpack.c.h.b16 %v3330
    %v3980 = vunpack.c.l.b16 %v3331
    %v3981 = vunpack.c.h.b16 %v3331
    %v3982 = vunpack.c.l.b16 %v3332
    %v3983 = vunpack.c.h.b16 %v3332
    %v3984 = vunpack.c.l.b16 %v3333
    %v3985 = vunpack.c.l.b16 %v3334
    %v3986 = vunpack.c.h.b16 %v3334
    %v3987 = vunpack.c.l.b16 %v3335
    %v3988 = vunpack.c.h.b16 %v3335
    %v3989 = vunpack.c.l.b16 %v3336
    %v3990 = vunpack.c.h.b16 %v3336
    %v3991 = vunpack.c.l.b16 %v3337
    %v3992 = vunpack.c.l.b16 %v3338
    %v3993 = vunpack.c.h.b16 %v3338
    %v3994 = vunpack.c.l.b16 %v3339
    %v3995 = vunpack.c.h.b16 %v3339
    %v3996 = vunpack.c.l.b16 %v3340
    %v3997 = vunpack.c.h.b16 %v3340
    %v3998 = vunpack.c.l.b16 %v3341
    %v3999 = vunpack.c.l.b16 %v3342
    %v4000 = vunpack.c.h.b16 %v3342
    %v4001 = vunpack.c.l.b16 %v3343
    %v4002 = vunpack.c.h.b16 %v3343
    %v4003 = vunpack.c.l.b16 %v3344
    %v4004 = vunpack.c.h.b16 %v3344
    %v4005 = vunpack.c.l.b16 %v3345
    %v4006 = vunpack.c.l.b16 %v3346
    %v4007 = vunpack.c.h.b16 %v3346
    %v4008 = vunpack.c.l.b16 %v3347
    %v4009 = vunpack.c.h.b16 %v3347
    %v4010 = vunpack.c.l.b16 %v3348
    %v4011 = vunpack.c.h.b16 %v3348
    %v4012 = vunpack.c.l.b16 %v3349
    %v4013 = vunpack.c.l.b16 %v3350
    %v4014 = vunpack.c.h.b16 %v3350
    %v4015 = vunpack.c.l.b16 %v3351
    %v4016 = vunpack.c.h.b16 %v3351
    %v4017 = vunpack.c.l.b16 %v3352
    %v4018 = vunpack.c.h.b16 %v3352
    %v4019 = vunpack.c.l.b16 %v3353
    %v4020 = vunpack.c.l.b16 %v3354
    %v4021 = vunpack.c.h.b16 %v3354
    %v4022 = vunpack.c.l.b16 %v3355
    %v4023 = vunpack.c.h.b16 %v3355
    %v4024 = vunpack.c.l.b16 %v3356
    %v4025 = vunpack.c.h.b16 %v3356
    %v4026 = vunpack.c.l.b16 %v3357
    %v4027 = vunpack.c.l.b16 %v3358
    %v4028 = vunpack.c.h.b16 %v3358
    %v4029 = vunpack.c.l.b16 %v3359
    %v4030 = vunpack.c.h.b16 %v3359
    %v4031 = vunpack.c.l.b16 %v3360
    %v4032 = vunpack.c.h.b16 %v3360
    %v4033 = vunpack.c.l.b16 %v3361
    %v4034 = vunpack.c.l.b16 %v3362
    %v4035 = vunpack.c.h.b16 %v3362
    %v4036 = vunpack.c.l.b16 %v3363
    %v4037 = vunpack.c.h.b16 %v3363
    %v4038 = vunpack.c.l.b16 %v3364
    %v4039 = vunpack.c.h.b16 %v3364
    %v4040 = vunpack.c.l.b16 %v3365
    %v4041 = vunpack.c.l.b16 %v3366
    %v4042 = vunpack.c.h.b16 %v3366
    %v4043 = vunpack.c.l.b16 %v3367
    %v4044 = vunpack.c.h.b16 %v3367
    %v4045 = vunpack.c.l.b16 %v3368
    %v4046 = vunpack.c.h.b16 %v3368
    %v4047 = vunpack.c.l.b16 %v3369
    %v4048 = vunpack.c.l.b16 %v3370
    %v4049 = vunpack.c.h.b16 %v3370
    %v4050 = vunpack.c.l.b16 %v3371
    %v4051 = vunpack.c.h.b16 %v3371
    %v4052 = vunpack.c.l.b16 %v3372
    %v4053 = vunpack.c.h.b16 %v3372
    %v4054 = vunpack.c.l.b16 %v3373
    %v4055 = vunpack.c.l.b16 %v3374
    %v4056 = vunpack.c.h.b16 %v3374
    %v4057 = vunpack.c.l.b16 %v3375
    %v4058 = vunpack.c.h.b16 %v3375
    %v4059 = vunpack.c.l.b16 %v3376
    %v4060 = vunpack.c.h.b16 %v3376
    %v4061 = vunpack.c.l.b16 %v3377
    %v4062 = vunpack.c.l.b16 %v3378
    %v4063 = vunpack.c.h.b16 %v3378
    %v4064 = vunpack.c.l.b16 %v3379
    %v4065 = vunpack.c.h.b16 %v3379
    %v4066 = vunpack.c.l.b16 %v3380
    %v4067 = vunpack.c.h.b16 %v3380
    %v4068 = vunpack.c.l.b16 %v3381
    %v4069 = vunpack.c.l.b16 %v3382
    %v4070 = vunpack.c.h.b16 %v3382
    %v4071 = vunpack.c.l.b16 %v3383
    %v4072 = vunpack.c.h.b16 %v3383
    %v4073 = vunpack.c.l.b16 %v3384
    %v4074 = vunpack.c.h.b16 %v3384
    %v4075 = vunpack.c.l.b16 %v3385
    %v4076 = vunpack.c.l.b16 %v3386
    %v4077 = vunpack.c.h.b16 %v3386
    %v4078 = vunpack.c.l.b16 %v3387
    %v4079 = vunpack.c.h.b16 %v3387
    %v4080 = vunpack.c.l.b16 %v3388
    %v4081 = vunpack.c.h.b16 %v3388
    %v4082 = vunpack.c.l.b16 %v3389
    %v4083 = vunpack.c.l.b16 %v3390
    %v4084 = vunpack.c.h.b16 %v3390
    %v4085 = vunpack.c.l.b16 %v3391
    %v4086 = vunpack.c.h.b16 %v3391
    %v4087 = vunpack.c.l.b16 %v3392
    %v4088 = vunpack.c.h.b16 %v3392
    %v4089 = vunpack.c.l.b16 %v3393
    %v4090 = vunpack.c.l.b16 %v3394
    %v4091 = vunpack.c.h.b16 %v3394
    %v4092 = vunpack.c.l.b16 %v3395
    %v4093 = vunpack.c.h.b16 %v3395
    %v4094 = vunpack.c.l.b16 %v3396
    %v4095 = vunpack.c.h.b16 %v3396
    %v4096 = vunpack.c.l.b16 %v3397
    %v4097 = vunpack.c.l.b16 %v3398
    %v4098 = vunpack.c.h.b16 %v3398
    %v4099 = vunpack.c.l.b16 %v3399
    %v4100 = vunpack.c.h.b16 %v3399
    %v4101 = vunpack.c.l.b16 %v3400
    %v4102 = vunpack.c.h.b16 %v3400
    %v4103 = vunpack.c.l.b16 %v3401
    %v4104 = vunpack.c.l.b16 %v3402
    %v4105 = vunpack.c.h.b16 %v3402
    %v4106 = vunpack.c.l.b16 %v3403
    %v4107 = vunpack.c.h.b16 %v3403
    %v4108 = vunpack.c.l.b16 %v3404
    %v4109 = vunpack.c.h.b16 %v3404
    %v4110 = vunpack.c.l.b16 %v3405
    %v4111 = vunpack.c.l.b16 %v3406
    %v4112 = vunpack.c.h.b16 %v3406
    %v4113 = vunpack.c.l.b16 %v3407
    %v4114 = vunpack.c.h.b16 %v3407
    %v4115 = vunpack.c.l.b16 %v3408
    %v4116 = vunpack.c.h.b16 %v3408
    %v4117 = vunpack.c.l.b16 %v3409
    %v4118 = vunpack.c.l.b16 %v3410
    %v4119 = vunpack.c.h.b16 %v3410
    %v4120 = vunpack.c.l.b16 %v3411
    %v4121 = vunpack.c.h.b16 %v3411
    %v4122 = vunpack.c.l.b16 %v3412
    %v4123 = vunpack.c.h.b16 %v3412
    %v4124 = vunpack.c.l.b16 %v3413
    %v4125 = vunpack.c.l.b16 %v3414
    %v4126 = vunpack.c.h.b16 %v3414
    %v4127 = vunpack.c.l.b16 %v3415
    %v4128 = vunpack.c.h.b16 %v3415
    %v4129 = vunpack.c.l.b16 %v3416
    %v4130 = vunpack.c.h.b16 %v3416
    %v4131 = vunpack.c.l.b16 %v3417
    %v4132 = vunpack.c.l.b16 %v3418
    %v4133 = vunpack.c.h.b16 %v3418
    %v4134 = vunpack.c.l.b16 %v3419
    %v4135 = vunpack.c.h.b16 %v3419
    %v4136 = vunpack.c.l.b16 %v3420
    %v4137 = vunpack.c.h.b16 %v3420
    %v4138 = vunpack.c.l.b16 %v3421
    %v4139 = vunpack.c.l.b16 %v3422
    %v4140 = vunpack.c.h.b16 %v3422
    %v4141 = vunpack.c.l.b16 %v3423
    %v4142 = vunpack.c.h.b16 %v3423
    %v4143 = vunpack.c.l.b16 %v3424
    %v4144 = vunpack.c.h.b16 %v3424
    %v4145 = vunpack.c.l.b16 %v3425
    %v4146 = vunpack.c.l.b16 %v3426
    %v4147 = vunpack.c.h.b16 %v3426
    %v4148 = vunpack.c.l.b16 %v3427
    %v4149 = vunpack.c.h.b16 %v3427
    %v4150 = vunpack.c.l.b16 %v3428
    %v4151 = vunpack.c.h.b16 %v3428
    %v4152 = vunpack.c.l.b16 %v3429
    %v4153 = vunpack.c.l.b16 %v3430
    %v4154 = vunpack.c.h.b16 %v3430
    %v4155 = vunpack.c.l.b16 %v3431
    %v4156 = vunpack.c.h.b16 %v3431
    %v4157 = vunpack.c.l.b16 %v3432
    %v4158 = vunpack.c.h.b16 %v3432
    %v4159 = vunpack.c.l.b16 %v3433
    %v4160 = vunpack.c.l.b16 %v3434
    %v4161 = vunpack.c.h.b16 %v3434
    %v4162 = vunpack.c.l.b16 %v3435
    %v4163 = vunpack.c.h.b16 %v3435
    %v4164 = vunpack.c.l.b16 %v3436
    %v4165 = vunpack.c.h.b16 %v3436
    %v4166 = vunpack.c.l.b16 %v3437
    %v4167 = vunpack.c.l.b16 %v3438
    %v4168 = vunpack.c.h.b16 %v3438
    %v4169 = vunpack.c.l.b16 %v3439
    %v4170 = vunpack.c.h.b16 %v3439
    %v4171 = vunpack.c.l.b16 %v3440
    %v4172 = vunpack.c.h.b16 %v3440
    %v4173 = vunpack.c.l.b16 %v3441
    %v4174 = vunpack.c.l.b16 %v3442
    %v4175 = vunpack.c.h.b16 %v3442
    %v4176 = vunpack.c.l.b16 %v3443
    %v4177 = vunpack.c.h.b16 %v3443
    %v4178 = vunpack.c.l.b16 %v3444
    %v4179 = vunpack.c.h.b16 %v3444
    %v4180 = vunpack.c.l.b16 %v3445
    %v4181 = vunpack.c.l.b16 %v3446
    %v4182 = vunpack.c.h.b16 %v3446
    %v4183 = vunpack.c.l.b16 %v3447
    %v4184 = vunpack.c.h.b16 %v3447
    %v4185 = vunpack.c.l.b16 %v3448
    %v4186 = vunpack.c.h.b16 %v3448
    %v4187 = vunpack.c.l.b16 %v3449
    %v4188 = vunpack.c.l.b16 %v3450
    %v4189 = vunpack.c.h.b16 %v3450
    %v4190 = vunpack.c.l.b16 %v3451
    %v4191 = vunpack.c.h.b16 %v3451
    %v4192 = vunpack.c.l.b16 %v3452
    %v4193 = vunpack.c.h.b16 %v3452
    %v4194 = vunpack.c.l.b16 %v3453
    %v4195 = vpack.c.b16 %v3754, %v3747
    %v4196 = vpack.c.b16 %v3755, %v3748
    %v4197 = vpack.c.b16 %v3756, %v3749
    %v4198 = vpack.c.b16 %v3757, %v3750
    %v4199 = vpack.c.b16 %v3758, %v3751
    %v4200 = vpack.c.b16 %v3759, %v3752
    %v4201 = vpack.c.b16 %v3760, %v3753
    %v4202 = vpack.c.b16 %v3768, %v3761
    %v4203 = vpack.c.b16 %v3769, %v3762
    %v4204 = vpack.c.b16 %v3770, %v3763
    %v4205 = vpack.c.b16 %v3771, %v3764
    %v4206 = vpack.c.b16 %v3772, %v3765
    %v4207 = vpack.c.b16 %v3773, %v3766
    %v4208 = vpack.c.b16 %v3774, %v3767
    %v4209 = vpack.c.b16 %v3782, %v3775
    %v4210 = vpack.c.b16 %v3783, %v3776
    %v4211 = vpack.c.b16 %v3784, %v3777
    %v4212 = vpack.c.b16 %v3785, %v3778
    %v4213 = vpack.c.b16 %v3786, %v3779
    %v4214 = vpack.c.b16 %v3787, %v3780
    %v4215 = vpack.c.b16 %v3788, %v3781
    %v4216 = vpack.c.b16 %v3796, %v3789
    %v4217 = vpack.c.b16 %v3797, %v3790
    %v4218 = vpack.c.b16 %v3798, %v3791
    %v4219 = vpack.c.b16 %v3799, %v3792
    %v4220 = vpack.c.b16 %v3800, %v3793
    %v4221 = vpack.c.b16 %v3801, %v3794
    %v4222 = vpack.c.b16 %v3802, %v3795
    %v4223 = vpack.c.b16 %v3810, %v3803
    %v4224 = vpack.c.b16 %v3811, %v3804
    %v4225 = vpack.c.b16 %v3812, %v3805
    %v4226 = vpack.c.b16 %v3813, %v3806
    %v4227 = vpack.c.b16 %v3814, %v3807
    %v4228 = vpack.c.b16 %v3815, %v3808
    %v4229 = vpack.c.b16 %v3816, %v3809
    %v4230 = vpack.c.b16 %v3824, %v3817
    %v4231 = vpack.c.b16 %v3825, %v3818
    %v4232 = vpack.c.b16 %v3826, %v3819
    %v4233 = vpack.c.b16 %v3827, %v3820
    %v4234 = vpack.c.b16 %v3828, %v3821
    %v4235 = vpack.c.b16 %v3829, %v3822
    %v4236 = vpack.c.b16 %v3830, %v3823
    %v4237 = vpack.c.b16 %v3838, %v3831
    %v4238 = vpack.c.b16 %v3839, %v3832
    %v4239 = vpack.c.b16 %v3840, %v3833
    %v4240 = vpack.c.b16 %v3841, %v3834
    %v4241 = vpack.c.b16 %v3842, %v3835
    %v4242 = vpack.c.b16 %v3843, %v3836
    %v4243 = vpack.c.b16 %v3844, %v3837
    %v4244 = vpack.c.b16 %v3852, %v3845
    %v4245 = vpack.c.b16 %v3853, %v3846
    %v4246 = vpack.c.b16 %v3854, %v3847
    %v4247 = vpack.c.b16 %v3855, %v3848
    %v4248 = vpack.c.b16 %v3856, %v3849
    %v4249 = vpack.c.b16 %v3857, %v3850
    %v4250 = vpack.c.b16 %v3858, %v3851
    %v4251 = vpack.c.b16 %v3866, %v3859
    %v4252 = vpack.c.b16 %v3867, %v3860
    %v4253 = vpack.c.b16 %v3868, %v3861
    %v4254 = vpack.c.b16 %v3869, %v3862
    %v4255 = vpack.c.b16 %v3870, %v3863
    %v4256 = vpack.c.b16 %v3871, %v3864
    %v4257 = vpack.c.b16 %v3872, %v3865
    %v4258 = vpack.c.b16 %v3880, %v3873
    %v4259 = vpack.c.b16 %v3881, %v3874
    %v4260 = vpack.c.b16 %v3882, %v3875
    %v4261 = vpack.c.b16 %v3883, %v3876
    %v4262 = vpack.c.b16 %v3884, %v3877
    %v4263 = vpack.c.b16 %v3885, %v3878
    %v4264 = vpack.c.b16 %v3886, %v3879
    %v4265 = vpack.c.b16 %v3894, %v3887
    %v4266 = vpack.c.b16 %v3895, %v3888
    %v4267 = vpack.c.b16 %v3896, %v3889
    %v4268 = vpack.c.b16 %v3897, %v3890
    %v4269 = vpack.c.b16 %v3898, %v3891
    %v4270 = vpack.c.b16 %v3899, %v3892
    %v4271 = vpack.c.b16 %v3900, %v3893
    %v4272 = vpack.c.b16 %v3908, %v3901
    %v4273 = vpack.c.b16 %v3909, %v3902
    %v4274 = vpack.c.b16 %v3910, %v3903
    %v4275 = vpack.c.b16 %v3911, %v3904
    %v4276 = vpack.c.b16 %v3912, %v3905
    %v4277 = vpack.c.b16 %v3913, %v3906
    %v4278 = vpack.c.b16 %v3914, %v3907
    %v4279 = vpack.c.b16 %v3922, %v3915
    %v4280 = vpack.c.b16 %v3923, %v3916
    %v4281 = vpack.c.b16 %v3924, %v3917
    %v4282 = vpack.c.b16 %v3925, %v3918
    %v4283 = vpack.c.b16 %v3926, %v3919
    %v4284 = vpack.c.b16 %v3927, %v3920
    %v4285 = vpack.c.b16 %v3928, %v3921
    %v4286 = vpack.c.b16 %v3936, %v3929
    %v4287 = vpack.c.b16 %v3937, %v3930
    %v4288 = vpack.c.b16 %v3938, %v3931
    %v4289 = vpack.c.b16 %v3939, %v3932
    %v4290 = vpack.c.b16 %v3940, %v3933
    %v4291 = vpack.c.b16 %v3941, %v3934
    %v4292 = vpack.c.b16 %v3942, %v3935
    %v4293 = vpack.c.b16 %v3950, %v3943
    %v4294 = vpack.c.b16 %v3951, %v3944
    %v4295 = vpack.c.b16 %v3952, %v3945
    %v4296 = vpack.c.b16 %v3953, %v3946
    %v4297 = vpack.c.b16 %v3954, %v3947
    %v4298 = vpack.c.b16 %v3955, %v3948
    %v4299 = vpack.c.b16 %v3956, %v3949
    %v4300 = vpack.c.b16 %v3964, %v3957
    %v4301 = vpack.c.b16 %v3965, %v3958
    %v4302 = vpack.c.b16 %v3966, %v3959
    %v4303 = vpack.c.b16 %v3967, %v3960
    %v4304 = vpack.c.b16 %v3968, %v3961
    %v4305 = vpack.c.b16 %v3969, %v3962
    %v4306 = vpack.c.b16 %v3970, %v3963
    %v4307 = vpack.c.b16 %v3978, %v3971
    %v4308 = vpack.c.b16 %v3979, %v3972
    %v4309 = vpack.c.b16 %v3980, %v3973
    %v4310 = vpack.c.b16 %v3981, %v3974
    %v4311 = vpack.c.b16 %v3982, %v3975
    %v4312 = vpack.c.b16 %v3983, %v3976
    %v4313 = vpack.c.b16 %v3984, %v3977
    %v4314 = vpack.c.b16 %v3992, %v3985
    %v4315 = vpack.c.b16 %v3993, %v3986
    %v4316 = vpack.c.b16 %v3994, %v3987
    %v4317 = vpack.c.b16 %v3995, %v3988
    %v4318 = vpack.c.b16 %v3996, %v3989
    %v4319 = vpack.c.b16 %v3997, %v3990
    %v4320 = vpack.c.b16 %v3998, %v3991
    %v4321 = vpack.c.b16 %v4006, %v3999
    %v4322 = vpack.c.b16 %v4007, %v4000
    %v4323 = vpack.c.b16 %v4008, %v4001
    %v4324 = vpack.c.b16 %v4009, %v4002
    %v4325 = vpack.c.b16 %v4010, %v4003
    %v4326 = vpack.c.b16 %v4011, %v4004
    %v4327 = vpack.c.b16 %v4012, %v4005
    %v4328 = vpack.c.b16 %v4020, %v4013
    %v4329 = vpack.c.b16 %v4021, %v4014
    %v4330 = vpack.c.b16 %v4022, %v4015
    %v4331 = vpack.c.b16 %v4023, %v4016
    %v4332 = vpack.c.b16 %v4024, %v4017
    %v4333 = vpack.c.b16 %v4025, %v4018
    %v4334 = vpack.c.b16 %v4026, %v4019
    %v4335 = vpack.c.b16 %v4034, %v4027
    %v4336 = vpack.c.b16 %v4035, %v4028
    %v4337 = vpack.c.b16 %v4036, %v4029
    %v4338 = vpack.c.b16 %v4037, %v4030
    %v4339 = vpack.c.b16 %v4038, %v4031
    %v4340 = vpack.c.b16 %v4039, %v4032
    %v4341 = vpack.c.b16 %v4040, %v4033
    %v4342 = vpack.c.b16 %v4048, %v4041
    %v4343 = vpack.c.b16 %v4049, %v4042
    %v4344 = vpack.c.b16 %v4050, %v4043
    %v4345 = vpack.c.b16 %v4051, %v4044
    %v4346 = vpack.c.b16 %v4052, %v4045
    %v4347 = vpack.c.b16 %v4053, %v4046
    %v4348 = vpack.c.b16 %v4054, %v4047
    %v4349 = vpack.c.b16 %v4062, %v4055
    %v4350 = vpack.c.b16 %v4063, %v4056
    %v4351 = vpack.c.b16 %v4064, %v4057
    %v4352 = vpack.c.b16 %v4065, %v4058
    %v4353 = vpack.c.b16 %v4066, %v4059
    %v4354 = vpack.c.b16 %v4067, %v4060
    %v4355 = vpack.c.b16 %v4068, %v4061
    %v4356 = vpack.c.b16 %v4076, %v4069
    %v4357 = vpack.c.b16 %v4077, %v4070
    %v4358 = vpack.c.b16 %v4078, %v4071
    %v4359 = vpack.c.b16 %v4079, %v4072
    %v4360 = vpack.c.b16 %v4080, %v4073
    %v4361 = vpack.c.b16 %v4081, %v4074
    %v4362 = vpack.c.b16 %v4082, %v4075
    %v4363 = vpack.c.b16 %v4090, %v4083
    %v4364 = vpack.c.b16 %v4091, %v4084
    %v4365 = vpack.c.b16 %v4092, %v4085
    %v4366 = vpack.c.b16 %v4093, %v4086
    %v4367 = vpack.c.b16 %v4094, %v4087
    %v4368 = vpack.c.b16 %v4095, %v4088
    %v4369 = vpack.c.b16 %v4096, %v4089
    %v4370 = vpack.c.b16 %v4104, %v4097
    %v4371 = vpack.c.b16 %v4105, %v4098
    %v4372 = vpack.c.b16 %v4106, %v4099
    %v4373 = vpack.c.b16 %v4107, %v4100
    %v4374 = vpack.c.b16 %v4108, %v4101
    %v4375 = vpack.c.b16 %v4109, %v4102
    %v4376 = vpack.c.b16 %v4110, %v4103
    %v4377 = vpack.c.b16 %v4118, %v4111
    %v4378 = vpack.c.b16 %v4119, %v4112
    %v4379 = vpack.c.b16 %v4120, %v4113
    %v4380 = vpack.c.b16 %v4121, %v4114
    %v4381 = vpack.c.b16 %v4122, %v4115
    %v4382 = vpack.c.b16 %v4123, %v4116
    %v4383 = vpack.c.b16 %v4124, %v4117
    %v4384 = vpack.c.b16 %v4132, %v4125
    %v4385 = vpack.c.b16 %v4133, %v4126
    %v4386 = vpack.c.b16 %v4134, %v4127
    %v4387 = vpack.c.b16 %v4135, %v4128
    %v4388 = vpack.c.b16 %v4136, %v4129
    %v4389 = vpack.c.b16 %v4137, %v4130
    %v4390 = vpack.c.b16 %v4138, %v4131
    %v4391 = vpack.c.b16 %v4146, %v4139
    %v4392 = vpack.c.b16 %v4147, %v4140
    %v4393 = vpack.c.b16 %v4148, %v4141
    %v4394 = vpack.c.b16 %v4149, %v4142
    %v4395 = vpack.c.b16 %v4150, %v4143
    %v4396 = vpack.c.b16 %v4151, %v4144
    %v4397 = vpack.c.b16 %v4152, %v4145
    %v4398 = vpack.c.b16 %v4160, %v4153
    %v4399 = vpack.c.b16 %v4161, %v4154
    %v4400 = vpack.c.b16 %v4162, %v4155
    %v4401 = vpack.c.b16 %v4163, %v4156
    %v4402 = vpack.c.b16 %v4164, %v4157
    %v4403 = vpack.c.b16 %v4165, %v4158
    %v4404 = vpack.c.b16 %v4166, %v4159
    %v4405 = vpack.c.b16 %v4174, %v4167
    %v4406 = vpack.c.b16 %v4175, %v4168
    %v4407 = vpack.c.b16 %v4176, %v4169
    %v4408 = vpack.c.b16 %v4177, %v4170
    %v4409 = vpack.c.b16 %v4178, %v4171
    %v4410 = vpack.c.b16 %v4179, %v4172
    %v4411 = vpack.c.b16 %v4180, %v4173
    %v4412 = vpack.c.b16 %v4188, %v4181
    %v4413 = vpack.c.b16 %v4189, %v4182
    %v4414 = vpack.c.b16 %v4190, %v4183
    %v4415 = vpack.c.b16 %v4191, %v4184
    %v4416 = vpack.c.b16 %v4192, %v4185
    %v4417 = vpack.c.b16 %v4193, %v4186
    %v4418 = vpack.c.b16 %v4194, %v4187
    %4643 = vmatprep.subr.bf16.mxu0 %v4196
    %4644 = vmatpush1.bf16.msra.mxu0 %v4195
    %4645 = vmatprep.subr.bf16.mxu0 %v4203
    %4646 = vmatpush1.bf16.msra.mxu0 %v4202
    %4647 = vmatprep.subr.bf16.mxu0 %v4210
    %4648 = vmatpush1.bf16.msra.mxu0 %v4209
    %4649 = vmatprep.subr.bf16.mxu0 %v4217
    %4650 = vmatpush1.bf16.msra.mxu0 %v4216
    %4651 = vmatprep.subr.bf16.mxu0 %v4224
    %4652 = vmatpush1.bf16.msra.mxu0 %v4223
    %4653 = vmatprep.subr.bf16.mxu0 %v4231
    %4654 = vmatpush1.bf16.msra.mxu0 %v4230
    %4655 = vmatprep.subr.bf16.mxu0 %v4238
    %4656 = vmatpush1.bf16.msra.mxu0 %v4237
    %4657 = vmatprep.subr.bf16.mxu0 %v4245
    %4658 = vmatpush1.bf16.msra.mxu0 %v4244
    %4659 = vmatprep.subr.bf16.mxu0 %v4252
    %4660 = vmatpush1.bf16.msra.mxu0 %v4251
    %4661 = vmatprep.subr.bf16.mxu0 %v4259
    %4662 = vmatpush1.bf16.msra.mxu0 %v4258
    %4663 = vmatprep.subr.bf16.mxu0 %v4266
    %4664 = vmatpush1.bf16.msra.mxu0 %v4265
    %4665 = vmatprep.subr.bf16.mxu0 %v4273
    %4666 = vmatpush1.bf16.msra.mxu0 %v4272
    %4667 = vmatprep.subr.bf16.mxu0 %v4280
    %4668 = vmatpush1.bf16.msra.mxu0 %v4279
    %4669 = vmatprep.subr.bf16.mxu0 %v4287
    %4670 = vmatpush1.bf16.msra.mxu0 %v4286
    %4671 = vmatprep.subr.bf16.mxu0 %v4294
    %4672 = vmatpush1.bf16.msra.mxu0 %v4293
    %4673 = vmatprep.subr.bf16.mxu0 %v4301
    %4674 = vmatpush1.bf16.msra.mxu0 %v4300
    %4675 = vmatprep.mubr.bf16.mxu0 %v3195
    %4676 = vmatmul.mubr.bf16.gmra.mrb[0].mxu0 %v3194
    %v4677 = vpop.f32.mrb[0].mxu0
    %v4678 = vadd.f32 %v3459, %v4677
    %v4679 = vpop.f32.mrb[0].mxu0
    %v4680 = vadd.f32 %v3463, %v4679
    %v4681 = vpop.f32.mrb[0].mxu0
    %v4682 = vadd.f32 %v3459, %v4681
    %v4683 = vpop.f32.mrb[0].mxu0
    %v4684 = vadd.f32 %v3463, %v4683
    %4685 = vdwg.mxu0
    %4686 = vmatprep.subr.bf16.mxu0 %v4308
    %4687 = vmatpush1.bf16.msra.mxu0 %v4307
    %4688 = vmatprep.subr.bf16.mxu0 %v4315
    %4689 = vmatpush1.bf16.msra.mxu0 %v4314
    %4690 = vmatprep.subr.bf16.mxu0 %v4322
    %4691 = vmatpush1.bf16.msra.mxu0 %v4321
    %4692 = vmatprep.subr.bf16.mxu0 %v4329
    %4693 = vmatpush1.bf16.msra.mxu0 %v4328
    %4694 = vmatprep.subr.bf16.mxu0 %v4336
    %4695 = vmatpush1.bf16.msra.mxu0 %v4335
    %4696 = vmatprep.subr.bf16.mxu0 %v4343
    %4697 = vmatpush1.bf16.msra.mxu0 %v4342
    %4698 = vmatprep.subr.bf16.mxu0 %v4350
    %4699 = vmatpush1.bf16.msra.mxu0 %v4349
    %4700 = vmatprep.subr.bf16.mxu0 %v4357
    %4701 = vmatpush1.bf16.msra.mxu0 %v4356
    %4702 = vmatprep.subr.bf16.mxu0 %v4364
    %4703 = vmatpush1.bf16.msra.mxu0 %v4363
    %4704 = vmatprep.subr.bf16.mxu0 %v4371
    %4705 = vmatpush1.bf16.msra.mxu0 %v4370
    %4706 = vmatprep.subr.bf16.mxu0 %v4378
    %4707 = vmatpush1.bf16.msra.mxu0 %v4377
    %4708 = vmatprep.subr.bf16.mxu0 %v4385
    %4709 = vmatpush1.bf16.msra.mxu0 %v4384
    %4710 = vmatprep.subr.bf16.mxu0 %v4392
    %4711 = vmatpush1.bf16.msra.mxu0 %v4391
    %4712 = vmatprep.subr.bf16.mxu0 %v4399
    %4713 = vmatpush1.bf16.msra.mxu0 %v4398
    %4714 = vmatprep.subr.bf16.mxu0 %v4406
    %4715 = vmatpush1.bf16.msra.mxu0 %v4405
    %4716 = vmatprep.subr.bf16.mxu0 %v4413
    %4717 = vmatpush1.bf16.msra.mxu0 %v4412
    %4718 = vmatprep.mubr.bf16.mxu0 %v3197
    %4719 = vmatmul.mubr.bf16.gmra.mrb[0].mxu0 %v3196
    %v4720 = vpop.f32.mrb[0].mxu0
    %v4721 = vadd.f32 %v4678, %v4720
    %v4722 = vpop.f32.mrb[0].mxu0
    %v4723 = vadd.f32 %v4680, %v4722
    %v4724 = vpop.f32.mrb[0].mxu0
    %v4725 = vadd.f32 %v4682, %v4724
    %v4726 = vpop.f32.mrb[0].mxu0
    %v4727 = vadd.f32 %v4684, %v4726
    %4728 = vdwg.mxu0
    %4729 = vmatprep.subr.bf16.mxu0 %v4198
    %4730 = vmatpush1.bf16.msra.mxu0 %v4197
    %4731 = vmatprep.subr.bf16.mxu0 %v4205
    %4732 = vmatpush1.bf16.msra.mxu0 %v4204
    %4733 = vmatprep.subr.bf16.mxu0 %v4212
    %4734 = vmatpush1.bf16.msra.mxu0 %v4211
    %4735 = vmatprep.subr.bf16.mxu0 %v4219
    %4736 = vmatpush1.bf16.msra.mxu0 %v4218
    %4737 = vmatprep.subr.bf16.mxu0 %v4226
    %4738 = vmatpush1.bf16.msra.mxu0 %v4225
    %4739 = vmatprep.subr.bf16.mxu0 %v4233
    %4740 = vmatpush1.bf16.msra.mxu0 %v4232
    %4741 = vmatprep.subr.bf16.mxu0 %v4240
    %4742 = vmatpush1.bf16.msra.mxu0 %v4239
    %4743 = vmatprep.subr.bf16.mxu0 %v4247
    %4744 = vmatpush1.bf16.msra.mxu0 %v4246
    %4745 = vmatprep.subr.bf16.mxu0 %v4254
    %4746 = vmatpush1.bf16.msra.mxu0 %v4253
    %4747 = vmatprep.subr.bf16.mxu0 %v4261
    %4748 = vmatpush1.bf16.msra.mxu0 %v4260
    %4749 = vmatprep.subr.bf16.mxu0 %v4268
    %4750 = vmatpush1.bf16.msra.mxu0 %v4267
    %4751 = vmatprep.subr.bf16.mxu0 %v4275
    %4752 = vmatpush1.bf16.msra.mxu0 %v4274
    %4753 = vmatprep.subr.bf16.mxu0 %v4282
    %4754 = vmatpush1.bf16.msra.mxu0 %v4281
    %4755 = vmatprep.subr.bf16.mxu0 %v4289
    %4756 = vmatpush1.bf16.msra.mxu0 %v4288
    %4757 = vmatprep.subr.bf16.mxu0 %v4296
    %4758 = vmatpush1.bf16.msra.mxu0 %v4295
    %4759 = vmatprep.subr.bf16.mxu0 %v4303
    %4760 = vmatpush1.bf16.msra.mxu0 %v4302
    %4761 = vmatprep.mubr.bf16.mxu0 %v3195
    %4762 = vmatmul.mubr.bf16.gmra.mrb[0].mxu0 %v3194
    %v4763 = vpop.f32.mrb[0].mxu0
    %v4764 = vadd.f32 %v3467, %v4763
    %v4765 = vpop.f32.mrb[0].mxu0
    %v4766 = vadd.f32 %v3471, %v4765
    %v4767 = vpop.f32.mrb[0].mxu0
    %v4768 = vadd.f32 %v3467, %v4767
    %v4769 = vpop.f32.mrb[0].mxu0
    %v4770 = vadd.f32 %v3471, %v4769
    %4771 = vdwg.mxu0
    %4772 = vmatprep.subr.bf16.mxu0 %v4310
    %4773 = vmatpush1.bf16.msra.mxu0 %v4309
    %4774 = vmatprep.subr.bf16.mxu0 %v4317
    %4775 = vmatpush1.bf16.msra.mxu0 %v4316
    %4776 = vmatprep.subr.bf16.mxu0 %v4324
    %4777 = vmatpush1.bf16.msra.mxu0 %v4323
    %4778 = vmatprep.subr.bf16.mxu0 %v4331
    %4779 = vmatpush1.bf16.msra.mxu0 %v4330
    %4780 = vmatprep.subr.bf16.mxu0 %v4338
    %4781 = vmatpush1.bf16.msra.mxu0 %v4337
    %4782 = vmatprep.subr.bf16.mxu0 %v4345
    %4783 = vmatpush1.bf16.msra.mxu0 %v4344
    %4784 = vmatprep.subr.bf16.mxu0 %v4352
    %4785 = vmatpush1.bf16.msra.mxu0 %v4351
    %4786 = vmatprep.subr.bf16.mxu0 %v4359
    %4787 = vmatpush1.bf16.msra.mxu0 %v4358
    %4788 = vmatprep.subr.bf16.mxu0 %v4366
    %4789 = vmatpush1.bf16.msra.mxu0 %v4365
    %4790 = vmatprep.subr.bf16.mxu0 %v4373
    %4791 = vmatpush1.bf16.msra.mxu0 %v4372
    %4792 = vmatprep.subr.bf16.mxu0 %v4380
    %4793 = vmatpush1.bf16.msra.mxu0 %v4379
    %4794 = vmatprep.subr.bf16.mxu0 %v4387
    %4795 = vmatpush1.bf16.msra.mxu0 %v4386
    %4796 = vmatprep.subr.bf16.mxu0 %v4394
    %4797 = vmatpush1.bf16.msra.mxu0 %v4393
    %4798 = vmatprep.subr.bf16.mxu0 %v4401
    %4799 = vmatpush1.bf16.msra.mxu0 %v4400
    %4800 = vmatprep.subr.bf16.mxu0 %v4408
    %4801 = vmatpush1.bf16.msra.mxu0 %v4407
    %4802 = vmatprep.subr.bf16.mxu0 %v4415
    %4803 = vmatpush1.bf16.msra.mxu0 %v4414
    %4804 = vmatprep.mubr.bf16.mxu0 %v3197
    %4805 = vmatmul.mubr.bf16.gmra.mrb[0].mxu0 %v3196
    %v4806 = vpop.f32.mrb[0].mxu0
    %v4807 = vadd.f32 %v4764, %v4806
    %v4808 = vpop.f32.mrb[0].mxu0
    %v4809 = vadd.f32 %v4766, %v4808
    %v4810 = vpop.f32.mrb[0].mxu0
    %v4811 = vadd.f32 %v4768, %v4810
    %v4812 = vpop.f32.mrb[0].mxu0
    %v4813 = vadd.f32 %v4770, %v4812
    %4814 = vdwg.mxu0
    %4815 = vmatprep.subr.bf16.mxu0 %v4200
    %4816 = vmatpush1.bf16.msra.mxu0 %v4199
    %4817 = vmatprep.subr.bf16.mxu0 %v4207
    %4818 = vmatpush1.bf16.msra.mxu0 %v4206
    %4819 = vmatprep.subr.bf16.mxu0 %v4214
    %4820 = vmatpush1.bf16.msra.mxu0 %v4213
    %4821 = vmatprep.subr.bf16.mxu0 %v4221
    %4822 = vmatpush1.bf16.msra.mxu0 %v4220
    %4823 = vmatprep.subr.bf16.mxu0 %v4228
    %4824 = vmatpush1.bf16.msra.mxu0 %v4227
    %4825 = vmatprep.subr.bf16.mxu0 %v4235
    %4826 = vmatpush1.bf16.msra.mxu0 %v4234
    %4827 = vmatprep.subr.bf16.mxu0 %v4242
    %4828 = vmatpush1.bf16.msra.mxu0 %v4241
    %4829 = vmatprep.subr.bf16.mxu0 %v4249
    %4830 = vmatpush1.bf16.msra.mxu0 %v4248
    %4831 = vmatprep.subr.bf16.mxu0 %v4256
    %4832 = vmatpush1.bf16.msra.mxu0 %v4255
    %4833 = vmatprep.subr.bf16.mxu0 %v4263
    %4834 = vmatpush1.bf16.msra.mxu0 %v4262
    %4835 = vmatprep.subr.bf16.mxu0 %v4270
    %4836 = vmatpush1.bf16.msra.mxu0 %v4269
    %4837 = vmatprep.subr.bf16.mxu0 %v4277
    %4838 = vmatpush1.bf16.msra.mxu0 %v4276
    %4839 = vmatprep.subr.bf16.mxu0 %v4284
    %4840 = vmatpush1.bf16.msra.mxu0 %v4283
    %4841 = vmatprep.subr.bf16.mxu0 %v4291
    %4842 = vmatpush1.bf16.msra.mxu0 %v4290
    %4843 = vmatprep.subr.bf16.mxu0 %v4298
    %4844 = vmatpush1.bf16.msra.mxu0 %v4297
    %4845 = vmatprep.subr.bf16.mxu0 %v4305
    %4846 = vmatpush1.bf16.msra.mxu0 %v4304
    %4847 = vmatprep.mubr.bf16.mxu0 %v3195
    %4848 = vmatmul.mubr.bf16.gmra.mrb[0].mxu0 %v3194
    %v4849 = vpop.f32.mrb[0].mxu0
    %v4850 = vadd.f32 %v3475, %v4849
    %v4851 = vpop.f32.mrb[0].mxu0
    %v4852 = vadd.f32 %v3479, %v4851
    %v4853 = vpop.f32.mrb[0].mxu0
    %v4854 = vadd.f32 %v3475, %v4853
    %v4855 = vpop.f32.mrb[0].mxu0
    %v4856 = vadd.f32 %v3479, %v4855
    %4857 = vdwg.mxu0
    %4858 = vmatprep.subr.bf16.mxu0 %v4312
    %4859 = vmatpush1.bf16.msra.mxu0 %v4311
    %4860 = vmatprep.subr.bf16.mxu0 %v4319
    %4861 = vmatpush1.bf16.msra.mxu0 %v4318
    %4862 = vmatprep.subr.bf16.mxu0 %v4326
    %4863 = vmatpush1.bf16.msra.mxu0 %v4325
    %4864 = vmatprep.subr.bf16.mxu0 %v4333
    %4865 = vmatpush1.bf16.msra.mxu0 %v4332
    %4866 = vmatprep.subr.bf16.mxu0 %v4340
    %4867 = vmatpush1.bf16.msra.mxu0 %v4339
    %4868 = vmatprep.subr.bf16.mxu0 %v4347
    %4869 = vmatpush1.bf16.msra.mxu0 %v4346
    %4870 = vmatprep.subr.bf16.mxu0 %v4354
    %4871 = vmatpush1.bf16.msra.mxu0 %v4353
    %4872 = vmatprep.subr.bf16.mxu0 %v4361
    %4873 = vmatpush1.bf16.msra.mxu0 %v4360
    %4874 = vmatprep.subr.bf16.mxu0 %v4368
    %4875 = vmatpush1.bf16.msra.mxu0 %v4367
    %4876 = vmatprep.subr.bf16.mxu0 %v4375
    %4877 = vmatpush1.bf16.msra.mxu0 %v4374
    %4878 = vmatprep.subr.bf16.mxu0 %v4382
    %4879 = vmatpush1.bf16.msra.mxu0 %v4381
    %4880 = vmatprep.subr.bf16.mxu0 %v4389
    %4881 = vmatpush1.bf16.msra.mxu0 %v4388
    %4882 = vmatprep.subr.bf16.mxu0 %v4396
    %4883 = vmatpush1.bf16.msra.mxu0 %v4395
    %4884 = vmatprep.subr.bf16.mxu0 %v4403
    %4885 = vmatpush1.bf16.msra.mxu0 %v4402
    %4886 = vmatprep.subr.bf16.mxu0 %v4410
    %4887 = vmatpush1.bf16.msra.mxu0 %v4409
    %4888 = vmatprep.subr.bf16.mxu0 %v4417
    %4889 = vmatpush1.bf16.msra.mxu0 %v4416
    %4890 = vmatprep.mubr.bf16.mxu0 %v3197
    %4891 = vmatmul.mubr.bf16.gmra.mrb[0].mxu0 %v3196
    %v4892 = vpop.f32.mrb[0].mxu0
    %v4893 = vadd.f32 %v4850, %v4892
    %v4894 = vpop.f32.mrb[0].mxu0
    %v4895 = vadd.f32 %v4852, %v4894
    %v4896 = vpop.f32.mrb[0].mxu0
    %v4897 = vadd.f32 %v4854, %v4896
    %v4898 = vpop.f32.mrb[0].mxu0
    %v4899 = vadd.f32 %v4856, %v4898
    %4900 = vdwg.mxu0
    %4901 = vmatprep.subr.bf16.mxu0 0
    %4902 = vmatpush1.bf16.msra.mxu0 %v4201
    %4903 = vmatprep.subr.bf16.mxu0 0
    %4904 = vmatpush1.bf16.msra.mxu0 %v4208
    %4905 = vmatprep.subr.bf16.mxu0 0
    %4906 = vmatpush1.bf16.msra.mxu0 %v4215
    %4907 = vmatprep.subr.bf16.mxu0 0
    %4908 = vmatpush1.bf16.msra.mxu0 %v4222
    %4909 = vmatprep.subr.bf16.mxu0 0
    %4910 = vmatpush1.bf16.msra.mxu0 %v4229
    %4911 = vmatprep.subr.bf16.mxu0 0
    %4912 = vmatpush1.bf16.msra.mxu0 %v4236
    %4913 = vmatprep.subr.bf16.mxu0 0
    %4914 = vmatpush1.bf16.msra.mxu0 %v4243
    %4915 = vmatprep.subr.bf16.mxu0 0
    %4916 = vmatpush1.bf16.msra.mxu0 %v4250
    %4917 = vmatprep.subr.bf16.mxu0 0
    %4918 = vmatpush1.bf16.msra.mxu0 %v4257
    %4919 = vmatprep.subr.bf16.mxu0 0
    %4920 = vmatpush1.bf16.msra.mxu0 %v4264
    %4921 = vmatprep.subr.bf16.mxu0 0
    %4922 = vmatpush1.bf16.msra.mxu0 %v4271
    %4923 = vmatprep.subr.bf16.mxu0 0
    %4924 = vmatpush1.bf16.msra.mxu0 %v4278
    %4925 = vmatprep.subr.bf16.mxu0 0
    %4926 = vmatpush1.bf16.msra.mxu0 %v4285
    %4927 = vmatprep.subr.bf16.mxu0 0
    %4928 = vmatpush1.bf16.msra.mxu0 %v4292
    %4929 = vmatprep.subr.bf16.mxu0 0
    %4930 = vmatpush1.bf16.msra.mxu0 %v4299
    %4931 = vmatprep.subr.bf16.mxu0 0
    %4932 = vmatpush1.bf16.msra.mxu0 %v4306
    %4933 = vmatprep.mubr.bf16.mxu0 %v3195
    %4934 = vmatmul.mubr.bf16.gmra.mrb[0].mxu0 %v3194
    %v4935 = vpop.f32.mrb[0].mxu0
    %v4936 = vadd.f32 %v3483, %v4935
    %v4937 = vpop.f32.mrb[0].mxu0
    %v4938 = vpop.f32.mrb[0].mxu0
    %v4939 = vadd.f32 %v3483, %v4938
    %v4940 = vpop.f32.mrb[0].mxu0
    %4941 = vdwg.mxu0
    %4942 = vmatprep.subr.bf16.mxu0 0
    %4943 = vmatpush1.bf16.msra.mxu0 %v4313
    %4944 = vmatprep.subr.bf16.mxu0 0
    %4945 = vmatpush1.bf16.msra.mxu0 %v4320
    %4946 = vmatprep.subr.bf16.mxu0 0
    %4947 = vmatpush1.bf16.msra.mxu0 %v4327
    %4948 = vmatprep.subr.bf16.mxu0 0
    %4949 = vmatpush1.bf16.msra.mxu0 %v4334
    %4950 = vmatprep.subr.bf16.mxu0 0
    %4951 = vmatpush1.bf16.msra.mxu0 %v4341
    %4952 = vmatprep.subr.bf16.mxu0 0
    %4953 = vmatpush1.bf16.msra.mxu0 %v4348
    %4954 = vmatprep.subr.bf16.mxu0 0
    %4955 = vmatpush1.bf16.msra.mxu0 %v4355
    %4956 = vmatprep.subr.bf16.mxu0 0
    %4957 = vmatpush1.bf16.msra.mxu0 %v4362
    %4958 = vmatprep.subr.bf16.mxu0 0
    %4959 = vmatpush1.bf16.msra.mxu0 %v4369
    %4960 = vmatprep.subr.bf16.mxu0 0
    %4961 = vmatpush1.bf16.msra.mxu0 %v4376
    %4962 = vmatprep.subr.bf16.mxu0 0
    %4963 = vmatpush1.bf16.msra.mxu0 %v4383
    %4964 = vmatprep.subr.bf16.mxu0 0
    %4965 = vmatpush1.bf16.msra.mxu0 %v4390
    %4966 = vmatprep.subr.bf16.mxu0 0
    %4967 = vmatpush1.bf16.msra.mxu0 %v4397
    %4968 = vmatprep.subr.bf16.mxu0 0
    %4969 = vmatpush1.bf16.msra.mxu0 %v4404
    %4970 = vmatprep.subr.bf16.mxu0 0
    %4971 = vmatpush1.bf16.msra.mxu0 %v4411
    %4972 = vmatprep.subr.bf16.mxu0 0
    %4973 = vmatpush1.bf16.msra.mxu0 %v4418
    %4974 = vmatprep.mubr.bf16.mxu0 %v3197
    %4975 = vmatmul.mubr.bf16.gmra.mrb[0].mxu0 %v3196
    %v4976 = vpop.f32.mrb[0].mxu0
    %v4977 = vadd.f32 %v4936, %v4976
    %v4978 = vpop.f32.mrb[0].mxu0
    %v4979 = vpop.f32.mrb[0].mxu0
    %v4980 = vadd.f32 %v4939, %v4979
    %v4981 = vpop.f32.mrb[0].mxu0
    %4982 = vdwg.mxu0
    %v4983 = vxor.u32 %v4721, 2147483648
    %v4984 = vxor.u32 %v4723, 2147483648
    %v4985 = vxor.u32 %v4807, 2147483648
    %v4986 = vxor.u32 %v4809, 2147483648
    %v4987 = vxor.u32 %v4893, 2147483648
    %v4988 = vxor.u32 %v4895, 2147483648
    %v4989 = vxor.u32 %v4977, 2147483648
    %v4990 = vxor.u32 %v4725, 2147483648
    %v4991 = vxor.u32 %v4727, 2147483648
    %v4992 = vxor.u32 %v4811, 2147483648
    %v4993 = vxor.u32 %v4813, 2147483648
    %v4994 = vxor.u32 %v4897, 2147483648
    %v4995 = vxor.u32 %v4899, 2147483648
    %v4996 = vxor.u32 %v4980, 2147483648
    %v4997 = vmul.f32 %v4983, 1.442695
    %v4998 = vpow.pop %v4997
    %v4999 = vmul.f32 %v4984, 1.442695
    %v5000 = vpow.pop %v4999
    %v5001 = vmul.f32 %v4985, 1.442695
    %v5002 = vpow.pop %v5001
    %v5003 = vmul.f32 %v4986, 1.442695
    %v5004 = vpow.pop %v5003
    %v5005 = vmul.f32 %v4987, 1.442695
    %v5006 = vpow.pop %v5005
    %v5007 = vmul.f32 %v4988, 1.442695
    %v5008 = vpow.pop %v5007
    %v5009 = vmul.f32 %v4989, 1.442695
    %v5010 = vpow.pop %v5009
    %v5011 = vmul.f32 %v4990, 1.442695
    %v5012 = vpow.pop %v5011
    %v5013 = vmul.f32 %v4991, 1.442695
    %v5014 = vpow.pop %v5013
    %v5015 = vmul.f32 %v4992, 1.442695
    %v5016 = vpow.pop %v5015
    %v5017 = vmul.f32 %v4993, 1.442695
    %v5018 = vpow.pop %v5017
    %v5019 = vmul.f32 %v4994, 1.442695
    %v5020 = vpow.pop %v5019
    %v5021 = vmul.f32 %v4995, 1.442695
    %v5022 = vpow.pop %v5021
    %v5023 = vmul.f32 %v4996, 1.442695
    %v5024 = vpow.pop %v5023
    %v5025 = vadd.f32 %v4998, 1.0
    %v5026 = vadd.f32 %v5000, 1.0
    %v5027 = vadd.f32 %v5002, 1.0
    %v5028 = vadd.f32 %v5004, 1.0
    %v5029 = vadd.f32 %v5006, 1.0
    %v5030 = vadd.f32 %v5008, 1.0
    %v5031 = vadd.f32 %v5010, 1.0
    %v5032 = vadd.f32 %v5012, 1.0
    %v5033 = vadd.f32 %v5014, 1.0
    %v5034 = vadd.f32 %v5016, 1.0
    %v5035 = vadd.f32 %v5018, 1.0
    %v5036 = vadd.f32 %v5020, 1.0
    %v5037 = vadd.f32 %v5022, 1.0
    %v5038 = vadd.f32 %v5024, 1.0
    %v5039 = vrcp.pop %v5025
    %v5040 = vmul.f32 1.0, %v5039
    %v5041 = vrcp.pop %v5026
    %v5042 = vmul.f32 1.0, %v5041
    %v5043 = vrcp.pop %v5027
    %v5044 = vmul.f32 1.0, %v5043
    %v5045 = vrcp.pop %v5028
    %v5046 = vmul.f32 1.0, %v5045
    %v5047 = vrcp.pop %v5029
    %v5048 = vmul.f32 1.0, %v5047
    %v5049 = vrcp.pop %v5030
    %v5050 = vmul.f32 1.0, %v5049
    %v5051 = vrcp.pop %v5031
    %v5052 = vmul.f32 1.0, %v5051
    %v5053 = vrcp.pop %v5032
    %v5054 = vmul.f32 1.0, %v5053
    %v5055 = vrcp.pop %v5033
    %v5056 = vmul.f32 1.0, %v5055
    %v5057 = vrcp.pop %v5034
    %v5058 = vmul.f32 1.0, %v5057
    %v5059 = vrcp.pop %v5035
    %v5060 = vmul.f32 1.0, %v5059
    %v5061 = vrcp.pop %v5036
    %v5062 = vmul.f32 1.0, %v5061
    %v5063 = vrcp.pop %v5037
    %v5064 = vmul.f32 1.0, %v5063
    %v5065 = vrcp.pop %v5038
    %v5066 = vmul.f32 1.0, %v5065
    %5067 = vst [vmem:[#allocation19] sm:$0xff] %v5040
    %5068 = vst [vmem:[#allocation19 + $0x8] sm:$0xff] %v5042
    %5069 = vst [vmem:[#allocation19 + $0x10] sm:$0xff] %v5044
    %5070 = vst [vmem:[#allocation19 + $0x18] sm:$0xff] %v5046
    %5071 = vst [vmem:[#allocation19 + $0x20] sm:$0xff] %v5048
    %5072 = vst [vmem:[#allocation19 + $0x28] sm:$0xff] %v5050
    %5073 = vst [vmem:[#allocation19 + $0x30] sm:$0xff] %v5052
    %5074 = vst [vmem:[#allocation19 + $0x38] sm:$0xff] %v5054
    %5075 = vst [vmem:[#allocation19 + $0x40] sm:$0xff] %v5056
    %5076 = vst [vmem:[#allocation19 + $0x48] sm:$0xff] %v5058
    %5077 = vst [vmem:[#allocation19 + $0x50] sm:$0xff] %v5060
    %5078 = vst [vmem:[#allocation19 + $0x58] sm:$0xff] %v5062
    %5079 = vst [vmem:[#allocation19 + $0x60] sm:$0xff] %v5064
    %5080 = vst [vmem:[#allocation19 + $0x68] sm:$0xff] %v5066
    // Predicated region
    $region98: #{vade_forward.1} parent=1 // pred_check
      _
    $region99: #{vade_forward.1} parent=1 // pred_check_branch
      %5082 = sbr.rel (0) target = $region101
    $region100: #{vade_forward.1} parent=1 // pred_region
      %s5084 = ssub.s32 1792, 1792
      %5085 = vsyncadd [#allocation4], %s5084
      %s5086 = sshll.u32 [#allocation19], 4
      %s5087 = int_to_ptr.vmem [resolvable:$true] %s5086
      %5092 = dma.vmem_to_hbm [thread:$0]  %s5087, 1792, %s14, [#allocation4], 896, 896, 56
    $region101: #{vade_forward.1} parent=1 // pred_fallthru
      _
    // Predicated region
    $region102: #{vade_forward.1} parent=1 // pred_check
      _
    $region103: #{vade_forward.1} parent=1 // pred_check_branch
      %5094 = sbr.rel (0) target = $region105
    $region104: #{vade_forward.1} parent=1 // pred_region
      _
    $region105: #{vade_forward.1} parent=1 // pred_fallthru
      _
    // Predicated region
    $region106: #{vade_forward.1} parent=1 // pred_check
      _
    $region107: #{vade_forward.1} parent=1 // pred_check_branch
      %5096 = sbr.rel (0) target = $region109
    $region108: #{vade_forward.1} parent=1 // pred_region
      %5097 = dma.done [#allocation4], 1792
    $region109: #{vade_forward.1} parent=1 // pred_fallthru
      _
    // Predicated region
    $region110: #{vade_forward.1} parent=1 // pred_check
      _
    $region111: #{vade_forward.1} parent=1 // pred_check_branch
      %5099 = sbr.rel (0) target = $region113
    $region112: #{vade_forward.1} parent=1 // pred_region
      _
    $region113: #{vade_forward.1} parent=1 // pred_fallthru
      _
    %5100 = vsyncpa [#allocation3], 1
    %5101 = vsyncpa [#allocation6], 1
    %5102 = vsyncpa [#allocation9], 1
    %5103 = vsyncpa [#allocation12], 1
    %5104 = vsyncpa [#allocation15], 1
    %5105 = vsyncpa [#allocation18], 1
    %5106 = vsyncpa [#allocation4], 1

</llo_original>
